<compile_context>
chip_gen: v6e
topology: v6e:2x2x1
jax: 0.10.0
libtpu: 0.0.40
codegen_flags: <defaults>
</compile_context>

<pallas_src>
import functools
import math

import jax
import jax.numpy as jnp
from jax.experimental import pallas as pl
from jax.experimental.pallas import tpu as pltpu

NUM_HEADS = 12  # hardcoded in RobertaSelfAttention.__init__


def _roberta_attention_kernel(
    x_ref, mask_ref, wq_ref, bq_ref, wkv_ref, bkv_ref, wo_ref, bo_ref,
    gamma_ref, beta_ref, out_ref, kh_ref, vh_ref,
    *, num_heads, head_size, q_tile, head_group, eps,
):
    H = num_heads * head_size
    S = x_ref.shape[1]
    qi = pl.program_id(1)

    # ---- fused K/V projection, once per batch row, stored head-major ----
    @pl.when(qi == 0)
    def _():
        x_all = x_ref[0]                                           # (S, H)
        kv = jnp.dot(x_all, wkv_ref[...],
                     preferred_element_type=jnp.float32)           # (S, 2H) f32
        kv = kv + bkv_ref[...].astype(jnp.float32)
        kv = kv.astype(kh_ref.dtype)
        k = kv[:, :H]
        v = kv[:, H:]
        kh_ref[...] = jnp.swapaxes(k.reshape(S, num_heads, head_size), 0, 1)
        vh_ref[...] = jnp.swapaxes(v.reshape(S, num_heads, head_size), 0, 1)

    row0 = pl.multiple_of(qi * q_tile, q_tile)
    x_tile = x_ref[0, pl.ds(row0, q_tile), :]                      # (TQ, H)

    # ---- per-tile Q projection (balances MXU work across grid steps) ----
    q = jnp.dot(x_tile, wq_ref[...], preferred_element_type=jnp.float32)
    q = (q + bq_ref[...].astype(jnp.float32)).astype(kh_ref.dtype)
    qh = jnp.swapaxes(q.reshape(q_tile, num_heads, head_size), 0, 1)  # (nh,TQ,d)

    scale = 1.0 / math.sqrt(head_size)
    mask_f = mask_ref[...].astype(jnp.float32)                     # (1, 1, S)

    # Start y with residual + output bias; accumulate per-head-group Wo partials.
    y = x_tile.astype(jnp.float32) + bo_ref[...].astype(jnp.float32)  # (TQ, H)

    n_groups = num_heads // head_group
    for g in range(n_groups):
        h0 = g * head_group
        qg = qh[h0:h0 + head_group]                                # (hg, TQ, d)
        kg = kh_ref[pl.ds(h0, head_group)]                         # (hg, S, d)
        vg = vh_ref[pl.ds(h0, head_group)]                         # (hg, S, d)

        s = jnp.einsum("hqd,hkd->hqk", qg, kg,
                       preferred_element_type=jnp.float32)         # (hg, TQ, S)
        s = s * scale + mask_f
        s = s - jnp.max(s, axis=-1, keepdims=True)
        p = jnp.exp(s)
        p = p * pl.reciprocal(jnp.sum(p, axis=-1, keepdims=True), approx=True)
        # TODO(synk): attention-probs dropout / head_mask omitted (eval mode).

        c = jnp.einsum("hqk,hkd->hqd", p.astype(vg.dtype), vg,
                       preferred_element_type=jnp.float32)         # (hg, TQ, d)
        c2 = jnp.swapaxes(c, 0, 1).reshape(q_tile, head_group * head_size)
        wo_rows = wo_ref[pl.ds(h0 * head_size, head_group * head_size), :]
        y = y + jnp.dot(c2.astype(wo_ref.dtype), wo_rows,
                        preferred_element_type=jnp.float32)        # (TQ, H)

    # ---- LayerNorm, single-pass statistics ----
    mu = jnp.mean(y, axis=-1, keepdims=True)
    var = jnp.maximum(jnp.mean(y * y, axis=-1, keepdims=True) - mu * mu, 0.0)
    yn = (y - mu) * jax.lax.rsqrt(var + eps)
    out = yn * gamma_ref[...].astype(jnp.float32) + beta_ref[...].astype(jnp.float32)
    out_ref[0] = out.astype(out_ref.dtype)


def pack_roberta_attention_params(wq, bq, wk, bk, wv, bv, wo, bo, gamma, beta,
                                  *, param_dtype=None):
    """One-time packing (call at weight-load time, not per forward call).

    Weights are cast to `param_dtype` (e.g. the activation dtype, bf16) so MXU
    operands match; small vectors are kept in their original dtype.
    """
    H = wq.shape[0]
    if param_dtype is None:
        param_dtype = wq.dtype
    return dict(
        wq=wq.astype(param_dtype),
        bq=bq.reshape(1, H),
        wkv=jnp.concatenate([wk, wv], axis=1).astype(param_dtype),   # (H, 2H)
        bkv=jnp.concatenate([bk, bv], axis=0).reshape(1, 2 * H),
        wo=wo.astype(param_dtype),
        bo=bo.reshape(1, H),
        gamma=gamma.reshape(1, H),
        beta=beta.reshape(1, H),
    )


def roberta_attention(hidden_states, attention_mask, params,
                      *, layer_norm_eps=1e-12, q_tile=None, head_group=4):
    B, S, H = hidden_states.shape
    assert H % NUM_HEADS == 0
    head_size = H // NUM_HEADS

    mask3 = attention_mask.reshape(B, 1, S)

    # Query tile: divisor of S, preferring 128 (bounds the (hg,TQ,S) softmax
    # slab, gives more pipeline steps); fall back to 64 / 256 / full-S.
    if q_tile is None:
        q_tile = S
        for cand in (128, 64, 256):
            if S > cand and S % cand == 0:
                q_tile = cand
                break
    assert S % q_tile == 0
    nq = S // q_tile

    # Head-group size must divide num_heads.
    head_group = max(1, min(head_group, NUM_HEADS))
    while NUM_HEADS % head_group != 0:
        head_group -= 1

    kernel = functools.partial(
        _roberta_attention_kernel,
        num_heads=NUM_HEADS, head_size=head_size, q_tile=q_tile,
        head_group=head_group, eps=layer_norm_eps)

    const2d = lambda shape: pl.BlockSpec(shape, lambda b, q: (0, 0))

    return pl.pallas_call(
        kernel,
        out_shape=jax.ShapeDtypeStruct((B, S, H), hidden_states.dtype),
        grid_spec=pltpu.PrefetchScalarGridSpec(
            num_scalar_prefetch=0,
            grid=(B, nq),
            in_specs=[
                pl.BlockSpec((1, S, H), lambda b, q: (b, 0, 0)),   # hidden_states
                pl.BlockSpec((1, 1, S), lambda b, q: (b, 0, 0)),   # additive mask
                const2d((H, H)),                                    # Wq
                const2d((1, H)),                                    # bq
                const2d((H, 2 * H)),                                # Wkv (fused)
                const2d((1, 2 * H)),                                # bkv
                const2d((H, H)),                                    # Wo
                const2d((1, H)),                                    # bo
                const2d((1, H)),                                    # gamma
                const2d((1, H)),                                    # beta
            ],
            out_specs=pl.BlockSpec((1, q_tile, H), lambda b, q: (b, q, 0)),
            scratch_shapes=[
                pltpu.VMEM((NUM_HEADS, S, head_size), hidden_states.dtype),  # K head-major
                pltpu.VMEM((NUM_HEADS, S, head_size), hidden_states.dtype),  # V head-major
            ],
        ),
        compiler_params=pltpu.CompilerParams(
            dimension_semantics=("parallel", "arbitrary"),
            # v7x has only 64 MiB VMEM per TC: leave headroom for internal scratch.
            vmem_limit_bytes=48 * 1024 * 1024,
        ),
    )(hidden_states, mask3, params["wq"], params["bq"], params["wkv"],
      params["bkv"], params["wo"], params["bo"], params["gamma"], params["beta"])


def _reference(hidden_states, attention_mask, wq, bq, wk, bk, wv, bv, wo, bo,
               gamma, beta, eps=1e-12):
    B, S, H = hidden_states.shape
    d = H // NUM_HEADS
    x = hidden_states
    q = x @ wq + bq
    k = x @ wk + bk
    v = x @ wv + bv

    def split(t):  # (B,S,H) -> (B,nh,S,d)
        return t.reshape(B, S, NUM_HEADS, d).transpose(0, 2, 1, 3)

    qh, kh, vh = split(q), split(k), split(v)
    scores = jnp.einsum("bhqd,bhkd->bhqk", qh, kh) / math.sqrt(d)
    scores = scores + attention_mask[:, None, None, :]
    p = jax.nn.softmax(scores, axis=-1)
    ctx = jnp.einsum("bhqk,bhkd->bhqd", p, vh)
    ctx = ctx.transpose(0, 2, 1, 3).reshape(B, S, H)
    y = ctx @ wo + bo + x
    mu = y.mean(-1, keepdims=True)
    var = ((y - mu) ** 2).mean(-1, keepdims=True)
    return (y - mu) / jnp.sqrt(var + eps) * gamma + beta


def _make_params(key, H):
    keys = jax.random.split(key, 8)
    scale = 0.02
    wq = scale * jax.random.normal(keys[0], (H, H), jnp.float32)
    wk = scale * jax.random.normal(keys[1], (H, H), jnp.float32)
    wv = scale * jax.random.normal(keys[2], (H, H), jnp.float32)
    wo = scale * jax.random.normal(keys[3], (H, H), jnp.float32)
    bq = scale * jax.random.normal(keys[4], (H,), jnp.float32)
    bk = scale * jax.random.normal(keys[5], (H,), jnp.float32)
    bv = scale * jax.random.normal(keys[6], (H,), jnp.float32)
    bo = scale * jax.random.normal(keys[7], (H,), jnp.float32)
    gamma = jnp.ones((H,), jnp.float32)
    beta = jnp.zeros((H,), jnp.float32)
    return wq, bq, wk, bk, wv, bv, wo, bo, gamma, beta


if __name__ == "__main__":
    key = jax.random.PRNGKey(0)
    kx, kp, kx2 = jax.random.split(key, 3)

    B, S, H = 2, 8, 96          # hidden_size must be a multiple of 12 heads
    raw = _make_params(kp, H)
    packed = pack_roberta_attention_params(*raw)   # pack ONCE (weight-load time)

    # ---- test 1: single query tile (nq = 1) ----
    x = jax.random.normal(kx, (B, S, H), jnp.float32)
    mask = jnp.zeros((B, S), jnp.float32)
    mask = mask.at[1, -2:].set(-1e9)   # mask last 2 key positions of batch 1

    out = roberta_attention(x, mask, packed)
    out = jax.block_until_ready(out)
    ref = _reference(x, mask, *raw)
    assert out.shape == (B, S, H)
    assert jnp.allclose(out, ref, atol=1e-3, rtol=1e-3), "mismatch vs reference (nq=1)"

    # ---- test 2: multi-tile query axis (exercises scratch carry + per-tile Q) ----
    S2 = 16
    x2 = jax.random.normal(kx2, (B, S2, H), jnp.float32)
    mask2 = jnp.zeros((B, S2), jnp.float32)
    mask2 = mask2.at[0, -3:].set(-1e9)
    out2 = roberta_attention(x2, mask2, packed, q_tile=8)   # grid = (2, 2)
    out2 = jax.block_until_ready(out2)
    ref2 = _reference(x2, mask2, *raw)
    assert jnp.allclose(out2, ref2, atol=1e-3, rtol=1e-3), "mismatch vs reference (nq=2)"

    print("KERNEL_OK")
</pallas_src>

<mosaic_0001>
module attributes {stable_mosaic.version = 11 : i64} {
  func.func @_roberta_attention_kernel(%arg0: i32, %arg1: i32, %arg2: memref<1x8x96xf32, #tpu.memory_space<vmem>>, %arg3: memref<1x1x8xf32, #tpu.memory_space<vmem>>, %arg4: memref<96x96xf32, #tpu.memory_space<vmem>>, %arg5: memref<1x96xf32, #tpu.memory_space<vmem>>, %arg6: memref<96x192xf32, #tpu.memory_space<vmem>>, %arg7: memref<1x192xf32, #tpu.memory_space<vmem>>, %arg8: memref<96x96xf32, #tpu.memory_space<vmem>>, %arg9: memref<1x96xf32, #tpu.memory_space<vmem>>, %arg10: memref<1x96xf32, #tpu.memory_space<vmem>>, %arg11: memref<1x96xf32, #tpu.memory_space<vmem>>, %arg12: memref<1x8x96xf32, #tpu.memory_space<vmem>>, %arg13: memref<12x8x8xf32, #tpu.memory_space<vmem>>, %arg14: memref<12x8x8xf32, #tpu.memory_space<vmem>>) attributes {dimension_semantics = [#tpu.dimension_semantics<parallel>, #tpu.dimension_semantics<arbitrary>], iteration_bounds = array<i64: 2, 1>, scalar_prefetch = 0 : i64, scratch_operands = 2 : i64, tpu.core_type = #tpu.core_type<tc>, window_params = [{transform_indices = @transform_0, window_bounds = array<i64: 1, 8, 96>}, {transform_indices = @transform_1, window_bounds = array<i64: 1, 1, 8>}, {pipeline_mode = #tpu.pipeline_mode<synchronous>, transform_indices = @transform_2, window_bounds = array<i64: 96, 96>}, {pipeline_mode = #tpu.pipeline_mode<synchronous>, transform_indices = @transform_3, window_bounds = array<i64: 1, 96>}, {pipeline_mode = #tpu.pipeline_mode<synchronous>, transform_indices = @transform_4, window_bounds = array<i64: 96, 192>}, {pipeline_mode = #tpu.pipeline_mode<synchronous>, transform_indices = @transform_5, window_bounds = array<i64: 1, 192>}, {pipeline_mode = #tpu.pipeline_mode<synchronous>, transform_indices = @transform_6, window_bounds = array<i64: 96, 96>}, {pipeline_mode = #tpu.pipeline_mode<synchronous>, transform_indices = @transform_7, window_bounds = array<i64: 1, 96>}, {pipeline_mode = #tpu.pipeline_mode<synchronous>, transform_indices = @transform_8, window_bounds = array<i64: 1, 96>}, {pipeline_mode = #tpu.pipeline_mode<synchronous>, transform_indices = @transform_9, window_bounds = array<i64: 1, 96>}, {transform_indices = @transform_10, window_bounds = array<i64: 1, 8, 96>}]} {
    %c0_i32 = arith.constant 0 : i32
    %0 = arith.cmpi eq, %arg1, %c0_i32 : i32
    %1 = arith.extui %0 : i1 to i32
    %c0_i32_0 = arith.constant 0 : i32
    %2 = arith.cmpi ne, %1, %c0_i32_0 : i32
    scf.if %2 {
      %c0_62 = arith.constant 0 : index
      %c0_63 = arith.constant 0 : index
      %c0_64 = arith.constant 0 : index
      %120 = vector.load %arg2[%c0_62, %c0_63, %c0_64] : memref<1x8x96xf32, #tpu.memory_space<vmem>>, vector<1x8x96xf32>
      %121 = vector.shape_cast %120 : vector<1x8x96xf32> to vector<8x96xf32>
      %c0_65 = arith.constant 0 : index
      %c0_66 = arith.constant 0 : index
      %122 = vector.load %arg6[%c0_65, %c0_66] : memref<96x192xf32, #tpu.memory_space<vmem>>, vector<96x192xf32>
      %cst_67 = arith.constant dense<0.000000e+00> : vector<8x192xf32>
      %123 = tpu.matmul %121, %122, %cst_67 {dimension_numbers = #tpu.dot_dimension_numbers<[1], [0], [0], [1], [0, 0, 1, 1], [], []>} : vector<8x96xf32>, vector<96x192xf32>, vector<8x192xf32> -> vector<8x192xf32>
      %c0_68 = arith.constant 0 : index
      %c0_69 = arith.constant 0 : index
      %124 = vector.load %arg7[%c0_68, %c0_69] : memref<1x192xf32, #tpu.memory_space<vmem>>, vector<1x192xf32>
      %125 = vector.broadcast %124 : vector<1x192xf32> to vector<8x192xf32>
      %126 = arith.addf %123, %125 : vector<8x192xf32>
      %127 = vector.extract_strided_slice %126 {offsets = [0, 0], sizes = [8, 96], strides = [1, 1]} : vector<8x192xf32> to vector<8x96xf32>
      %128 = vector.extract_strided_slice %126 {offsets = [0, 96], sizes = [8, 96], strides = [1, 1]} : vector<8x192xf32> to vector<8x96xf32>
      %129 = vector.shape_cast %127 : vector<8x96xf32> to vector<8x12x8xf32>
      %130 = tpu.transpose %129, [1, 0, 2] : vector<8x12x8xf32> -> vector<12x8x8xf32>
      %c0_70 = arith.constant 0 : index
      %c0_71 = arith.constant 0 : index
      %c0_72 = arith.constant 0 : index
      %131 = vector.load %arg13[%c0_70, %c0_71, %c0_72] : memref<12x8x8xf32, #tpu.memory_space<vmem>>, vector<12x8x8xf32>
      tpu.vector_store %arg13[%c0_70, %c0_71, %c0_72], %130 {strides = array<i32>} : memref<12x8x8xf32, #tpu.memory_space<vmem>>, vector<12x8x8xf32>,
      %132 = vector.shape_cast %128 : vector<8x96xf32> to vector<8x12x8xf32>
      %133 = tpu.transpose %132, [1, 0, 2] : vector<8x12x8xf32> -> vector<12x8x8xf32>
      %c0_73 = arith.constant 0 : index
      %c0_74 = arith.constant 0 : index
      %c0_75 = arith.constant 0 : index
      %134 = vector.load %arg14[%c0_73, %c0_74, %c0_75] : memref<12x8x8xf32, #tpu.memory_space<vmem>>, vector<12x8x8xf32>
      tpu.vector_store %arg14[%c0_73, %c0_74, %c0_75], %133 {strides = array<i32>} : memref<12x8x8xf32, #tpu.memory_space<vmem>>, vector<12x8x8xf32>,
    } else {
    }
    %c8_i32 = arith.constant 8 : i32
    %3 = arith.muli %arg1, %c8_i32 : i32
    %4 = tpu.assume_multiple %3, 8 : i32
    %c0 = arith.constant 0 : index
    %5 = arith.index_cast %4 : i32 to index
    %c0_1 = arith.constant 0 : index
    %6 = vector.load %arg2[%c0, %5, %c0_1] : memref<1x8x96xf32, #tpu.memory_space<vmem>>, vector<1x8x96xf32>
    %7 = vector.shape_cast %6 : vector<1x8x96xf32> to vector<8x96xf32>
    %c0_2 = arith.constant 0 : index
    %c0_3 = arith.constant 0 : index
    %8 = vector.load %arg4[%c0_2, %c0_3] : memref<96x96xf32, #tpu.memory_space<vmem>>, vector<96x96xf32>
    %cst = arith.constant dense<0.000000e+00> : vector<8x96xf32>
    %9 = tpu.matmul %7, %8, %cst {dimension_numbers = #tpu.dot_dimension_numbers<[1], [0], [0], [1], [0, 0, 1, 1], [], []>} : vector<8x96xf32>, vector<96x96xf32>, vector<8x96xf32> -> vector<8x96xf32>
    %c0_4 = arith.constant 0 : index
    %c0_5 = arith.constant 0 : index
    %10 = vector.load %arg5[%c0_4, %c0_5] : memref<1x96xf32, #tpu.memory_space<vmem>>, vector<1x96xf32>
    %11 = vector.broadcast %10 : vector<1x96xf32> to vector<8x96xf32>
    %12 = arith.addf %9, %11 : vector<8x96xf32>
    %13 = vector.shape_cast %12 : vector<8x96xf32> to vector<8x12x8xf32>
    %14 = tpu.transpose %13, [1, 0, 2] : vector<8x12x8xf32> -> vector<12x8x8xf32>
    %c0_6 = arith.constant 0 : index
    %c0_7 = arith.constant 0 : index
    %c0_8 = arith.constant 0 : index
    %15 = vector.load %arg3[%c0_6, %c0_7, %c0_8] : memref<1x1x8xf32, #tpu.memory_space<vmem>>, vector<1x1x8xf32>
    %c0_9 = arith.constant 0 : index
    %c0_10 = arith.constant 0 : index
    %16 = vector.load %arg9[%c0_9, %c0_10] : memref<1x96xf32, #tpu.memory_space<vmem>>, vector<1x96xf32>
    %17 = vector.broadcast %16 : vector<1x96xf32> to vector<8x96xf32>
    %18 = arith.addf %7, %17 : vector<8x96xf32>
    %19 = vector.extract_strided_slice %14 {offsets = [0, 0, 0], sizes = [4, 8, 8], strides = [1, 1, 1]} : vector<12x8x8xf32> to vector<4x8x8xf32>
    %c0_11 = arith.constant 0 : index
    %c0_12 = arith.constant 0 : index
    %c0_13 = arith.constant 0 : index
    %20 = vector.load %arg13[%c0_11, %c0_12, %c0_13] : memref<12x8x8xf32, #tpu.memory_space<vmem>>, vector<4x8x8xf32>
    %c0_14 = arith.constant 0 : index
    %c0_15 = arith.constant 0 : index
    %c0_16 = arith.constant 0 : index
    %21 = vector.load %arg14[%c0_14, %c0_15, %c0_16] : memref<12x8x8xf32, #tpu.memory_space<vmem>>, vector<4x8x8xf32>
    "tpu.trace_start"() <{level = 10 : i32, message = "hqd,hkd->hqk"}> : () -> ()
    %cst_17 = arith.constant dense<0.000000e+00> : vector<4x8x8xf32>
    %22 = tpu.matmul %19, %20, %cst_17 {dimension_numbers = #tpu.dot_dimension_numbers<[2], [2], [1], [1], [0, 0, 0, 1, 1, 1], [0], [0]>} : vector<4x8x8xf32>, vector<4x8x8xf32>, vector<4x8x8xf32> -> vector<4x8x8xf32>
    "tpu.trace_stop"() : () -> ()
    %cst_18 = arith.constant 0.353553385 : f32
    %23 = vector.broadcast %cst_18 : f32 to vector<4x8x8xf32>
    %24 = arith.mulf %22, %23 : vector<4x8x8xf32>
    %25 = vector.broadcast %15 : vector<1x1x8xf32> to vector<4x8x8xf32>
    %26 = arith.addf %24, %25 : vector<4x8x8xf32>
    %cst_19 = arith.constant dense<0xFF800000> : vector<4x8xf32>
    %27 = vector.multi_reduction <maximumf>, %26, %cst_19 [2] : vector<4x8x8xf32> to vector<4x8xf32>
    %28 = vector.shape_cast %27 : vector<4x8xf32> to vector<4x8x1xf32>
    %29 = vector.broadcast %28 : vector<4x8x1xf32> to vector<4x8x8xf32>
    %30 = arith.subf %26, %29 : vector<4x8x8xf32>
    %31 = math.exp %30 : vector<4x8x8xf32>
    %cst_20 = arith.constant dense<0.000000e+00> : vector<4x8xf32>
    %32 = vector.multi_reduction <add>, %31, %cst_20 [2] : vector<4x8x8xf32> to vector<4x8xf32>
    %33 = vector.shape_cast %32 : vector<4x8xf32> to vector<4x8x1xf32>
    %34 = tpu.reciprocal %33 {approx = true} : vector<4x8x1xf32> -> vector<4x8x1xf32>
    %35 = vector.broadcast %34 : vector<4x8x1xf32> to vector<4x8x8xf32>
    %36 = arith.mulf %31, %35 : vector<4x8x8xf32>
    "tpu.trace_start"() <{level = 10 : i32, message = "hqk,hkd->hqd"}> : () -> ()
    %cst_21 = arith.constant dense<0.000000e+00> : vector<4x8x8xf32>
    %37 = tpu.matmul %36, %21, %cst_21 {dimension_numbers = #tpu.dot_dimension_numbers<[2], [1], [1], [2], [0, 0, 0, 1, 1, 2], [0], [0]>} : vector<4x8x8xf32>, vector<4x8x8xf32>, vector<4x8x8xf32> -> vector<4x8x8xf32>
    "tpu.trace_stop"() : () -> ()
    %38 = tpu.transpose %37, [1, 0, 2] : vector<4x8x8xf32> -> vector<8x4x8xf32>
    %39 = vector.shape_cast %38 : vector<8x4x8xf32> to vector<8x32xf32>
    %c0_22 = arith.constant 0 : index
    %c0_23 = arith.constant 0 : index
    %40 = vector.load %arg8[%c0_22, %c0_23] : memref<96x96xf32, #tpu.memory_space<vmem>>, vector<32x96xf32>
    %cst_24 = arith.constant dense<0.000000e+00> : vector<8x96xf32>
    %41 = tpu.matmul %39, %40, %cst_24 {dimension_numbers = #tpu.dot_dimension_numbers<[1], [0], [0], [1], [0, 0, 1, 1], [], []>} : vector<8x32xf32>, vector<32x96xf32>, vector<8x96xf32> -> vector<8x96xf32>
    %42 = arith.addf %18, %41 : vector<8x96xf32>
    %43 = vector.extract_strided_slice %14 {offsets = [4, 0, 0], sizes = [4, 8, 8], strides = [1, 1, 1]} : vector<12x8x8xf32> to vector<4x8x8xf32>
    %c4 = arith.constant 4 : index
    %c0_25 = arith.constant 0 : index
    %c0_26 = arith.constant 0 : index
    %44 = vector.load %arg13[%c4, %c0_25, %c0_26] : memref<12x8x8xf32, #tpu.memory_space<vmem>>, vector<4x8x8xf32>
    %c4_27 = arith.constant 4 : index
    %c0_28 = arith.constant 0 : index
    %c0_29 = arith.constant 0 : index
    %45 = vector.load %arg14[%c4_27, %c0_28, %c0_29] : memref<12x8x8xf32, #tpu.memory_space<vmem>>, vector<4x8x8xf32>
    "tpu.trace_start"() <{level = 10 : i32, message = "hqd,hkd->hqk"}> : () -> ()
    %cst_30 = arith.constant dense<0.000000e+00> : vector<4x8x8xf32>
    %46 = tpu.matmul %43, %44, %cst_30 {dimension_numbers = #tpu.dot_dimension_numbers<[2], [2], [1], [1], [0, 0, 0, 1, 1, 1], [0], [0]>} : vector<4x8x8xf32>, vector<4x8x8xf32>, vector<4x8x8xf32> -> vector<4x8x8xf32>
    "tpu.trace_stop"() : () -> ()
    %cst_31 = arith.constant 0.353553385 : f32
    %47 = vector.broadcast %cst_31 : f32 to vector<4x8x8xf32>
    %48 = arith.mulf %46, %47 : vector<4x8x8xf32>
    %49 = vector.broadcast %15 : vector<1x1x8xf32> to vector<4x8x8xf32>
    %50 = arith.addf %48, %49 : vector<4x8x8xf32>
    %cst_32 = arith.constant dense<0xFF800000> : vector<4x8xf32>
    %51 = vector.multi_reduction <maximumf>, %50, %cst_32 [2] : vector<4x8x8xf32> to vector<4x8xf32>
    %52 = vector.shape_cast %51 : vector<4x8xf32> to vector<4x8x1xf32>
    %53 = vector.broadcast %52 : vector<4x8x1xf32> to vector<4x8x8xf32>
    %54 = arith.subf %50, %53 : vector<4x8x8xf32>
    %55 = math.exp %54 : vector<4x8x8xf32>
    %cst_33 = arith.constant dense<0.000000e+00> : vector<4x8xf32>
    %56 = vector.multi_reduction <add>, %55, %cst_33 [2] : vector<4x8x8xf32> to vector<4x8xf32>
    %57 = vector.shape_cast %56 : vector<4x8xf32> to vector<4x8x1xf32>
    %58 = tpu.reciprocal %57 {approx = true} : vector<4x8x1xf32> -> vector<4x8x1xf32>
    %59 = vector.broadcast %58 : vector<4x8x1xf32> to vector<4x8x8xf32>
    %60 = arith.mulf %55, %59 : vector<4x8x8xf32>
    "tpu.trace_start"() <{level = 10 : i32, message = "hqk,hkd->hqd"}> : () -> ()
    %cst_34 = arith.constant dense<0.000000e+00> : vector<4x8x8xf32>
    %61 = tpu.matmul %60, %45, %cst_34 {dimension_numbers = #tpu.dot_dimension_numbers<[2], [1], [1], [2], [0, 0, 0, 1, 1, 2], [0], [0]>} : vector<4x8x8xf32>, vector<4x8x8xf32>, vector<4x8x8xf32> -> vector<4x8x8xf32>
    "tpu.trace_stop"() : () -> ()
    %62 = tpu.transpose %61, [1, 0, 2] : vector<4x8x8xf32> -> vector<8x4x8xf32>
    %63 = vector.shape_cast %62 : vector<8x4x8xf32> to vector<8x32xf32>
    %c32 = arith.constant 32 : index
    %c0_35 = arith.constant 0 : index
    %64 = vector.load %arg8[%c32, %c0_35] : memref<96x96xf32, #tpu.memory_space<vmem>>, vector<32x96xf32>
    %cst_36 = arith.constant dense<0.000000e+00> : vector<8x96xf32>
    %65 = tpu.matmul %63, %64, %cst_36 {dimension_numbers = #tpu.dot_dimension_numbers<[1], [0], [0], [1], [0, 0, 1, 1], [], []>} : vector<8x32xf32>, vector<32x96xf32>, vector<8x96xf32> -> vector<8x96xf32>
    %66 = arith.addf %42, %65 : vector<8x96xf32>
    %67 = vector.extract_strided_slice %14 {offsets = [8, 0, 0], sizes = [4, 8, 8], strides = [1, 1, 1]} : vector<12x8x8xf32> to vector<4x8x8xf32>
    %c8 = arith.constant 8 : index
    %c0_37 = arith.constant 0 : index
    %c0_38 = arith.constant 0 : index
    %68 = vector.load %arg13[%c8, %c0_37, %c0_38] : memref<12x8x8xf32, #tpu.memory_space<vmem>>, vector<4x8x8xf32>
    %c8_39 = arith.constant 8 : index
    %c0_40 = arith.constant 0 : index
    %c0_41 = arith.constant 0 : index
    %69 = vector.load %arg14[%c8_39, %c0_40, %c0_41] : memref<12x8x8xf32, #tpu.memory_space<vmem>>, vector<4x8x8xf32>
    "tpu.trace_start"() <{level = 10 : i32, message = "hqd,hkd->hqk"}> : () -> ()
    %cst_42 = arith.constant dense<0.000000e+00> : vector<4x8x8xf32>
    %70 = tpu.matmul %67, %68, %cst_42 {dimension_numbers = #tpu.dot_dimension_numbers<[2], [2], [1], [1], [0, 0, 0, 1, 1, 1], [0], [0]>} : vector<4x8x8xf32>, vector<4x8x8xf32>, vector<4x8x8xf32> -> vector<4x8x8xf32>
    "tpu.trace_stop"() : () -> ()
    %cst_43 = arith.constant 0.353553385 : f32
    %71 = vector.broadcast %cst_43 : f32 to vector<4x8x8xf32>
    %72 = arith.mulf %70, %71 : vector<4x8x8xf32>
    %73 = vector.broadcast %15 : vector<1x1x8xf32> to vector<4x8x8xf32>
    %74 = arith.addf %72, %73 : vector<4x8x8xf32>
    %cst_44 = arith.constant dense<0xFF800000> : vector<4x8xf32>
    %75 = vector.multi_reduction <maximumf>, %74, %cst_44 [2] : vector<4x8x8xf32> to vector<4x8xf32>
    %76 = vector.shape_cast %75 : vector<4x8xf32> to vector<4x8x1xf32>
    %77 = vector.broadcast %76 : vector<4x8x1xf32> to vector<4x8x8xf32>
    %78 = arith.subf %74, %77 : vector<4x8x8xf32>
    %79 = math.exp %78 : vector<4x8x8xf32>
    %cst_45 = arith.constant dense<0.000000e+00> : vector<4x8xf32>
    %80 = vector.multi_reduction <add>, %79, %cst_45 [2] : vector<4x8x8xf32> to vector<4x8xf32>
    %81 = vector.shape_cast %80 : vector<4x8xf32> to vector<4x8x1xf32>
    %82 = tpu.reciprocal %81 {approx = true} : vector<4x8x1xf32> -> vector<4x8x1xf32>
    %83 = vector.broadcast %82 : vector<4x8x1xf32> to vector<4x8x8xf32>
    %84 = arith.mulf %79, %83 : vector<4x8x8xf32>
    "tpu.trace_start"() <{level = 10 : i32, message = "hqk,hkd->hqd"}> : () -> ()
    %cst_46 = arith.constant dense<0.000000e+00> : vector<4x8x8xf32>
    %85 = tpu.matmul %84, %69, %cst_46 {dimension_numbers = #tpu.dot_dimension_numbers<[2], [1], [1], [2], [0, 0, 0, 1, 1, 2], [0], [0]>} : vector<4x8x8xf32>, vector<4x8x8xf32>, vector<4x8x8xf32> -> vector<4x8x8xf32>
    "tpu.trace_stop"() : () -> ()
    %86 = tpu.transpose %85, [1, 0, 2] : vector<4x8x8xf32> -> vector<8x4x8xf32>
    %87 = vector.shape_cast %86 : vector<8x4x8xf32> to vector<8x32xf32>
    %c64 = arith.constant 64 : index
    %c0_47 = arith.constant 0 : index
    %88 = vector.load %arg8[%c64, %c0_47] : memref<96x96xf32, #tpu.memory_space<vmem>>, vector<32x96xf32>
    %cst_48 = arith.constant dense<0.000000e+00> : vector<8x96xf32>
    %89 = tpu.matmul %87, %88, %cst_48 {dimension_numbers = #tpu.dot_dimension_numbers<[1], [0], [0], [1], [0, 0, 1, 1], [], []>} : vector<8x32xf32>, vector<32x96xf32>, vector<8x96xf32> -> vector<8x96xf32>
    %90 = arith.addf %66, %89 : vector<8x96xf32>
    %cst_49 = arith.constant dense<0.000000e+00> : vector<8xf32>
    %91 = vector.multi_reduction <add>, %90, %cst_49 [1] : vector<8x96xf32> to vector<8xf32>
    %92 = vector.shape_cast %91 : vector<8xf32> to vector<8x1xf32>
    %cst_50 = arith.constant 9.600000e+01 : f32
    %93 = vector.broadcast %cst_50 : f32 to vector<8x1xf32>
    %94 = arith.divf %92, %93 : vector<8x1xf32>
    %95 = arith.mulf %90, %90 : vector<8x96xf32>
    %cst_51 = arith.constant dense<0.000000e+00> : vector<8xf32>
    %96 = vector.multi_reduction <add>, %95, %cst_51 [1] : vector<8x96xf32> to vector<8xf32>
    %97 = vector.shape_cast %96 : vector<8xf32> to vector<8x1xf32>
    %cst_52 = arith.constant 9.600000e+01 : f32
    %98 = vector.broadcast %cst_52 : f32 to vector<8x1xf32>
    %99 = arith.divf %97, %98 : vector<8x1xf32>
    %100 = arith.mulf %94, %94 : vector<8x1xf32>
    %101 = arith.subf %99, %100 : vector<8x1xf32>
    %cst_53 = arith.constant 0.000000e+00 : f32
    %102 = vector.broadcast %cst_53 : f32 to vector<8x1xf32>
    %103 = arith.maximumf %101, %102 : vector<8x1xf32>
    %104 = vector.broadcast %94 : vector<8x1xf32> to vector<8x96xf32>
    %105 = arith.subf %90, %104 : vector<8x96xf32>
    %cst_54 = arith.constant 9.99999996E-13 : f32
    %106 = vector.broadcast %cst_54 : f32 to vector<8x1xf32>
    %107 = arith.addf %103, %106 : vector<8x1xf32>
    %108 = math.rsqrt %107 : vector<8x1xf32>
    %109 = vector.broadcast %108 : vector<8x1xf32> to vector<8x96xf32>
    %110 = arith.mulf %105, %109 : vector<8x96xf32>
    %c0_55 = arith.constant 0 : index
    %c0_56 = arith.constant 0 : index
    %111 = vector.load %arg10[%c0_55, %c0_56] : memref<1x96xf32, #tpu.memory_space<vmem>>, vector<1x96xf32>
    %112 = vector.broadcast %111 : vector<1x96xf32> to vector<8x96xf32>
    %113 = arith.mulf %110, %112 : vector<8x96xf32>
    %c0_57 = arith.constant 0 : index
    %c0_58 = arith.constant 0 : index
    %114 = vector.load %arg11[%c0_57, %c0_58] : memref<1x96xf32, #tpu.memory_space<vmem>>, vector<1x96xf32>
    %115 = vector.broadcast %114 : vector<1x96xf32> to vector<8x96xf32>
    %116 = arith.addf %113, %115 : vector<8x96xf32>
    %c0_59 = arith.constant 0 : index
    %c0_60 = arith.constant 0 : index
    %c0_61 = arith.constant 0 : index
    %117 = vector.load %arg12[%c0_59, %c0_60, %c0_61] : memref<1x8x96xf32, #tpu.memory_space<vmem>>, vector<1x8x96xf32>
    %118 = vector.shape_cast %117 : vector<1x8x96xf32> to vector<8x96xf32>
    %119 = vector.shape_cast %116 : vector<8x96xf32> to vector<1x8x96xf32>
    tpu.vector_store %arg12[%c0_59, %c0_60, %c0_61], %119 {strides = array<i32>} : memref<1x8x96xf32, #tpu.memory_space<vmem>>, vector<1x8x96xf32>,
    return
  }
  func.func @transform_0(%arg0: i32, %arg1: i32) -> (i32, i32, i32) {
    %c0_i32 = arith.constant 0 : i32
    %c0_i32_0 = arith.constant 0 : i32
    %c0_i32_1 = arith.constant 0 : i32
    return %arg0, %c0_i32, %c0_i32_0 : i32, i32, i32
  }
  func.func @transform_1(%arg0: i32, %arg1: i32) -> (i32, i32, i32) {
    %c0_i32 = arith.constant 0 : i32
    %c0_i32_0 = arith.constant 0 : i32
    %c0_i32_1 = arith.constant 0 : i32
    return %arg0, %c0_i32, %c0_i32_0 : i32, i32, i32
  }
  func.func @transform_2(%arg0: i32, %arg1: i32) -> (i32, i32) {
    %c0_i32 = arith.constant 0 : i32
    %c0_i32_0 = arith.constant 0 : i32
    %c0_i32_1 = arith.constant 0 : i32
    return %c0_i32, %c0_i32_0 : i32, i32
  }
  func.func @transform_3(%arg0: i32, %arg1: i32) -> (i32, i32) {
    %c0_i32 = arith.constant 0 : i32
    %c0_i32_0 = arith.constant 0 : i32
    %c0_i32_1 = arith.constant 0 : i32
    return %c0_i32, %c0_i32_0 : i32, i32
  }
  func.func @transform_4(%arg0: i32, %arg1: i32) -> (i32, i32) {
    %c0_i32 = arith.constant 0 : i32
    %c0_i32_0 = arith.constant 0 : i32
    %c0_i32_1 = arith.constant 0 : i32
    return %c0_i32, %c0_i32_0 : i32, i32
  }
  func.func @transform_5(%arg0: i32, %arg1: i32) -> (i32, i32) {
    %c0_i32 = arith.constant 0 : i32
    %c0_i32_0 = arith.constant 0 : i32
    %c0_i32_1 = arith.constant 0 : i32
    return %c0_i32, %c0_i32_0 : i32, i32
  }
  func.func @transform_6(%arg0: i32, %arg1: i32) -> (i32, i32) {
    %c0_i32 = arith.constant 0 : i32
    %c0_i32_0 = arith.constant 0 : i32
    %c0_i32_1 = arith.constant 0 : i32
    return %c0_i32, %c0_i32_0 : i32, i32
  }
  func.func @transform_7(%arg0: i32, %arg1: i32) -> (i32, i32) {
    %c0_i32 = arith.constant 0 : i32
    %c0_i32_0 = arith.constant 0 : i32
    %c0_i32_1 = arith.constant 0 : i32
    return %c0_i32, %c0_i32_0 : i32, i32
  }
  func.func @transform_8(%arg0: i32, %arg1: i32) -> (i32, i32) {
    %c0_i32 = arith.constant 0 : i32
    %c0_i32_0 = arith.constant 0 : i32
    %c0_i32_1 = arith.constant 0 : i32
    return %c0_i32, %c0_i32_0 : i32, i32
  }
  func.func @transform_9(%arg0: i32, %arg1: i32) -> (i32, i32) {
    %c0_i32 = arith.constant 0 : i32
    %c0_i32_0 = arith.constant 0 : i32
    %c0_i32_1 = arith.constant 0 : i32
    return %c0_i32, %c0_i32_0 : i32, i32
  }
  func.func @transform_10(%arg0: i32, %arg1: i32) -> (i32, i32, i32) {
    %c0_i32 = arith.constant 0 : i32
    %c0_i32_0 = arith.constant 0 : i32
    return %arg0, %arg1, %c0_i32 : i32, i32, i32
  }
}

</mosaic_0001>

<llo_original>
// kernel: tpu_custom_call.1
$region0: #{tpu_custom_call.1}
  #allocation0 [shape = 'u32[]', space=smem, size = 0x4, offset = 0x4, fixed_abs, tag = 'smem constant byte address 0x4 - core index']
  #allocation1 [shape = 'u32[144,128]{1,0:T(1,128)}', space=vmem, size = 0x12000, scoped, tag = 'internal scratch']
  #allocation2 [shape = 'f32[12,8,8]{2,1,0:T(8,128)}', space=vmem, size = 0xc000, scoped, tag = 'scratch operand']
  #allocation3 [shape = 'f32[12,8,8]{2,1,0:T(8,128)}', space=vmem, size = 0xc000, scoped, tag = 'scratch operand']
  %s0 = inlined_call_operand.hbm [shape: f32[2,8,96], index: 0, kind: input, shape index: {}]
  %s1 = inlined_call_operand.hbm [shape: f32[2,1,8], index: 1, kind: input, shape index: {}]
  %s2 = inlined_call_operand.hbm [shape: f32[96,96], index: 2, kind: input, shape index: {}]
  %s3 = inlined_call_operand.vmem [shape: f32[1,96], index: 3, kind: input, shape index: {}]
  %s4 = inlined_call_operand.hbm [shape: f32[96,192], index: 4, kind: input, shape index: {}]
  %s5 = inlined_call_operand.vmem [shape: f32[1,192], index: 5, kind: input, shape index: {}]
  %s6 = inlined_call_operand.hbm [shape: f32[96,96], index: 6, kind: input, shape index: {}]
  %s7 = inlined_call_operand.vmem [shape: f32[1,96], index: 7, kind: input, shape index: {}]
  %s8 = inlined_call_operand.vmem [shape: f32[1,96], index: 8, kind: input, shape index: {}]
  %s9 = inlined_call_operand.vmem [shape: f32[1,96], index: 9, kind: input, shape index: {}]
  %s10 = inlined_call_operand.hbm [shape: f32[2,8,96], index: 10, kind: output, shape index: {}]
  %s11 = sld [smem:[#allocation0]]
  $region97: #{tpu_custom_call.1} parent=0
    _
  %s13 = ssub.s32 1, %s11
  %s14 = scalar_select 0, %s13, %s11
  $region1: #{tpu_custom_call.1} parent=0
    #allocation4 [shape = 'u8[8192]{0}', space=vmem, size = 0x2000, scoped, tag = 'input window, operand 0']
    #allocation5 [shape = 's32[2]{0}', space=sflag, size = 0x8, scoped, tag = 'scoped memory for tpu_custom_call.1']
    #allocation6 [shape = 's32[2]{0}', space=sflag, size = 0x8, scoped, tag = 'scoped memory for tpu_custom_call.1']
    #allocation7 [shape = 'u8[1024]{0}', space=vmem, size = 0x400, scoped, tag = 'input window, operand 1']
    #allocation8 [shape = 's32[2]{0}', space=sflag, size = 0x8, scoped, tag = 'scoped memory for tpu_custom_call.1']
    #allocation9 [shape = 'u8[49152]{0}', space=vmem, size = 0xc000, scoped, tag = 'input window, operand 2, single buffered']
    #allocation10 [shape = 'u8[98304]{0}', space=vmem, size = 0x18000, scoped, tag = 'input window, operand 4, single buffered']
    #allocation11 [shape = 's32[1]{0}', space=sflag, size = 0x4, scoped, tag = 'scoped memory for tpu_custom_call.1']
    #allocation12 [shape = 'u8[49152]{0}', space=vmem, size = 0xc000, scoped, tag = 'input window, operand 6, single buffered']
    #allocation13 [shape = 'u8[8192]{0}', space=vmem, size = 0x2000, scoped, tag = 'output window, operand 0']
    %15 = vsyncpa [#allocation5], 0
    %s16 = scalar_lea.sflag [#allocation5], 1
    %17 = vsyncpa %s16, 0
    %18 = vsyncpa [#allocation8], 0
    %s19 = scalar_lea.sflag [#allocation8], 1
    %20 = vsyncpa %s19, 0
    %21 = vsyncpa [#allocation11], 0
    %22 = vsyncpa [#allocation6], 0
    %s23 = scalar_lea.sflag [#allocation6], 1
    %24 = vsyncpa %s23, 0
    loop: start=0, step=1, limit=4
    $region2: #{tpu_custom_call.1} parent=1 // loop_pre_header
      _
    $region3: #{tpu_custom_call.1} parent=1 // loop_header
      %s26 = sphi 0, %s30
      %p27 = scmp.ge.s32.totalorder %s26, 4
      %s33 = sphi 0, %s45
      %s34 = sphi 0, %s41
      %s35 = sphi 0, %s33
      %s36 = sphi 0, %s34
      %s37 = sphi 0, %s35
      %s38 = sphi 0, %s36
      %s48 = sphi 0, %s50
      %s51 = sphi 0, %s48
      %s52 = sphi 0, %s51
      %s68 = sphi 0, %s52
      %s74 = sphi 0, %s76
      %s77 = sphi 0, %s74
      %s78 = sphi 0, %s77
      %s94 = sphi 0, %s78
      %s98 = sphi 0, %s98
      %s100 = sphi 0, %s98
      %s101 = sphi 0, %s100
      %s115 = sphi 0, %s101
      %s119 = sphi 0, %s119
      %s121 = sphi 0, %s119
      %s122 = sphi 0, %s121
      %s136 = sphi 0, %s122
      %s140 = sphi 0, %s140
      %s142 = sphi 0, %s140
      %s143 = sphi 0, %s142
      %s157 = sphi 0, %s143
      %s161 = sphi 0, %s161
      %s163 = sphi 0, %s161
      %s164 = sphi 0, %s163
      %s178 = sphi 0, %s164
      %s182 = sphi 0, %s182
      %s184 = sphi 0, %s182
      %s185 = sphi 0, %s184
      %s199 = sphi 0, %s185
      %s203 = sphi 0, %s203
      %s205 = sphi 0, %s203
      %s206 = sphi 0, %s205
      %s220 = sphi 0, %s206
      %s224 = sphi 0, %s224
      %s226 = sphi 0, %s224
      %s227 = sphi 0, %s226
      %s241 = sphi 0, %s227
      %s245 = sphi 0, %s245
      %s247 = sphi 0, %s245
      %s248 = sphi 0, %s247
      %s262 = sphi 0, %s248
      %s270 = sphi 0, %s272
      %s273 = sphi 0, %s270
      %s274 = sphi 0, %s273
      %s290 = sphi 0, %s274
    $region4: #{tpu_custom_call.1} parent=1 // loop_header_branch
      %29 = sbr.rel (%p27) target = $region8
    $region5: #{tpu_custom_call.1} parent=1 // loop_body
      %s31 = ssub.s32 %s26, 1
      %s32 = ssub.s32 %s26, 2
      %s39 = sadd.s32 1, %s34
      %p40 = scmp.ge.s32.totalorder %s39, 1
      %s41 = scalar_select %p40, 0, %s39
      %s42 = sadd.s32 1, %s33
      %s43 = scalar_select %p40, %s42, %s33
      %p44 = scmp.ge.s32.totalorder %s43, 2
      %s45 = scalar_select %p44, 0, %s43
      %s46 = ssub.s32 %s33, %s45
      %p47 = scmp.eq.s32.totalorder %s46, 0
      %s49 = sadd.s32 %s48, 1
      %s50 = scalar_select %p47, %s48, %s49
      %p53 = pneg %p47
      %p54 = scmp.eq.s32.totalorder %s26, 1
      %p55 = por %p53, %p54
      %p56 = scmp.ne.s32.totalorder %s48, %s51
      %p57 = scmp.eq.s32.totalorder %s26, 0
      %p58 = por %p56, %p57
      %p59 = scmp.ne.s32.totalorder %s48, %s51
      %p60 = scmp.eq.s32.totalorder %s31, 1
      %p61 = por %p59, %p60
      %p62 = scmp.ne.s32.totalorder %s51, %s52
      %p63 = scmp.eq.s32.totalorder %s31, 0
      %p64 = por %p62, %p63
      %p65 = scmp.ne.s32.totalorder %s51, %s52
      %p66 = scmp.eq.s32.totalorder %s32, 1
      %p67 = por %p65, %p66
      %p69 = scmp.ne.s32.totalorder %s52, %s68
      %p70 = scmp.eq.s32.totalorder %s32, 0
      %p71 = por %p69, %p70
      %s72 = ssub.s32 %s33, %s45
      %p73 = scmp.eq.s32.totalorder %s72, 0
      %s75 = sadd.s32 %s74, 1
      %s76 = scalar_select %p73, %s74, %s75
      %p79 = pneg %p73
      %p80 = scmp.eq.s32.totalorder %s26, 1
      %p81 = por %p79, %p80
      %p82 = scmp.ne.s32.totalorder %s74, %s77
      %p83 = scmp.eq.s32.totalorder %s26, 0
      %p84 = por %p82, %p83
      %p85 = scmp.ne.s32.totalorder %s74, %s77
      %p86 = scmp.eq.s32.totalorder %s31, 1
      %p87 = por %p85, %p86
      %p88 = scmp.ne.s32.totalorder %s77, %s78
      %p89 = scmp.eq.s32.totalorder %s31, 0
      %p90 = por %p88, %p89
      %p91 = scmp.ne.s32.totalorder %s77, %s78
      %p92 = scmp.eq.s32.totalorder %s32, 1
      %p93 = por %p91, %p92
      %p95 = scmp.ne.s32.totalorder %s78, %s94
      %p96 = scmp.eq.s32.totalorder %s32, 0
      %p97 = por %p95, %p96
      %s99 = sadd.s32 %s98, 1
      %p102 = scmp.eq.s32.totalorder %s26, 1
      %p103 = scmp.ne.s32.totalorder %s98, %s100
      %p104 = scmp.eq.s32.totalorder %s26, 0
      %p105 = por %p103, %p104
      %p106 = scmp.ne.s32.totalorder %s98, %s100
      %p107 = scmp.eq.s32.totalorder %s31, 1
      %p108 = por %p106, %p107
      %p109 = scmp.ne.s32.totalorder %s100, %s101
      %p110 = scmp.eq.s32.totalorder %s31, 0
      %p111 = por %p109, %p110
      %p112 = scmp.ne.s32.totalorder %s100, %s101
      %p113 = scmp.eq.s32.totalorder %s32, 1
      %p114 = por %p112, %p113
      %p116 = scmp.ne.s32.totalorder %s101, %s115
      %p117 = scmp.eq.s32.totalorder %s32, 0
      %p118 = por %p116, %p117
      %s120 = sadd.s32 %s119, 1
      %p123 = scmp.eq.s32.totalorder %s26, 1
      %p124 = scmp.ne.s32.totalorder %s119, %s121
      %p125 = scmp.eq.s32.totalorder %s26, 0
      %p126 = por %p124, %p125
      %p127 = scmp.ne.s32.totalorder %s119, %s121
      %p128 = scmp.eq.s32.totalorder %s31, 1
      %p129 = por %p127, %p128
      %p130 = scmp.ne.s32.totalorder %s121, %s122
      %p131 = scmp.eq.s32.totalorder %s31, 0
      %p132 = por %p130, %p131
      %p133 = scmp.ne.s32.totalorder %s121, %s122
      %p134 = scmp.eq.s32.totalorder %s32, 1
      %p135 = por %p133, %p134
      %p137 = scmp.ne.s32.totalorder %s122, %s136
      %p138 = scmp.eq.s32.totalorder %s32, 0
      %p139 = por %p137, %p138
      %s141 = sadd.s32 %s140, 1
      %p144 = scmp.eq.s32.totalorder %s26, 1
      %p145 = scmp.ne.s32.totalorder %s140, %s142
      %p146 = scmp.eq.s32.totalorder %s26, 0
      %p147 = por %p145, %p146
      %p148 = scmp.ne.s32.totalorder %s140, %s142
      %p149 = scmp.eq.s32.totalorder %s31, 1
      %p150 = por %p148, %p149
      %p151 = scmp.ne.s32.totalorder %s142, %s143
      %p152 = scmp.eq.s32.totalorder %s31, 0
      %p153 = por %p151, %p152
      %p154 = scmp.ne.s32.totalorder %s142, %s143
      %p155 = scmp.eq.s32.totalorder %s32, 1
      %p156 = por %p154, %p155
      %p158 = scmp.ne.s32.totalorder %s143, %s157
      %p159 = scmp.eq.s32.totalorder %s32, 0
      %p160 = por %p158, %p159
      %s162 = sadd.s32 %s161, 1
      %p165 = scmp.eq.s32.totalorder %s26, 1
      %p166 = scmp.ne.s32.totalorder %s161, %s163
      %p167 = scmp.eq.s32.totalorder %s26, 0
      %p168 = por %p166, %p167
      %p169 = scmp.ne.s32.totalorder %s161, %s163
      %p170 = scmp.eq.s32.totalorder %s31, 1
      %p171 = por %p169, %p170
      %p172 = scmp.ne.s32.totalorder %s163, %s164
      %p173 = scmp.eq.s32.totalorder %s31, 0
      %p174 = por %p172, %p173
      %p175 = scmp.ne.s32.totalorder %s163, %s164
      %p176 = scmp.eq.s32.totalorder %s32, 1
      %p177 = por %p175, %p176
      %p179 = scmp.ne.s32.totalorder %s164, %s178
      %p180 = scmp.eq.s32.totalorder %s32, 0
      %p181 = por %p179, %p180
      %s183 = sadd.s32 %s182, 1
      %p186 = scmp.eq.s32.totalorder %s26, 1
      %p187 = scmp.ne.s32.totalorder %s182, %s184
      %p188 = scmp.eq.s32.totalorder %s26, 0
      %p189 = por %p187, %p188
      %p190 = scmp.ne.s32.totalorder %s182, %s184
      %p191 = scmp.eq.s32.totalorder %s31, 1
      %p192 = por %p190, %p191
      %p193 = scmp.ne.s32.totalorder %s184, %s185
      %p194 = scmp.eq.s32.totalorder %s31, 0
      %p195 = por %p193, %p194
      %p196 = scmp.ne.s32.totalorder %s184, %s185
      %p197 = scmp.eq.s32.totalorder %s32, 1
      %p198 = por %p196, %p197
      %p200 = scmp.ne.s32.totalorder %s185, %s199
      %p201 = scmp.eq.s32.totalorder %s32, 0
      %p202 = por %p200, %p201
      %s204 = sadd.s32 %s203, 1
      %p207 = scmp.eq.s32.totalorder %s26, 1
      %p208 = scmp.ne.s32.totalorder %s203, %s205
      %p209 = scmp.eq.s32.totalorder %s26, 0
      %p210 = por %p208, %p209
      %p211 = scmp.ne.s32.totalorder %s203, %s205
      %p212 = scmp.eq.s32.totalorder %s31, 1
      %p213 = por %p211, %p212
      %p214 = scmp.ne.s32.totalorder %s205, %s206
      %p215 = scmp.eq.s32.totalorder %s31, 0
      %p216 = por %p214, %p215
      %p217 = scmp.ne.s32.totalorder %s205, %s206
      %p218 = scmp.eq.s32.totalorder %s32, 1
      %p219 = por %p217, %p218
      %p221 = scmp.ne.s32.totalorder %s206, %s220
      %p222 = scmp.eq.s32.totalorder %s32, 0
      %p223 = por %p221, %p222
      %s225 = sadd.s32 %s224, 1
      %p228 = scmp.eq.s32.totalorder %s26, 1
      %p229 = scmp.ne.s32.totalorder %s224, %s226
      %p230 = scmp.eq.s32.totalorder %s26, 0
      %p231 = por %p229, %p230
      %p232 = scmp.ne.s32.totalorder %s224, %s226
      %p233 = scmp.eq.s32.totalorder %s31, 1
      %p234 = por %p232, %p233
      %p235 = scmp.ne.s32.totalorder %s226, %s227
      %p236 = scmp.eq.s32.totalorder %s31, 0
      %p237 = por %p235, %p236
      %p238 = scmp.ne.s32.totalorder %s226, %s227
      %p239 = scmp.eq.s32.totalorder %s32, 1
      %p240 = por %p238, %p239
      %p242 = scmp.ne.s32.totalorder %s227, %s241
      %p243 = scmp.eq.s32.totalorder %s32, 0
      %p244 = por %p242, %p243
      %s246 = sadd.s32 %s245, 1
      %p249 = scmp.eq.s32.totalorder %s26, 1
      %p250 = scmp.ne.s32.totalorder %s245, %s247
      %p251 = scmp.eq.s32.totalorder %s26, 0
      %p252 = por %p250, %p251
      %p253 = scmp.ne.s32.totalorder %s245, %s247
      %p254 = scmp.eq.s32.totalorder %s31, 1
      %p255 = por %p253, %p254
      %p256 = scmp.ne.s32.totalorder %s247, %s248
      %p257 = scmp.eq.s32.totalorder %s31, 0
      %p258 = por %p256, %p257
      %p259 = scmp.ne.s32.totalorder %s247, %s248
      %p260 = scmp.eq.s32.totalorder %s32, 1
      %p261 = por %p259, %p260
      %p263 = scmp.ne.s32.totalorder %s248, %s262
      %p264 = scmp.eq.s32.totalorder %s32, 0
      %p265 = por %p263, %p264
      %s266 = ssub.s32 %s33, %s45
      %s267 = ssub.s32 %s34, %s41
      %s268 = sor.u32 %s266, %s267
      %p269 = scmp.eq.s32.totalorder %s268, 0
      %s271 = sadd.s32 %s270, 1
      %s272 = scalar_select %p269, %s270, %s271
      %p275 = pneg %p269
      %p276 = scmp.eq.s32.totalorder %s26, 1
      %p277 = por %p275, %p276
      %p278 = scmp.ne.s32.totalorder %s270, %s273
      %p279 = scmp.eq.s32.totalorder %s26, 0
      %p280 = por %p278, %p279
      %p281 = scmp.ne.s32.totalorder %s270, %s273
      %p282 = scmp.eq.s32.totalorder %s31, 1
      %p283 = por %p281, %p282
      %p284 = scmp.ne.s32.totalorder %s273, %s274
      %p285 = scmp.eq.s32.totalorder %s31, 0
      %p286 = por %p284, %p285
      %p287 = scmp.ne.s32.totalorder %s273, %s274
      %p288 = scmp.eq.s32.totalorder %s32, 1
      %p289 = por %p287, %p288
      %p291 = scmp.ne.s32.totalorder %s274, %s290
      %p292 = scmp.eq.s32.totalorder %s32, 0
      %p293 = por %p291, %p292
      %p294 = scmp.le.s32.totalorder 1, %s26
      %p295 = scmp.lt.s32.totalorder %s26, 3
      %p296 = pnand %p294, %p295
      %p297 = pneg %p296
      // Predicated region
      $region9: #{tpu_custom_call.1} parent=5 // pred_check
        _
      $region10: #{tpu_custom_call.1} parent=5 // pred_check_branch
        %299 = sbr.rel (%p296) target = $region12
      $region11: #{tpu_custom_call.1} parent=5 // pred_region
        %s300 = ssub.s32 %s26, 1
        // Predicated region
        $region13: #{tpu_custom_call.1} parent=11 // pred_check
          %p301 = pneg %p111
        $region14: #{tpu_custom_call.1} parent=11 // pred_check_branch
          %303 = sbr.rel (%p301) target = $region16
        $region15: #{tpu_custom_call.1} parent=11 // pred_region
          %s305 = ssub.s32 1536, 1536
          %306 = vsyncadd [#allocation8], %s305
          %s307 = sshll.u32 [#allocation9], 4
          %s308 = int_to_ptr.vmem [resolvable:$true] %s307
          %313 = dma.hbm_to_vmem [thread:$0]  %s2, 1536, %s308, [#allocation8], 128, 128, 8
        $region16: #{tpu_custom_call.1} parent=11 // pred_fallthru
          _
        // Predicated region
        $region17: #{tpu_custom_call.1} parent=11 // pred_check
          %p314 = pneg %p132
        $region18: #{tpu_custom_call.1} parent=11 // pred_check_branch
          %316 = sbr.rel (%p314) target = $region20
        $region19: #{tpu_custom_call.1} parent=11 // pred_region
          _
        $region20: #{tpu_custom_call.1} parent=11 // pred_fallthru
          _
        // Predicated region
        $region21: #{tpu_custom_call.1} parent=11 // pred_check
          %p317 = pneg %p153
        $region22: #{tpu_custom_call.1} parent=11 // pred_check_branch
          %319 = sbr.rel (%p317) target = $region24
        $region23: #{tpu_custom_call.1} parent=11 // pred_region
          %s321 = ssub.s32 3072, 3072
          %322 = vsyncadd [#allocation11], %s321
          %s323 = sshll.u32 [#allocation10], 4
          %s324 = int_to_ptr.vmem [resolvable:$true] %s323
          %329 = dma.hbm_to_vmem [thread:$0]  %s4, 3072, %s324, [#allocation11], 256, 256, 16
        $region24: #{tpu_custom_call.1} parent=11 // pred_fallthru
          _
        // Predicated region
        $region25: #{tpu_custom_call.1} parent=11 // pred_check
          %p330 = pneg %p174
        $region26: #{tpu_custom_call.1} parent=11 // pred_check_branch
          %332 = sbr.rel (%p330) target = $region28
        $region27: #{tpu_custom_call.1} parent=11 // pred_region
          _
        $region28: #{tpu_custom_call.1} parent=11 // pred_fallthru
          _
        // Predicated region
        $region29: #{tpu_custom_call.1} parent=11 // pred_check
          %p333 = pneg %p195
        $region30: #{tpu_custom_call.1} parent=11 // pred_check_branch
          %335 = sbr.rel (%p333) target = $region32
        $region31: #{tpu_custom_call.1} parent=11 // pred_region
          %s337 = ssub.s32 1536, 1536
          %338 = vsyncadd [#allocation11], %s337
          %s339 = sshll.u32 [#allocation12], 4
          %s340 = int_to_ptr.vmem [resolvable:$true] %s339
          %345 = dma.hbm_to_vmem [thread:$0]  %s6, 1536, %s340, [#allocation11], 128, 128, 8
        $region32: #{tpu_custom_call.1} parent=11 // pred_fallthru
          _
        // Predicated region
        $region33: #{tpu_custom_call.1} parent=11 // pred_check
          %p346 = pneg %p216
        $region34: #{tpu_custom_call.1} parent=11 // pred_check_branch
          %348 = sbr.rel (%p346) target = $region36
        $region35: #{tpu_custom_call.1} parent=11 // pred_region
          _
        $region36: #{tpu_custom_call.1} parent=11 // pred_fallthru
          _
        // Predicated region
        $region37: #{tpu_custom_call.1} parent=11 // pred_check
          %p349 = pneg %p237
        $region38: #{tpu_custom_call.1} parent=11 // pred_check_branch
          %351 = sbr.rel (%p349) target = $region40
        $region39: #{tpu_custom_call.1} parent=11 // pred_region
          _
        $region40: #{tpu_custom_call.1} parent=11 // pred_fallthru
          _
        // Predicated region
        $region41: #{tpu_custom_call.1} parent=11 // pred_check
          %p352 = pneg %p258
        $region42: #{tpu_custom_call.1} parent=11 // pred_check_branch
          %354 = sbr.rel (%p352) target = $region44
        $region43: #{tpu_custom_call.1} parent=11 // pred_region
          _
        $region44: #{tpu_custom_call.1} parent=11 // pred_fallthru
          _
      $region12: #{tpu_custom_call.1} parent=5 // pred_fallthru
        _
      %p355 = scmp.lt.s32.totalorder %s26, 2
      // Predicated region
      $region45: #{tpu_custom_call.1} parent=5 // pred_check
        %p356 = pneg %p355
      $region46: #{tpu_custom_call.1} parent=5 // pred_check_branch
        %358 = sbr.rel (%p356) target = $region48
      $region47: #{tpu_custom_call.1} parent=5 // pred_region
        // Predicated region
        $region49: #{tpu_custom_call.1} parent=47 // pred_check
          %p359 = pneg %p58
        $region50: #{tpu_custom_call.1} parent=47 // pred_check_branch
          %361 = sbr.rel (%p359) target = $region52
        $region51: #{tpu_custom_call.1} parent=47 // pred_region
          %s362 = sand.u32 %s48, 1
          %s363 = scalar_lea.sflag [#allocation5], %s362
          %s364 = sand.u32 %s48, 1
          %s365 = smul.addr %s364, 8
          %s366 = scalar_lea.vmem [#allocation4], %s365
          %s368 = ssub.s32 128, 128
          %369 = vsyncadd %s363, %s368
          %s370 = smul.addr %s33, 128
          %s371 = scalar_lea.hbm %s0, %s370
          %s373 = sshll.u32 %s366, 4
          %s374 = int_to_ptr.vmem [resolvable:$true] %s373
          %376 = dma.hbm_to_vmem [thread:$0]  %s371, 128, %s374, %s363
        $region52: #{tpu_custom_call.1} parent=47 // pred_fallthru
          _
        // Predicated region
        $region53: #{tpu_custom_call.1} parent=47 // pred_check
          %p377 = pneg %p84
        $region54: #{tpu_custom_call.1} parent=47 // pred_check_branch
          %379 = sbr.rel (%p377) target = $region56
        $region55: #{tpu_custom_call.1} parent=47 // pred_region
          %s380 = sand.u32 %s26, 1
          %s381 = scalar_lea.sflag [#allocation8], %s380
          %s382 = sand.u32 %s74, 1
          %s383 = scalar_lea.vmem [#allocation7], %s382
          %s385 = ssub.s32 16, 16
          %386 = vsyncadd %s381, %s385
          %s387 = smul.addr %s33, 16
          %s388 = scalar_lea.hbm %s1, %s387
          %s390 = sshll.u32 %s383, 4
          %s391 = int_to_ptr.vmem [resolvable:$true] %s390
          %393 = dma.hbm_to_vmem [thread:$0]  %s388, 16, %s391, %s381
        $region56: #{tpu_custom_call.1} parent=47 // pred_fallthru
          _
      $region48: #{tpu_custom_call.1} parent=5 // pred_fallthru
        _
      %p394 = scmp.le.s32.totalorder 1, %s26
      %p395 = scmp.lt.s32.totalorder %s26, 3
      %p396 = pnand %p394, %p395
      %p397 = pneg %p396
      // Predicated region
      $region57: #{tpu_custom_call.1} parent=5 // pred_check
        _
      $region58: #{tpu_custom_call.1} parent=5 // pred_check_branch
        %399 = sbr.rel (%p396) target = $region60
      $region59: #{tpu_custom_call.1} parent=5 // pred_region
        %s400 = ssub.s32 %s26, 1
        %s401 = sand.u32 %s51, 1
        %s402 = scalar_lea.sflag [#allocation5], %s401
        %s403 = sand.u32 %s51, 1
        %s404 = smul.addr %s403, 8
        %s405 = scalar_lea.vmem [#allocation4], %s404
        // Predicated region
        $region61: #{tpu_custom_call.1} parent=59 // pred_check
          %p406 = pneg %p64
        $region62: #{tpu_custom_call.1} parent=59 // pred_check_branch
          %408 = sbr.rel (%p406) target = $region64
        $region63: #{tpu_custom_call.1} parent=59 // pred_region
          %409 = dma.done %s402, 128
        $region64: #{tpu_custom_call.1} parent=59 // pred_fallthru
          _
        %s410 = sand.u32 %s31, 1
        %s411 = scalar_lea.sflag [#allocation8], %s410
        %s412 = sand.u32 %s77, 1
        %s413 = scalar_lea.vmem [#allocation7], %s412
        // Predicated region
        $region65: #{tpu_custom_call.1} parent=59 // pred_check
          %p414 = pneg %p90
        $region66: #{tpu_custom_call.1} parent=59 // pred_check_branch
          %416 = sbr.rel (%p414) target = $region68
        $region67: #{tpu_custom_call.1} parent=59 // pred_region
          %417 = dma.done %s411, 16
        $region68: #{tpu_custom_call.1} parent=59 // pred_fallthru
          _
        // Predicated region
        $region69: #{tpu_custom_call.1} parent=59 // pred_check
          %p418 = pneg %p111
        $region70: #{tpu_custom_call.1} parent=59 // pred_check_branch
          %420 = sbr.rel (%p418) target = $region72
        $region71: #{tpu_custom_call.1} parent=59 // pred_region
          %421 = dma.done [#allocation8], 1536
        $region72: #{tpu_custom_call.1} parent=59 // pred_fallthru
          _
        // Predicated region
        $region73: #{tpu_custom_call.1} parent=59 // pred_check
          %p422 = pneg %p153
        $region74: #{tpu_custom_call.1} parent=59 // pred_check_branch
          %424 = sbr.rel (%p422) target = $region76
        $region75: #{tpu_custom_call.1} parent=59 // pred_region
          %425 = dma.done [#allocation11], 3072
        $region76: #{tpu_custom_call.1} parent=59 // pred_fallthru
          _
        // Predicated region
        $region77: #{tpu_custom_call.1} parent=59 // pred_check
          %p426 = pneg %p195
        $region78: #{tpu_custom_call.1} parent=59 // pred_check_branch
          %428 = sbr.rel (%p426) target = $region80
        $region79: #{tpu_custom_call.1} parent=59 // pred_region
          %429 = dma.done [#allocation11], 1536
        $region80: #{tpu_custom_call.1} parent=59 // pred_fallthru
          _
        %s430 = sand.u32 %s51, 1
        %s431 = scalar_lea.sflag [#allocation5], %s430
        %s432 = sand.u32 %s51, 1
        %s433 = smul.addr %s432, 8
        %s434 = scalar_lea.vmem [#allocation4], %s433
        %p435 = pneg %p64
        %p436 = pneg %p61
        %s437 = sand.u32 %s31, 1
        %s438 = scalar_lea.sflag [#allocation8], %s437
        %s439 = sand.u32 %s77, 1
        %s440 = scalar_lea.vmem [#allocation7], %s439
        %p441 = pneg %p90
        %p442 = pneg %p87
        %p443 = pneg %p111
        %p444 = pneg %p108
        %p445 = pneg %p132
        %p446 = pneg %p129
        %p447 = pneg %p153
        %p448 = pneg %p150
        %p449 = pneg %p174
        %p450 = pneg %p171
        %p451 = pneg %p195
        %p452 = pneg %p192
        %p453 = pneg %p216
        %p454 = pneg %p213
        %p455 = pneg %p237
        %p456 = pneg %p234
        %p457 = pneg %p258
        %p458 = pneg %p255
        %p459 = pneg %p286
        %p460 = pneg %p283
        %s461 = sand.u32 %s273, 1
        %s462 = scalar_lea.sflag [#allocation6], %s461
        %s463 = sand.u32 %s273, 1
        %s464 = smul.addr %s463, 8
        %s465 = scalar_lea.vmem [#allocation13], %s464
        %p466 = scmp.eq.s32.totalorder %s36, 0
        // Predicated region
        $region81: #{tpu_custom_call.1} parent=59 // pred_check
          %p467 = pneg %p466
        $region82: #{tpu_custom_call.1} parent=59 // pred_check_branch
          %469 = sbr.rel (%p467) target = $region84
        $region83: #{tpu_custom_call.1} parent=59 // pred_region
          %v470 = vld [vmem:[%s405] sm:$0xff]
          %v471 = vld [vmem:[#allocation10] sm:$0xff]
          %v472 = vld [vmem:[#allocation10 + $0x8] sm:$0xff]
          %v473 = vld [vmem:[#allocation10 + $0x10] sm:$0xff]
          %v474 = vld [vmem:[#allocation10 + $0x18] sm:$0xff]
          %v475 = vld [vmem:[#allocation10 + $0x20] sm:$0xff]
          %v476 = vld [vmem:[#allocation10 + $0x28] sm:$0xff]
          %v477 = vld [vmem:[#allocation10 + $0x30] sm:$0xff]
          %v478 = vld [vmem:[#allocation10 + $0x38] sm:$0xff]
          %v479 = vld [vmem:[#allocation10 + $0x40] sm:$0xff]
          %v480 = vld [vmem:[#allocation10 + $0x48] sm:$0xff]
          %v481 = vld [vmem:[#allocation10 + $0x50] sm:$0xff]
          %v482 = vld [vmem:[#allocation10 + $0x58] sm:$0xff]
          %v483 = vld [vmem:[#allocation10 + $0x60] sm:$0xff]
          %v484 = vld [vmem:[#allocation10 + $0x68] sm:$0xff]
          %v485 = vld [vmem:[#allocation10 + $0x70] sm:$0xff]
          %v486 = vld [vmem:[#allocation10 + $0x78] sm:$0xff]
          %v487 = vld [vmem:[#allocation10 + $0x80] sm:$0xff]
          %v488 = vld [vmem:[#allocation10 + $0x88] sm:$0xff]
          %v489 = vld [vmem:[#allocation10 + $0x90] sm:$0xff]
          %v490 = vld [vmem:[#allocation10 + $0x98] sm:$0xff]
          %v491 = vld [vmem:[#allocation10 + $0xa0] sm:$0xff]
          %v492 = vld [vmem:[#allocation10 + $0xa8] sm:$0xff]
          %v493 = vld [vmem:[#allocation10 + $0xb0] sm:$0xff]
          %v494 = vld [vmem:[#allocation10 + $0xb8] sm:$0xff]
          %v495 = vld [vmem:[%s5] sm:$0x3]
          %v497 = vlaneseq
          %v498 = vshrl.u32 %v497, 7
          %v499 = vsub.s32 0, %v498
          %v500 = vrot.slane %v495, %v499
          %v501 = vlaneseq
          %v502 = vshrl.u32 %v501, 7
          %v503 = vsub.s32 1, %v502
          %v504 = vrot.slane %v495, %v503
          %vm507 = vcmask 785408
          %v509 = vsel %vm507, %v470, 0
          %511 = vmatprep.subr.mxu0 0.0
          %512 = vmatpush1.msra.mxu0 0.0
          %513 = vmatprep.subr.mxu0 0.0
          %514 = vmatpush1.msra.mxu0 0.0
          %515 = vmatprep.subr.mxu0 0.0
          %516 = vmatpush1.msra.mxu0 0.0
          %517 = vmatprep.subr.mxu0 0.0
          %518 = vmatpush1.msra.mxu0 0.0
          %519 = vmatprep.subr.mxu0 %v494
          %520 = vmatpush1.msra.mxu0 %v493
          %521 = vmatprep.subr.mxu0 %v492
          %522 = vmatpush1.msra.mxu0 %v491
          %523 = vmatprep.subr.mxu0 %v490
          %524 = vmatpush1.msra.mxu0 %v489
          %525 = vmatprep.subr.mxu0 %v488
          %526 = vmatpush1.msra.mxu0 %v487
          %527 = vmatprep.subr.mxu0 %v486
          %528 = vmatpush1.msra.mxu0 %v485
          %529 = vmatprep.subr.mxu0 %v484
          %530 = vmatpush1.msra.mxu0 %v483
          %531 = vmatprep.subr.mxu0 %v482
          %532 = vmatpush1.msra.mxu0 %v481
          %533 = vmatprep.subr.mxu0 %v480
          %534 = vmatpush1.msra.mxu0 %v479
          %535 = vmatprep.subr.mxu0 %v478
          %536 = vmatpush1.msra.mxu0 %v477
          %537 = vmatprep.subr.mxu0 %v476
          %538 = vmatpush1.msra.mxu0 %v475
          %539 = vmatprep.subr.mxu0 %v474
          %540 = vmatpush1.msra.mxu0 %v473
          %541 = vmatprep.subr.mxu0 %v472
          %542 = vmatpush1.msra.mxu0 %v471
          %543 = vmatprep.subr.mxu0 0.0
          %544 = vmatpush2.msra.mxu0 0.0
          %545 = vmatprep.subr.mxu0 0.0
          %546 = vmatpush2.msra.mxu0 0.0
          %547 = vmatprep.subr.mxu0 0.0
          %548 = vmatpush2.msra.mxu0 0.0
          %549 = vmatprep.subr.mxu0 0.0
          %550 = vmatpush2.msra.mxu0 0.0
          %551 = vmatprep.subr.mxu0 0.0
          %552 = vmatpush2.msra.mxu0 0.0
          %553 = vmatprep.subr.mxu0 0.0
          %554 = vmatpush2.msra.mxu0 0.0
          %555 = vmatprep.subr.mxu0 0.0
          %556 = vmatpush2.msra.mxu0 0.0
          %557 = vmatprep.subr.mxu0 0.0
          %558 = vmatpush2.msra.mxu0 0.0
          %559 = vmatprep.subr.mxu0 0.0
          %560 = vmatpush2.msra.mxu0 0.0
          %561 = vmatprep.subr.mxu0 0.0
          %562 = vmatpush2.msra.mxu0 0.0
          %563 = vmatprep.subr.mxu0 0.0
          %564 = vmatpush2.msra.mxu0 0.0
          %565 = vmatprep.subr.mxu0 0.0
          %566 = vmatpush2.msra.mxu0 0.0
          %567 = vmatprep.subr.mxu0 0.0
          %568 = vmatpush2.msra.mxu0 0.0
          %569 = vmatprep.subr.mxu0 0.0
          %570 = vmatpush2.msra.mxu0 0.0
          %571 = vmatprep.subr.mxu0 0.0
          %572 = vmatpush2.msra.mxu0 0.0
          %573 = vmatprep.subr.mxu0 0.0
          %574 = vmatpush2.msra.mxu0 0.0
          %575 = vmatprep.mubr.f32.mxu0 0.0
          %576 = vmatmul.mubr.f32.gmra.mxu0 %v509
          %v577 = vpop.f32.mrf.mxu0
          %v578 = vadd.f32 %v500, %v577
          %v579 = vpop.f32.mrf.mxu0
          %v580 = vadd.f32 %v504, %v579
          %581 = vdwg.mxu0
          %583 = vrot.lane.b32.xlu0 %v578, 120
          %v584 = vpop.permute.xlu0 %583
          %586 = vrot.lane.b32.xlu0 %v578, 112
          %v587 = vpop.permute.xlu0 %586
          %589 = vrot.lane.b32.xlu0 %v578, 104
          %v590 = vpop.permute.xlu0 %589
          %592 = vrot.lane.b32.xlu0 %v578, 96
          %v593 = vpop.permute.xlu0 %592
          %595 = vrot.lane.b32.xlu0 %v578, 88
          %v596 = vpop.permute.xlu0 %595
          %598 = vrot.lane.b32.xlu0 %v578, 80
          %v599 = vpop.permute.xlu0 %598
          %601 = vrot.lane.b32.xlu0 %v578, 72
          %v602 = vpop.permute.xlu0 %601
          %604 = vrot.lane.b32.xlu0 %v578, 64
          %v605 = vpop.permute.xlu0 %604
          %607 = vrot.lane.b32.xlu0 %v578, 56
          %v608 = vpop.permute.xlu0 %607
          %610 = vrot.lane.b32.xlu0 %v578, 48
          %v611 = vpop.permute.xlu0 %610
          %613 = vrot.lane.b32.xlu0 %v578, 40
          %v614 = vpop.permute.xlu0 %613
          %v616 = vcombine.low %v578, %v587
          %v617 = vcombine.high %v578, %v587
          %v619 = vunpack.c.l.s4 1983009808
          %v620 = vunpack.c.0.s8 %v619
          %v621 = vlaneseq
          %v622 = vshrl.u32 %v621, 7
          %v623 = vsub.s32 %v620, %v622
          %v624 = vrot.slane %v616, %v623
          %v626 = vunpack.c.l.s4 1983009808
          %v627 = vunpack.c.0.s8 %v626
          %v628 = vlaneseq
          %v629 = vshrl.u32 %v628, 7
          %v630 = vsub.s32 %v627, %v629
          %v631 = vrot.slane %v617, %v630
          %v632 = vcombine.low %v584, %v590
          %v633 = vcombine.high %v584, %v590
          %v635 = vunpack.c.l.s4 1983009808
          %v636 = vunpack.c.0.s8 %v635
          %v637 = vlaneseq
          %v638 = vshrl.u32 %v637, 7
          %v639 = vsub.s32 %v636, %v638
          %v640 = vrot.slane %v632, %v639
          %v642 = vunpack.c.l.s4 1983009808
          %v643 = vunpack.c.0.s8 %v642
          %v644 = vlaneseq
          %v645 = vshrl.u32 %v644, 7
          %v646 = vsub.s32 %v643, %v645
          %v647 = vrot.slane %v633, %v646
          %v648 = vcombine.low %v593, %v599
          %v649 = vcombine.high %v593, %v599
          %v651 = vunpack.c.l.s4 1983009808
          %v652 = vunpack.c.0.s8 %v651
          %v653 = vlaneseq
          %v654 = vshrl.u32 %v653, 7
          %v655 = vsub.s32 %v652, %v654
          %v656 = vrot.slane %v648, %v655
          %v658 = vunpack.c.l.s4 1983009808
          %v659 = vunpack.c.0.s8 %v658
          %v660 = vlaneseq
          %v661 = vshrl.u32 %v660, 7
          %v662 = vsub.s32 %v659, %v661
          %v663 = vrot.slane %v649, %v662
          %v664 = vcombine.low %v596, %v602
          %v665 = vcombine.high %v596, %v602
          %v667 = vunpack.c.l.s4 1983009808
          %v668 = vunpack.c.0.s8 %v667
          %v669 = vlaneseq
          %v670 = vshrl.u32 %v669, 7
          %v671 = vsub.s32 %v668, %v670
          %v672 = vrot.slane %v664, %v671
          %v674 = vunpack.c.l.s4 1983009808
          %v675 = vunpack.c.0.s8 %v674
          %v676 = vlaneseq
          %v677 = vshrl.u32 %v676, 7
          %v678 = vsub.s32 %v675, %v677
          %v679 = vrot.slane %v665, %v678
          %v680 = vcombine.low %v624, %v640
          %v681 = vcombine.high %v624, %v640
          %v683 = vunpack.c.l.s4 1934713408
          %v684 = vunpack.c.0.s8 %v683
          %v685 = vlaneseq
          %v686 = vshrl.u32 %v685, 7
          %v687 = vsub.s32 %v684, %v686
          %v688 = vrot.slane %v680, %v687
          %v690 = vunpack.c.l.s4 1934713408
          %v691 = vunpack.c.0.s8 %v690
          %v692 = vlaneseq
          %v693 = vshrl.u32 %v692, 7
          %v694 = vsub.s32 %v691, %v693
          %v695 = vrot.slane %v681, %v694
          %v696 = vcombine.low %v631, %v647
          %v697 = vcombine.high %v631, %v647
          %v699 = vunpack.c.l.s4 1934713408
          %v700 = vunpack.c.0.s8 %v699
          %v701 = vlaneseq
          %v702 = vshrl.u32 %v701, 7
          %v703 = vsub.s32 %v700, %v702
          %v704 = vrot.slane %v696, %v703
          %v706 = vunpack.c.l.s4 1934713408
          %v707 = vunpack.c.0.s8 %v706
          %v708 = vlaneseq
          %v709 = vshrl.u32 %v708, 7
          %v710 = vsub.s32 %v707, %v709
          %v711 = vrot.slane %v697, %v710
          %v712 = vcombine.low %v656, %v672
          %v713 = vcombine.high %v656, %v672
          %v715 = vunpack.c.l.s4 1934713408
          %v716 = vunpack.c.0.s8 %v715
          %v717 = vlaneseq
          %v718 = vshrl.u32 %v717, 7
          %v719 = vsub.s32 %v716, %v718
          %v720 = vrot.slane %v712, %v719
          %v722 = vunpack.c.l.s4 1934713408
          %v723 = vunpack.c.0.s8 %v722
          %v724 = vlaneseq
          %v725 = vshrl.u32 %v724, 7
          %v726 = vsub.s32 %v723, %v725
          %v727 = vrot.slane %v713, %v726
          %v728 = vcombine.low %v663, %v679
          %v729 = vcombine.high %v663, %v679
          %v731 = vunpack.c.l.s4 1934713408
          %v732 = vunpack.c.0.s8 %v731
          %v733 = vlaneseq
          %v734 = vshrl.u32 %v733, 7
          %v735 = vsub.s32 %v732, %v734
          %v736 = vrot.slane %v728, %v735
          %v738 = vunpack.c.l.s4 1934713408
          %v739 = vunpack.c.0.s8 %v738
          %v740 = vlaneseq
          %v741 = vshrl.u32 %v740, 7
          %v742 = vsub.s32 %v739, %v741
          %v743 = vrot.slane %v729, %v742
          %v744 = vcombine.low %v688, %v720
          %v745 = vcombine.high %v688, %v720
          %v746 = vcombine.low %v695, %v727
          %v747 = vcombine.high %v695, %v727
          %v748 = vcombine.low %v704, %v736
          %v749 = vcombine.high %v704, %v736
          %v750 = vcombine.low %v711, %v743
          %v751 = vcombine.high %v711, %v743
          %v752 = vcombine.low %v605, %v611
          %v753 = vcombine.high %v605, %v611
          %v755 = vunpack.c.l.s4 1983009808
          %v756 = vunpack.c.0.s8 %v755
          %v757 = vlaneseq
          %v758 = vshrl.u32 %v757, 7
          %v759 = vsub.s32 %v756, %v758
          %v760 = vrot.slane %v752, %v759
          %v762 = vunpack.c.l.s4 1983009808
          %v763 = vunpack.c.0.s8 %v762
          %v764 = vlaneseq
          %v765 = vshrl.u32 %v764, 7
          %v766 = vsub.s32 %v763, %v765
          %v767 = vrot.slane %v753, %v766
          %v768 = vcombine.low %v608, %v614
          %v769 = vcombine.high %v608, %v614
          %v771 = vunpack.c.l.s4 1983009808
          %v772 = vunpack.c.0.s8 %v771
          %v773 = vlaneseq
          %v774 = vshrl.u32 %v773, 7
          %v775 = vsub.s32 %v772, %v774
          %v776 = vrot.slane %v768, %v775
          %v778 = vunpack.c.l.s4 1983009808
          %v779 = vunpack.c.0.s8 %v778
          %v780 = vlaneseq
          %v781 = vshrl.u32 %v780, 7
          %v782 = vsub.s32 %v779, %v781
          %v783 = vrot.slane %v769, %v782
          %v784 = vcombine.low %v760, %v776
          %v785 = vcombine.high %v760, %v776
          %v787 = vunpack.c.l.s4 1934713408
          %v788 = vunpack.c.0.s8 %v787
          %v789 = vlaneseq
          %v790 = vshrl.u32 %v789, 7
          %v791 = vsub.s32 %v788, %v790
          %v792 = vrot.slane %v784, %v791
          %v794 = vunpack.c.l.s4 1934713408
          %v795 = vunpack.c.0.s8 %v794
          %v796 = vlaneseq
          %v797 = vshrl.u32 %v796, 7
          %v798 = vsub.s32 %v795, %v797
          %v799 = vrot.slane %v785, %v798
          %v800 = vcombine.low %v767, %v783
          %v801 = vcombine.high %v767, %v783
          %v803 = vunpack.c.l.s4 1934713408
          %v804 = vunpack.c.0.s8 %v803
          %v805 = vlaneseq
          %v806 = vshrl.u32 %v805, 7
          %v807 = vsub.s32 %v804, %v806
          %v808 = vrot.slane %v800, %v807
          %v810 = vunpack.c.l.s4 1934713408
          %v811 = vunpack.c.0.s8 %v810
          %v812 = vlaneseq
          %v813 = vshrl.u32 %v812, 7
          %v814 = vsub.s32 %v811, %v813
          %v815 = vrot.slane %v801, %v814
          %v816 = vcombine.high %v792, 0.0
          %v817 = vcombine.high %v799, 0.0
          %v818 = vcombine.high %v808, 0.0
          %v819 = vcombine.high %v815, 0.0
          %v820 = vcombine.low %v744, %v746
          %v821 = vcombine.high %v744, %v746
          %v823 = vunpack.c.l.s4 1983009808
          %v824 = vunpack.c.0.s8 %v823
          %v825 = vlaneseq
          %v826 = vshrl.u32 %v825, 7
          %v827 = vsub.s32 %v824, %v826
          %v828 = vrot.slane %v820, %v827
          %v830 = vunpack.c.l.s4 1983009808
          %v831 = vunpack.c.0.s8 %v830
          %v832 = vlaneseq
          %v833 = vshrl.u32 %v832, 7
          %v834 = vsub.s32 %v831, %v833
          %v835 = vrot.slane %v821, %v834
          %v836 = vcombine.low %v745, %v747
          %v837 = vcombine.high %v745, %v747
          %v839 = vunpack.c.l.s4 1983009808
          %v840 = vunpack.c.0.s8 %v839
          %v841 = vlaneseq
          %v842 = vshrl.u32 %v841, 7
          %v843 = vsub.s32 %v840, %v842
          %v844 = vrot.slane %v836, %v843
          %v846 = vunpack.c.l.s4 1983009808
          %v847 = vunpack.c.0.s8 %v846
          %v848 = vlaneseq
          %v849 = vshrl.u32 %v848, 7
          %v850 = vsub.s32 %v847, %v849
          %v851 = vrot.slane %v837, %v850
          %v852 = vcombine.low %v748, %v750
          %v853 = vcombine.high %v748, %v750
          %v855 = vunpack.c.l.s4 1983009808
          %v856 = vunpack.c.0.s8 %v855
          %v857 = vlaneseq
          %v858 = vshrl.u32 %v857, 7
          %v859 = vsub.s32 %v856, %v858
          %v860 = vrot.slane %v852, %v859
          %v862 = vunpack.c.l.s4 1983009808
          %v863 = vunpack.c.0.s8 %v862
          %v864 = vlaneseq
          %v865 = vshrl.u32 %v864, 7
          %v866 = vsub.s32 %v863, %v865
          %v867 = vrot.slane %v853, %v866
          %v868 = vcombine.low %v749, %v751
          %v869 = vcombine.high %v749, %v751
          %v871 = vunpack.c.l.s4 1983009808
          %v872 = vunpack.c.0.s8 %v871
          %v873 = vlaneseq
          %v874 = vshrl.u32 %v873, 7
          %v875 = vsub.s32 %v872, %v874
          %v876 = vrot.slane %v868, %v875
          %v878 = vunpack.c.l.s4 1983009808
          %v879 = vunpack.c.0.s8 %v878
          %v880 = vlaneseq
          %v881 = vshrl.u32 %v880, 7
          %v882 = vsub.s32 %v879, %v881
          %v883 = vrot.slane %v869, %v882
          %v884 = vcombine.low %v828, %v844
          %v885 = vcombine.high %v828, %v844
          %v887 = vunpack.c.l.s4 1934713408
          %v888 = vunpack.c.0.s8 %v887
          %v889 = vlaneseq
          %v890 = vshrl.u32 %v889, 7
          %v891 = vsub.s32 %v888, %v890
          %v892 = vrot.slane %v884, %v891
          %v894 = vunpack.c.l.s4 1934713408
          %v895 = vunpack.c.0.s8 %v894
          %v896 = vlaneseq
          %v897 = vshrl.u32 %v896, 7
          %v898 = vsub.s32 %v895, %v897
          %v899 = vrot.slane %v885, %v898
          %v900 = vcombine.low %v835, %v851
          %v901 = vcombine.high %v835, %v851
          %v903 = vunpack.c.l.s4 1934713408
          %v904 = vunpack.c.0.s8 %v903
          %v905 = vlaneseq
          %v906 = vshrl.u32 %v905, 7
          %v907 = vsub.s32 %v904, %v906
          %v908 = vrot.slane %v900, %v907
          %v910 = vunpack.c.l.s4 1934713408
          %v911 = vunpack.c.0.s8 %v910
          %v912 = vlaneseq
          %v913 = vshrl.u32 %v912, 7
          %v914 = vsub.s32 %v911, %v913
          %v915 = vrot.slane %v901, %v914
          %v916 = vcombine.low %v860, %v876
          %v917 = vcombine.high %v860, %v876
          %v919 = vunpack.c.l.s4 1934713408
          %v920 = vunpack.c.0.s8 %v919
          %v921 = vlaneseq
          %v922 = vshrl.u32 %v921, 7
          %v923 = vsub.s32 %v920, %v922
          %v924 = vrot.slane %v916, %v923
          %v926 = vunpack.c.l.s4 1934713408
          %v927 = vunpack.c.0.s8 %v926
          %v928 = vlaneseq
          %v929 = vshrl.u32 %v928, 7
          %v930 = vsub.s32 %v927, %v929
          %v931 = vrot.slane %v917, %v930
          %v932 = vcombine.low %v867, %v883
          %v933 = vcombine.high %v867, %v883
          %v935 = vunpack.c.l.s4 1934713408
          %v936 = vunpack.c.0.s8 %v935
          %v937 = vlaneseq
          %v938 = vshrl.u32 %v937, 7
          %v939 = vsub.s32 %v936, %v938
          %v940 = vrot.slane %v932, %v939
          %v942 = vunpack.c.l.s4 1934713408
          %v943 = vunpack.c.0.s8 %v942
          %v944 = vlaneseq
          %v945 = vshrl.u32 %v944, 7
          %v946 = vsub.s32 %v943, %v945
          %v947 = vrot.slane %v933, %v946
          %v948 = vcombine.low %v892, %v924
          %v949 = vcombine.high %v892, %v924
          %v950 = vcombine.low %v899, %v931
          %v951 = vcombine.high %v899, %v931
          %v952 = vcombine.low %v908, %v940
          %v953 = vcombine.high %v908, %v940
          %v954 = vcombine.low %v915, %v947
          %v955 = vcombine.high %v915, %v947
          %v956 = vcombine.low %v792, %v799
          %v958 = vunpack.c.l.s4 1983009808
          %v959 = vunpack.c.0.s8 %v958
          %v960 = vlaneseq
          %v961 = vshrl.u32 %v960, 7
          %v962 = vsub.s32 %v959, %v961
          %v963 = vrot.slane %v956, %v962
          %v964 = vcombine.low %v816, %v817
          %v966 = vunpack.c.l.s4 1983009808
          %v967 = vunpack.c.0.s8 %v966
          %v968 = vlaneseq
          %v969 = vshrl.u32 %v968, 7
          %v970 = vsub.s32 %v967, %v969
          %v971 = vrot.slane %v964, %v970
          %v972 = vcombine.low %v808, %v815
          %v974 = vunpack.c.l.s4 1983009808
          %v975 = vunpack.c.0.s8 %v974
          %v976 = vlaneseq
          %v977 = vshrl.u32 %v976, 7
          %v978 = vsub.s32 %v975, %v977
          %v979 = vrot.slane %v972, %v978
          %v980 = vcombine.low %v818, %v819
          %v982 = vunpack.c.l.s4 1983009808
          %v983 = vunpack.c.0.s8 %v982
          %v984 = vlaneseq
          %v985 = vshrl.u32 %v984, 7
          %v986 = vsub.s32 %v983, %v985
          %v987 = vrot.slane %v980, %v986
          %v988 = vcombine.low %v963, %v971
          %v989 = vcombine.high %v963, %v971
          %v991 = vunpack.c.l.s4 1934713408
          %v992 = vunpack.c.0.s8 %v991
          %v993 = vlaneseq
          %v994 = vshrl.u32 %v993, 7
          %v995 = vsub.s32 %v992, %v994
          %v996 = vrot.slane %v988, %v995
          %v998 = vunpack.c.l.s4 1934713408
          %v999 = vunpack.c.0.s8 %v998
          %v1000 = vlaneseq
          %v1001 = vshrl.u32 %v1000, 7
          %v1002 = vsub.s32 %v999, %v1001
          %v1003 = vrot.slane %v989, %v1002
          %v1004 = vcombine.low %v979, %v987
          %v1005 = vcombine.high %v979, %v987
          %v1007 = vunpack.c.l.s4 1934713408
          %v1008 = vunpack.c.0.s8 %v1007
          %v1009 = vlaneseq
          %v1010 = vshrl.u32 %v1009, 7
          %v1011 = vsub.s32 %v1008, %v1010
          %v1012 = vrot.slane %v1004, %v1011
          %v1014 = vunpack.c.l.s4 1934713408
          %v1015 = vunpack.c.0.s8 %v1014
          %v1016 = vlaneseq
          %v1017 = vshrl.u32 %v1016, 7
          %v1018 = vsub.s32 %v1015, %v1017
          %v1019 = vrot.slane %v1005, %v1018
          %v1020 = vcombine.low %v996, %v1012
          %v1021 = vcombine.high %v996, %v1012
          %v1022 = vcombine.low %v1003, %v1019
          %v1023 = vcombine.high %v1003, %v1019
          %vm1024 = vcmask 64512
          %1025 = vst.msk [vmem:[#allocation2] sm:$0xff] %vm1024, %v948
          %1026 = vst.msk [vmem:[#allocation2 + $0x8] sm:$0xff] %vm1024, %v949
          %1027 = vst.msk [vmem:[#allocation2 + $0x10] sm:$0xff] %vm1024, %v950
          %1028 = vst.msk [vmem:[#allocation2 + $0x18] sm:$0xff] %vm1024, %v951
          %1029 = vst.msk [vmem:[#allocation2 + $0x20] sm:$0xff] %vm1024, %v952
          %1030 = vst.msk [vmem:[#allocation2 + $0x28] sm:$0xff] %vm1024, %v953
          %1031 = vst.msk [vmem:[#allocation2 + $0x30] sm:$0xff] %vm1024, %v954
          %1032 = vst.msk [vmem:[#allocation2 + $0x38] sm:$0xff] %vm1024, %v955
          %1033 = vst.msk [vmem:[#allocation2 + $0x40] sm:$0xff] %vm1024, %v1020
          %1034 = vst.msk [vmem:[#allocation2 + $0x48] sm:$0xff] %vm1024, %v1021
          %1035 = vst.msk [vmem:[#allocation2 + $0x50] sm:$0xff] %vm1024, %v1022
          %1036 = vst.msk [vmem:[#allocation2 + $0x58] sm:$0xff] %vm1024, %v1023
          %1038 = vrot.lane.b32.xlu0 %v580, 96
          %v1039 = vpop.permute.xlu0 %1038
          %1040 = vrot.lane.b32.xlu0 %v580, 88
          %v1041 = vpop.permute.xlu0 %1040
          %1042 = vrot.lane.b32.xlu0 %v580, 80
          %v1043 = vpop.permute.xlu0 %1042
          %1044 = vrot.lane.b32.xlu0 %v580, 72
          %v1045 = vpop.permute.xlu0 %1044
          %1046 = vrot.lane.b32.xlu0 %v580, 64
          %v1047 = vpop.permute.xlu0 %1046
          %1048 = vrot.lane.b32.xlu0 %v580, 56
          %v1049 = vpop.permute.xlu0 %1048
          %1050 = vrot.lane.b32.xlu0 %v580, 48
          %v1051 = vpop.permute.xlu0 %1050
          %1052 = vrot.lane.b32.xlu0 %v580, 40
          %v1053 = vpop.permute.xlu0 %1052
          %1054 = vrot.lane.b32.xlu0 %v578, 32
          %v1055 = vpop.permute.xlu0 %1054
          %1056 = vrot.lane.b32.xlu0 %v584, 32
          %v1057 = vpop.permute.xlu0 %1056
          %1058 = vrot.lane.b32.xlu0 %v587, 32
          %v1059 = vpop.permute.xlu0 %1058
          %1060 = vrot.lane.b32.xlu0 %v590, 32
          %v1061 = vpop.permute.xlu0 %1060
          %1062 = vrot.lane.b32.xlu0 %v1039, 32
          %v1063 = vpop.permute.xlu0 %1062
          %1064 = vrot.lane.b32.xlu0 %v1041, 32
          %v1065 = vpop.permute.xlu0 %1064
          %1066 = vrot.lane.b32.xlu0 %v1043, 32
          %v1067 = vpop.permute.xlu0 %1066
          %1068 = vrot.lane.b32.xlu0 %v1045, 32
          %v1069 = vpop.permute.xlu0 %1068
          %1070 = vrot.lane.b32.xlu0 %v1047, 32
          %v1071 = vpop.permute.xlu0 %1070
          %1072 = vrot.lane.b32.xlu0 %v1049, 32
          %v1073 = vpop.permute.xlu0 %1072
          %1074 = vrot.lane.b32.xlu0 %v1051, 32
          %v1075 = vpop.permute.xlu0 %1074
          %1076 = vrot.lane.b32.xlu0 %v1053, 32
          %v1077 = vpop.permute.xlu0 %1076
          %v1090 = vcombine.low %v1055, %v1059
          %v1091 = vcombine.high %v1055, %v1059
          %v1093 = vunpack.c.l.s4 1983009808
          %v1094 = vunpack.c.0.s8 %v1093
          %v1095 = vlaneseq
          %v1096 = vshrl.u32 %v1095, 7
          %v1097 = vsub.s32 %v1094, %v1096
          %v1098 = vrot.slane %v1090, %v1097
          %v1100 = vunpack.c.l.s4 1983009808
          %v1101 = vunpack.c.0.s8 %v1100
          %v1102 = vlaneseq
          %v1103 = vshrl.u32 %v1102, 7
          %v1104 = vsub.s32 %v1101, %v1103
          %v1105 = vrot.slane %v1091, %v1104
          %v1106 = vcombine.low %v1057, %v1061
          %v1107 = vcombine.high %v1057, %v1061
          %v1109 = vunpack.c.l.s4 1983009808
          %v1110 = vunpack.c.0.s8 %v1109
          %v1111 = vlaneseq
          %v1112 = vshrl.u32 %v1111, 7
          %v1113 = vsub.s32 %v1110, %v1112
          %v1114 = vrot.slane %v1106, %v1113
          %v1116 = vunpack.c.l.s4 1983009808
          %v1117 = vunpack.c.0.s8 %v1116
          %v1118 = vlaneseq
          %v1119 = vshrl.u32 %v1118, 7
          %v1120 = vsub.s32 %v1117, %v1119
          %v1121 = vrot.slane %v1107, %v1120
          %v1122 = vcombine.low %v1063, %v1067
          %v1123 = vcombine.high %v1063, %v1067
          %v1125 = vunpack.c.l.s4 1983009808
          %v1126 = vunpack.c.0.s8 %v1125
          %v1127 = vlaneseq
          %v1128 = vshrl.u32 %v1127, 7
          %v1129 = vsub.s32 %v1126, %v1128
          %v1130 = vrot.slane %v1122, %v1129
          %v1132 = vunpack.c.l.s4 1983009808
          %v1133 = vunpack.c.0.s8 %v1132
          %v1134 = vlaneseq
          %v1135 = vshrl.u32 %v1134, 7
          %v1136 = vsub.s32 %v1133, %v1135
          %v1137 = vrot.slane %v1123, %v1136
          %v1138 = vcombine.low %v1065, %v1069
          %v1139 = vcombine.high %v1065, %v1069
          %v1141 = vunpack.c.l.s4 1983009808
          %v1142 = vunpack.c.0.s8 %v1141
          %v1143 = vlaneseq
          %v1144 = vshrl.u32 %v1143, 7
          %v1145 = vsub.s32 %v1142, %v1144
          %v1146 = vrot.slane %v1138, %v1145
          %v1148 = vunpack.c.l.s4 1983009808
          %v1149 = vunpack.c.0.s8 %v1148
          %v1150 = vlaneseq
          %v1151 = vshrl.u32 %v1150, 7
          %v1152 = vsub.s32 %v1149, %v1151
          %v1153 = vrot.slane %v1139, %v1152
          %v1154 = vcombine.low %v1098, %v1114
          %v1155 = vcombine.high %v1098, %v1114
          %v1157 = vunpack.c.l.s4 1934713408
          %v1158 = vunpack.c.0.s8 %v1157
          %v1159 = vlaneseq
          %v1160 = vshrl.u32 %v1159, 7
          %v1161 = vsub.s32 %v1158, %v1160
          %v1162 = vrot.slane %v1154, %v1161
          %v1164 = vunpack.c.l.s4 1934713408
          %v1165 = vunpack.c.0.s8 %v1164
          %v1166 = vlaneseq
          %v1167 = vshrl.u32 %v1166, 7
          %v1168 = vsub.s32 %v1165, %v1167
          %v1169 = vrot.slane %v1155, %v1168
          %v1170 = vcombine.low %v1105, %v1121
          %v1171 = vcombine.high %v1105, %v1121
          %v1173 = vunpack.c.l.s4 1934713408
          %v1174 = vunpack.c.0.s8 %v1173
          %v1175 = vlaneseq
          %v1176 = vshrl.u32 %v1175, 7
          %v1177 = vsub.s32 %v1174, %v1176
          %v1178 = vrot.slane %v1170, %v1177
          %v1180 = vunpack.c.l.s4 1934713408
          %v1181 = vunpack.c.0.s8 %v1180
          %v1182 = vlaneseq
          %v1183 = vshrl.u32 %v1182, 7
          %v1184 = vsub.s32 %v1181, %v1183
          %v1185 = vrot.slane %v1171, %v1184
          %v1186 = vcombine.low %v1130, %v1146
          %v1187 = vcombine.high %v1130, %v1146
          %v1189 = vunpack.c.l.s4 1934713408
          %v1190 = vunpack.c.0.s8 %v1189
          %v1191 = vlaneseq
          %v1192 = vshrl.u32 %v1191, 7
          %v1193 = vsub.s32 %v1190, %v1192
          %v1194 = vrot.slane %v1186, %v1193
          %v1196 = vunpack.c.l.s4 1934713408
          %v1197 = vunpack.c.0.s8 %v1196
          %v1198 = vlaneseq
          %v1199 = vshrl.u32 %v1198, 7
          %v1200 = vsub.s32 %v1197, %v1199
          %v1201 = vrot.slane %v1187, %v1200
          %v1202 = vcombine.low %v1137, %v1153
          %v1203 = vcombine.high %v1137, %v1153
          %v1205 = vunpack.c.l.s4 1934713408
          %v1206 = vunpack.c.0.s8 %v1205
          %v1207 = vlaneseq
          %v1208 = vshrl.u32 %v1207, 7
          %v1209 = vsub.s32 %v1206, %v1208
          %v1210 = vrot.slane %v1202, %v1209
          %v1212 = vunpack.c.l.s4 1934713408
          %v1213 = vunpack.c.0.s8 %v1212
          %v1214 = vlaneseq
          %v1215 = vshrl.u32 %v1214, 7
          %v1216 = vsub.s32 %v1213, %v1215
          %v1217 = vrot.slane %v1203, %v1216
          %v1218 = vcombine.low %v1162, %v1194
          %v1219 = vcombine.high %v1162, %v1194
          %v1220 = vcombine.low %v1169, %v1201
          %v1221 = vcombine.high %v1169, %v1201
          %v1222 = vcombine.low %v1178, %v1210
          %v1223 = vcombine.high %v1178, %v1210
          %v1224 = vcombine.low %v1185, %v1217
          %v1225 = vcombine.high %v1185, %v1217
          %v1226 = vcombine.low %v1071, %v1075
          %v1227 = vcombine.high %v1071, %v1075
          %v1229 = vunpack.c.l.s4 1983009808
          %v1230 = vunpack.c.0.s8 %v1229
          %v1231 = vlaneseq
          %v1232 = vshrl.u32 %v1231, 7
          %v1233 = vsub.s32 %v1230, %v1232
          %v1234 = vrot.slane %v1226, %v1233
          %v1236 = vunpack.c.l.s4 1983009808
          %v1237 = vunpack.c.0.s8 %v1236
          %v1238 = vlaneseq
          %v1239 = vshrl.u32 %v1238, 7
          %v1240 = vsub.s32 %v1237, %v1239
          %v1241 = vrot.slane %v1227, %v1240
          %v1242 = vcombine.low %v1073, %v1077
          %v1243 = vcombine.high %v1073, %v1077
          %v1245 = vunpack.c.l.s4 1983009808
          %v1246 = vunpack.c.0.s8 %v1245
          %v1247 = vlaneseq
          %v1248 = vshrl.u32 %v1247, 7
          %v1249 = vsub.s32 %v1246, %v1248
          %v1250 = vrot.slane %v1242, %v1249
          %v1252 = vunpack.c.l.s4 1983009808
          %v1253 = vunpack.c.0.s8 %v1252
          %v1254 = vlaneseq
          %v1255 = vshrl.u32 %v1254, 7
          %v1256 = vsub.s32 %v1253, %v1255
          %v1257 = vrot.slane %v1243, %v1256
          %v1258 = vcombine.low %v1234, %v1250
          %v1259 = vcombine.high %v1234, %v1250
          %v1261 = vunpack.c.l.s4 1934713408
          %v1262 = vunpack.c.0.s8 %v1261
          %v1263 = vlaneseq
          %v1264 = vshrl.u32 %v1263, 7
          %v1265 = vsub.s32 %v1262, %v1264
          %v1266 = vrot.slane %v1258, %v1265
          %v1268 = vunpack.c.l.s4 1934713408
          %v1269 = vunpack.c.0.s8 %v1268
          %v1270 = vlaneseq
          %v1271 = vshrl.u32 %v1270, 7
          %v1272 = vsub.s32 %v1269, %v1271
          %v1273 = vrot.slane %v1259, %v1272
          %v1274 = vcombine.low %v1241, %v1257
          %v1275 = vcombine.high %v1241, %v1257
          %v1277 = vunpack.c.l.s4 1934713408
          %v1278 = vunpack.c.0.s8 %v1277
          %v1279 = vlaneseq
          %v1280 = vshrl.u32 %v1279, 7
          %v1281 = vsub.s32 %v1278, %v1280
          %v1282 = vrot.slane %v1274, %v1281
          %v1284 = vunpack.c.l.s4 1934713408
          %v1285 = vunpack.c.0.s8 %v1284
          %v1286 = vlaneseq
          %v1287 = vshrl.u32 %v1286, 7
          %v1288 = vsub.s32 %v1285, %v1287
          %v1289 = vrot.slane %v1275, %v1288
          %v1290 = vcombine.high %v1266, 0.0
          %v1291 = vcombine.high %v1273, 0.0
          %v1292 = vcombine.high %v1282, 0.0
          %v1293 = vcombine.high %v1289, 0.0
          %v1294 = vcombine.low %v1218, %v1220
          %v1295 = vcombine.high %v1218, %v1220
          %v1297 = vunpack.c.l.s4 1983009808
          %v1298 = vunpack.c.0.s8 %v1297
          %v1299 = vlaneseq
          %v1300 = vshrl.u32 %v1299, 7
          %v1301 = vsub.s32 %v1298, %v1300
          %v1302 = vrot.slane %v1294, %v1301
          %v1304 = vunpack.c.l.s4 1983009808
          %v1305 = vunpack.c.0.s8 %v1304
          %v1306 = vlaneseq
          %v1307 = vshrl.u32 %v1306, 7
          %v1308 = vsub.s32 %v1305, %v1307
          %v1309 = vrot.slane %v1295, %v1308
          %v1310 = vcombine.low %v1219, %v1221
          %v1311 = vcombine.high %v1219, %v1221
          %v1313 = vunpack.c.l.s4 1983009808
          %v1314 = vunpack.c.0.s8 %v1313
          %v1315 = vlaneseq
          %v1316 = vshrl.u32 %v1315, 7
          %v1317 = vsub.s32 %v1314, %v1316
          %v1318 = vrot.slane %v1310, %v1317
          %v1320 = vunpack.c.l.s4 1983009808
          %v1321 = vunpack.c.0.s8 %v1320
          %v1322 = vlaneseq
          %v1323 = vshrl.u32 %v1322, 7
          %v1324 = vsub.s32 %v1321, %v1323
          %v1325 = vrot.slane %v1311, %v1324
          %v1326 = vcombine.low %v1222, %v1224
          %v1327 = vcombine.high %v1222, %v1224
          %v1329 = vunpack.c.l.s4 1983009808
          %v1330 = vunpack.c.0.s8 %v1329
          %v1331 = vlaneseq
          %v1332 = vshrl.u32 %v1331, 7
          %v1333 = vsub.s32 %v1330, %v1332
          %v1334 = vrot.slane %v1326, %v1333
          %v1336 = vunpack.c.l.s4 1983009808
          %v1337 = vunpack.c.0.s8 %v1336
          %v1338 = vlaneseq
          %v1339 = vshrl.u32 %v1338, 7
          %v1340 = vsub.s32 %v1337, %v1339
          %v1341 = vrot.slane %v1327, %v1340
          %v1342 = vcombine.low %v1223, %v1225
          %v1343 = vcombine.high %v1223, %v1225
          %v1345 = vunpack.c.l.s4 1983009808
          %v1346 = vunpack.c.0.s8 %v1345
          %v1347 = vlaneseq
          %v1348 = vshrl.u32 %v1347, 7
          %v1349 = vsub.s32 %v1346, %v1348
          %v1350 = vrot.slane %v1342, %v1349
          %v1352 = vunpack.c.l.s4 1983009808
          %v1353 = vunpack.c.0.s8 %v1352
          %v1354 = vlaneseq
          %v1355 = vshrl.u32 %v1354, 7
          %v1356 = vsub.s32 %v1353, %v1355
          %v1357 = vrot.slane %v1343, %v1356
          %v1358 = vcombine.low %v1302, %v1318
          %v1359 = vcombine.high %v1302, %v1318
          %v1361 = vunpack.c.l.s4 1934713408
          %v1362 = vunpack.c.0.s8 %v1361
          %v1363 = vlaneseq
          %v1364 = vshrl.u32 %v1363, 7
          %v1365 = vsub.s32 %v1362, %v1364
          %v1366 = vrot.slane %v1358, %v1365
          %v1368 = vunpack.c.l.s4 1934713408
          %v1369 = vunpack.c.0.s8 %v1368
          %v1370 = vlaneseq
          %v1371 = vshrl.u32 %v1370, 7
          %v1372 = vsub.s32 %v1369, %v1371
          %v1373 = vrot.slane %v1359, %v1372
          %v1374 = vcombine.low %v1309, %v1325
          %v1375 = vcombine.high %v1309, %v1325
          %v1377 = vunpack.c.l.s4 1934713408
          %v1378 = vunpack.c.0.s8 %v1377
          %v1379 = vlaneseq
          %v1380 = vshrl.u32 %v1379, 7
          %v1381 = vsub.s32 %v1378, %v1380
          %v1382 = vrot.slane %v1374, %v1381
          %v1384 = vunpack.c.l.s4 1934713408
          %v1385 = vunpack.c.0.s8 %v1384
          %v1386 = vlaneseq
          %v1387 = vshrl.u32 %v1386, 7
          %v1388 = vsub.s32 %v1385, %v1387
          %v1389 = vrot.slane %v1375, %v1388
          %v1390 = vcombine.low %v1334, %v1350
          %v1391 = vcombine.high %v1334, %v1350
          %v1393 = vunpack.c.l.s4 1934713408
          %v1394 = vunpack.c.0.s8 %v1393
          %v1395 = vlaneseq
          %v1396 = vshrl.u32 %v1395, 7
          %v1397 = vsub.s32 %v1394, %v1396
          %v1398 = vrot.slane %v1390, %v1397
          %v1400 = vunpack.c.l.s4 1934713408
          %v1401 = vunpack.c.0.s8 %v1400
          %v1402 = vlaneseq
          %v1403 = vshrl.u32 %v1402, 7
          %v1404 = vsub.s32 %v1401, %v1403
          %v1405 = vrot.slane %v1391, %v1404
          %v1406 = vcombine.low %v1341, %v1357
          %v1407 = vcombine.high %v1341, %v1357
          %v1409 = vunpack.c.l.s4 1934713408
          %v1410 = vunpack.c.0.s8 %v1409
          %v1411 = vlaneseq
          %v1412 = vshrl.u32 %v1411, 7
          %v1413 = vsub.s32 %v1410, %v1412
          %v1414 = vrot.slane %v1406, %v1413
          %v1416 = vunpack.c.l.s4 1934713408
          %v1417 = vunpack.c.0.s8 %v1416
          %v1418 = vlaneseq
          %v1419 = vshrl.u32 %v1418, 7
          %v1420 = vsub.s32 %v1417, %v1419
          %v1421 = vrot.slane %v1407, %v1420
          %v1422 = vcombine.low %v1366, %v1398
          %v1423 = vcombine.high %v1366, %v1398
          %v1424 = vcombine.low %v1373, %v1405
          %v1425 = vcombine.high %v1373, %v1405
          %v1426 = vcombine.low %v1382, %v1414
          %v1427 = vcombine.high %v1382, %v1414
          %v1428 = vcombine.low %v1389, %v1421
          %v1429 = vcombine.high %v1389, %v1421
          %v1430 = vcombine.low %v1266, %v1273
          %v1432 = vunpack.c.l.s4 1983009808
          %v1433 = vunpack.c.0.s8 %v1432
          %v1434 = vlaneseq
          %v1435 = vshrl.u32 %v1434, 7
          %v1436 = vsub.s32 %v1433, %v1435
          %v1437 = vrot.slane %v1430, %v1436
          %v1438 = vcombine.low %v1290, %v1291
          %v1440 = vunpack.c.l.s4 1983009808
          %v1441 = vunpack.c.0.s8 %v1440
          %v1442 = vlaneseq
          %v1443 = vshrl.u32 %v1442, 7
          %v1444 = vsub.s32 %v1441, %v1443
          %v1445 = vrot.slane %v1438, %v1444
          %v1446 = vcombine.low %v1282, %v1289
          %v1448 = vunpack.c.l.s4 1983009808
          %v1449 = vunpack.c.0.s8 %v1448
          %v1450 = vlaneseq
          %v1451 = vshrl.u32 %v1450, 7
          %v1452 = vsub.s32 %v1449, %v1451
          %v1453 = vrot.slane %v1446, %v1452
          %v1454 = vcombine.low %v1292, %v1293
          %v1456 = vunpack.c.l.s4 1983009808
          %v1457 = vunpack.c.0.s8 %v1456
          %v1458 = vlaneseq
          %v1459 = vshrl.u32 %v1458, 7
          %v1460 = vsub.s32 %v1457, %v1459
          %v1461 = vrot.slane %v1454, %v1460
          %v1462 = vcombine.low %v1437, %v1445
          %v1463 = vcombine.high %v1437, %v1445
          %v1465 = vunpack.c.l.s4 1934713408
          %v1466 = vunpack.c.0.s8 %v1465
          %v1467 = vlaneseq
          %v1468 = vshrl.u32 %v1467, 7
          %v1469 = vsub.s32 %v1466, %v1468
          %v1470 = vrot.slane %v1462, %v1469
          %v1472 = vunpack.c.l.s4 1934713408
          %v1473 = vunpack.c.0.s8 %v1472
          %v1474 = vlaneseq
          %v1475 = vshrl.u32 %v1474, 7
          %v1476 = vsub.s32 %v1473, %v1475
          %v1477 = vrot.slane %v1463, %v1476
          %v1478 = vcombine.low %v1453, %v1461
          %v1479 = vcombine.high %v1453, %v1461
          %v1481 = vunpack.c.l.s4 1934713408
          %v1482 = vunpack.c.0.s8 %v1481
          %v1483 = vlaneseq
          %v1484 = vshrl.u32 %v1483, 7
          %v1485 = vsub.s32 %v1482, %v1484
          %v1486 = vrot.slane %v1478, %v1485
          %v1488 = vunpack.c.l.s4 1934713408
          %v1489 = vunpack.c.0.s8 %v1488
          %v1490 = vlaneseq
          %v1491 = vshrl.u32 %v1490, 7
          %v1492 = vsub.s32 %v1489, %v1491
          %v1493 = vrot.slane %v1479, %v1492
          %v1494 = vcombine.low %v1470, %v1486
          %v1495 = vcombine.high %v1470, %v1486
          %v1496 = vcombine.low %v1477, %v1493
          %v1497 = vcombine.high %v1477, %v1493
          %1498 = vst.msk [vmem:[#allocation3] sm:$0xff] %vm1024, %v1422
          %1499 = vst.msk [vmem:[#allocation3 + $0x8] sm:$0xff] %vm1024, %v1423
          %1500 = vst.msk [vmem:[#allocation3 + $0x10] sm:$0xff] %vm1024, %v1424
          %1501 = vst.msk [vmem:[#allocation3 + $0x18] sm:$0xff] %vm1024, %v1425
          %1502 = vst.msk [vmem:[#allocation3 + $0x20] sm:$0xff] %vm1024, %v1426
          %1503 = vst.msk [vmem:[#allocation3 + $0x28] sm:$0xff] %vm1024, %v1427
          %1504 = vst.msk [vmem:[#allocation3 + $0x30] sm:$0xff] %vm1024, %v1428
          %1505 = vst.msk [vmem:[#allocation3 + $0x38] sm:$0xff] %vm1024, %v1429
          %1506 = vst.msk [vmem:[#allocation3 + $0x40] sm:$0xff] %vm1024, %v1494
          %1507 = vst.msk [vmem:[#allocation3 + $0x48] sm:$0xff] %vm1024, %v1495
          %1508 = vst.msk [vmem:[#allocation3 + $0x50] sm:$0xff] %vm1024, %v1496
          %1509 = vst.msk [vmem:[#allocation3 + $0x58] sm:$0xff] %vm1024, %v1497
        $region84: #{tpu_custom_call.1} parent=59 // pred_fallthru
          _
        %s1510 = smul.u32 %s36, 8
        %s1511 = scalar_lea.vmem %s405, %s1510 [#allocation4]
        %v1512 = vld [vmem:[%s1511] sm:$0xff]
        %v1513 = vld [vmem:[#allocation9] sm:$0xff]
        %v1514 = vld [vmem:[#allocation9 + $0x8] sm:$0xff]
        %v1515 = vld [vmem:[#allocation9 + $0x10] sm:$0xff]
        %v1516 = vld [vmem:[#allocation9 + $0x18] sm:$0xff]
        %v1517 = vld [vmem:[#allocation9 + $0x20] sm:$0xff]
        %v1518 = vld [vmem:[#allocation9 + $0x28] sm:$0xff]
        %v1519 = vld [vmem:[#allocation9 + $0x30] sm:$0xff]
        %v1520 = vld [vmem:[#allocation9 + $0x38] sm:$0xff]
        %v1521 = vld [vmem:[#allocation9 + $0x40] sm:$0xff]
        %v1522 = vld [vmem:[#allocation9 + $0x48] sm:$0xff]
        %v1523 = vld [vmem:[#allocation9 + $0x50] sm:$0xff]
        %v1524 = vld [vmem:[#allocation9 + $0x58] sm:$0xff]
        %v1525 = vld [vmem:[%s3] sm:$0x1]
        %v1527 = vlaneseq
        %v1528 = vshrl.u32 %v1527, 7
        %v1529 = vsub.s32 0, %v1528
        %v1530 = vrot.slane %v1525, %v1529
        %vm1532 = vcmask 785408
        %v1534 = vsel %vm1532, %v1512, 0
        %1536 = vmatprep.subr.mxu0 0.0
        %1537 = vmatpush1.msra.mxu0 0.0
        %1538 = vmatprep.subr.mxu0 0.0
        %1539 = vmatpush1.msra.mxu0 0.0
        %1540 = vmatprep.subr.mxu0 0.0
        %1541 = vmatpush1.msra.mxu0 0.0
        %1542 = vmatprep.subr.mxu0 0.0
        %1543 = vmatpush1.msra.mxu0 0.0
        %1544 = vmatprep.subr.mxu0 0.0
        %1545 = vmatpush1.msra.mxu0 %v1524
        %1546 = vmatprep.subr.mxu0 0.0
        %1547 = vmatpush1.msra.mxu0 %v1523
        %1548 = vmatprep.subr.mxu0 0.0
        %1549 = vmatpush1.msra.mxu0 %v1522
        %1550 = vmatprep.subr.mxu0 0.0
        %1551 = vmatpush1.msra.mxu0 %v1521
        %1552 = vmatprep.subr.mxu0 0.0
        %1553 = vmatpush1.msra.mxu0 %v1520
        %1554 = vmatprep.subr.mxu0 0.0
        %1555 = vmatpush1.msra.mxu0 %v1519
        %1556 = vmatprep.subr.mxu0 0.0
        %1557 = vmatpush1.msra.mxu0 %v1518
        %1558 = vmatprep.subr.mxu0 0.0
        %1559 = vmatpush1.msra.mxu0 %v1517
        %1560 = vmatprep.subr.mxu0 0.0
        %1561 = vmatpush1.msra.mxu0 %v1516
        %1562 = vmatprep.subr.mxu0 0.0
        %1563 = vmatpush1.msra.mxu0 %v1515
        %1564 = vmatprep.subr.mxu0 0.0
        %1565 = vmatpush1.msra.mxu0 %v1514
        %1566 = vmatprep.subr.mxu0 0.0
        %1567 = vmatpush1.msra.mxu0 %v1513
        %1568 = vmatprep.subr.mxu0 0.0
        %1569 = vmatpush2.msra.mxu0 0.0
        %1570 = vmatprep.subr.mxu0 0.0
        %1571 = vmatpush2.msra.mxu0 0.0
        %1572 = vmatprep.subr.mxu0 0.0
        %1573 = vmatpush2.msra.mxu0 0.0
        %1574 = vmatprep.subr.mxu0 0.0
        %1575 = vmatpush2.msra.mxu0 0.0
        %1576 = vmatprep.subr.mxu0 0.0
        %1577 = vmatpush2.msra.mxu0 0.0
        %1578 = vmatprep.subr.mxu0 0.0
        %1579 = vmatpush2.msra.mxu0 0.0
        %1580 = vmatprep.subr.mxu0 0.0
        %1581 = vmatpush2.msra.mxu0 0.0
        %1582 = vmatprep.subr.mxu0 0.0
        %1583 = vmatpush2.msra.mxu0 0.0
        %1584 = vmatprep.subr.mxu0 0.0
        %1585 = vmatpush2.msra.mxu0 0.0
        %1586 = vmatprep.subr.mxu0 0.0
        %1587 = vmatpush2.msra.mxu0 0.0
        %1588 = vmatprep.subr.mxu0 0.0
        %1589 = vmatpush2.msra.mxu0 0.0
        %1590 = vmatprep.subr.mxu0 0.0
        %1591 = vmatpush2.msra.mxu0 0.0
        %1592 = vmatprep.subr.mxu0 0.0
        %1593 = vmatpush2.msra.mxu0 0.0
        %1594 = vmatprep.subr.mxu0 0.0
        %1595 = vmatpush2.msra.mxu0 0.0
        %1596 = vmatprep.subr.mxu0 0.0
        %1597 = vmatpush2.msra.mxu0 0.0
        %1598 = vmatprep.subr.mxu0 0.0
        %1599 = vmatpush2.msra.mxu0 0.0
        %1600 = vmatprep.mubr.f32.mxu0 0.0
        %1601 = vmatmul.mubr.f32.gmra.mxu0 %v1534
        %v1602 = vpop.f32.mrf.mxu0
        %v1603 = vadd.f32 %v1530, %v1602
        %v1604 = vpop.f32.mrf.mxu0
        %1605 = vdwg.mxu0
        %1607 = vrot.lane.b32.xlu0 %v1603, 120
        %v1608 = vpop.permute.xlu0 %1607
        %1610 = vrot.lane.b32.xlu0 %v1603, 112
        %v1611 = vpop.permute.xlu0 %1610
        %1613 = vrot.lane.b32.xlu0 %v1603, 104
        %v1614 = vpop.permute.xlu0 %1613
        %1616 = vrot.lane.b32.xlu0 %v1603, 96
        %v1617 = vpop.permute.xlu0 %1616
        %1619 = vrot.lane.b32.xlu0 %v1603, 88
        %v1620 = vpop.permute.xlu0 %1619
        %1622 = vrot.lane.b32.xlu0 %v1603, 80
        %v1623 = vpop.permute.xlu0 %1622
        %1625 = vrot.lane.b32.xlu0 %v1603, 72
        %v1626 = vpop.permute.xlu0 %1625
        %1628 = vrot.lane.b32.xlu0 %v1603, 64
        %v1629 = vpop.permute.xlu0 %1628
        %1631 = vrot.lane.b32.xlu0 %v1603, 56
        %v1632 = vpop.permute.xlu0 %1631
        %1634 = vrot.lane.b32.xlu0 %v1603, 48
        %v1635 = vpop.permute.xlu0 %1634
        %1637 = vrot.lane.b32.xlu0 %v1603, 40
        %v1638 = vpop.permute.xlu0 %1637
        %v1640 = vcombine.low %v1603, %v1611
        %v1641 = vcombine.high %v1603, %v1611
        %v1643 = vunpack.c.l.s4 1983009808
        %v1644 = vunpack.c.0.s8 %v1643
        %v1645 = vlaneseq
        %v1646 = vshrl.u32 %v1645, 7
        %v1647 = vsub.s32 %v1644, %v1646
        %v1648 = vrot.slane %v1640, %v1647
        %v1650 = vunpack.c.l.s4 1983009808
        %v1651 = vunpack.c.0.s8 %v1650
        %v1652 = vlaneseq
        %v1653 = vshrl.u32 %v1652, 7
        %v1654 = vsub.s32 %v1651, %v1653
        %v1655 = vrot.slane %v1641, %v1654
        %v1656 = vcombine.low %v1608, %v1614
        %v1657 = vcombine.high %v1608, %v1614
        %v1659 = vunpack.c.l.s4 1983009808
        %v1660 = vunpack.c.0.s8 %v1659
        %v1661 = vlaneseq
        %v1662 = vshrl.u32 %v1661, 7
        %v1663 = vsub.s32 %v1660, %v1662
        %v1664 = vrot.slane %v1656, %v1663
        %v1666 = vunpack.c.l.s4 1983009808
        %v1667 = vunpack.c.0.s8 %v1666
        %v1668 = vlaneseq
        %v1669 = vshrl.u32 %v1668, 7
        %v1670 = vsub.s32 %v1667, %v1669
        %v1671 = vrot.slane %v1657, %v1670
        %v1672 = vcombine.low %v1617, %v1623
        %v1673 = vcombine.high %v1617, %v1623
        %v1675 = vunpack.c.l.s4 1983009808
        %v1676 = vunpack.c.0.s8 %v1675
        %v1677 = vlaneseq
        %v1678 = vshrl.u32 %v1677, 7
        %v1679 = vsub.s32 %v1676, %v1678
        %v1680 = vrot.slane %v1672, %v1679
        %v1682 = vunpack.c.l.s4 1983009808
        %v1683 = vunpack.c.0.s8 %v1682
        %v1684 = vlaneseq
        %v1685 = vshrl.u32 %v1684, 7
        %v1686 = vsub.s32 %v1683, %v1685
        %v1687 = vrot.slane %v1673, %v1686
        %v1688 = vcombine.low %v1620, %v1626
        %v1689 = vcombine.high %v1620, %v1626
        %v1691 = vunpack.c.l.s4 1983009808
        %v1692 = vunpack.c.0.s8 %v1691
        %v1693 = vlaneseq
        %v1694 = vshrl.u32 %v1693, 7
        %v1695 = vsub.s32 %v1692, %v1694
        %v1696 = vrot.slane %v1688, %v1695
        %v1698 = vunpack.c.l.s4 1983009808
        %v1699 = vunpack.c.0.s8 %v1698
        %v1700 = vlaneseq
        %v1701 = vshrl.u32 %v1700, 7
        %v1702 = vsub.s32 %v1699, %v1701
        %v1703 = vrot.slane %v1689, %v1702
        %v1704 = vcombine.low %v1648, %v1664
        %v1705 = vcombine.high %v1648, %v1664
        %v1707 = vunpack.c.l.s4 1934713408
        %v1708 = vunpack.c.0.s8 %v1707
        %v1709 = vlaneseq
        %v1710 = vshrl.u32 %v1709, 7
        %v1711 = vsub.s32 %v1708, %v1710
        %v1712 = vrot.slane %v1704, %v1711
        %v1714 = vunpack.c.l.s4 1934713408
        %v1715 = vunpack.c.0.s8 %v1714
        %v1716 = vlaneseq
        %v1717 = vshrl.u32 %v1716, 7
        %v1718 = vsub.s32 %v1715, %v1717
        %v1719 = vrot.slane %v1705, %v1718
        %v1720 = vcombine.low %v1655, %v1671
        %v1721 = vcombine.high %v1655, %v1671
        %v1723 = vunpack.c.l.s4 1934713408
        %v1724 = vunpack.c.0.s8 %v1723
        %v1725 = vlaneseq
        %v1726 = vshrl.u32 %v1725, 7
        %v1727 = vsub.s32 %v1724, %v1726
        %v1728 = vrot.slane %v1720, %v1727
        %v1730 = vunpack.c.l.s4 1934713408
        %v1731 = vunpack.c.0.s8 %v1730
        %v1732 = vlaneseq
        %v1733 = vshrl.u32 %v1732, 7
        %v1734 = vsub.s32 %v1731, %v1733
        %v1735 = vrot.slane %v1721, %v1734
        %v1736 = vcombine.low %v1680, %v1696
        %v1737 = vcombine.high %v1680, %v1696
        %v1739 = vunpack.c.l.s4 1934713408
        %v1740 = vunpack.c.0.s8 %v1739
        %v1741 = vlaneseq
        %v1742 = vshrl.u32 %v1741, 7
        %v1743 = vsub.s32 %v1740, %v1742
        %v1744 = vrot.slane %v1736, %v1743
        %v1746 = vunpack.c.l.s4 1934713408
        %v1747 = vunpack.c.0.s8 %v1746
        %v1748 = vlaneseq
        %v1749 = vshrl.u32 %v1748, 7
        %v1750 = vsub.s32 %v1747, %v1749
        %v1751 = vrot.slane %v1737, %v1750
        %v1752 = vcombine.low %v1687, %v1703
        %v1753 = vcombine.high %v1687, %v1703
        %v1755 = vunpack.c.l.s4 1934713408
        %v1756 = vunpack.c.0.s8 %v1755
        %v1757 = vlaneseq
        %v1758 = vshrl.u32 %v1757, 7
        %v1759 = vsub.s32 %v1756, %v1758
        %v1760 = vrot.slane %v1752, %v1759
        %v1762 = vunpack.c.l.s4 1934713408
        %v1763 = vunpack.c.0.s8 %v1762
        %v1764 = vlaneseq
        %v1765 = vshrl.u32 %v1764, 7
        %v1766 = vsub.s32 %v1763, %v1765
        %v1767 = vrot.slane %v1753, %v1766
        %v1768 = vcombine.low %v1712, %v1744
        %v1769 = vcombine.high %v1712, %v1744
        %v1770 = vcombine.low %v1719, %v1751
        %v1771 = vcombine.high %v1719, %v1751
        %v1772 = vcombine.low %v1728, %v1760
        %v1773 = vcombine.high %v1728, %v1760
        %v1774 = vcombine.low %v1735, %v1767
        %v1775 = vcombine.high %v1735, %v1767
        %v1776 = vcombine.low %v1629, %v1635
        %v1777 = vcombine.high %v1629, %v1635
        %v1779 = vunpack.c.l.s4 1983009808
        %v1780 = vunpack.c.0.s8 %v1779
        %v1781 = vlaneseq
        %v1782 = vshrl.u32 %v1781, 7
        %v1783 = vsub.s32 %v1780, %v1782
        %v1784 = vrot.slane %v1776, %v1783
        %v1786 = vunpack.c.l.s4 1983009808
        %v1787 = vunpack.c.0.s8 %v1786
        %v1788 = vlaneseq
        %v1789 = vshrl.u32 %v1788, 7
        %v1790 = vsub.s32 %v1787, %v1789
        %v1791 = vrot.slane %v1777, %v1790
        %v1792 = vcombine.low %v1632, %v1638
        %v1793 = vcombine.high %v1632, %v1638
        %v1795 = vunpack.c.l.s4 1983009808
        %v1796 = vunpack.c.0.s8 %v1795
        %v1797 = vlaneseq
        %v1798 = vshrl.u32 %v1797, 7
        %v1799 = vsub.s32 %v1796, %v1798
        %v1800 = vrot.slane %v1792, %v1799
        %v1802 = vunpack.c.l.s4 1983009808
        %v1803 = vunpack.c.0.s8 %v1802
        %v1804 = vlaneseq
        %v1805 = vshrl.u32 %v1804, 7
        %v1806 = vsub.s32 %v1803, %v1805
        %v1807 = vrot.slane %v1793, %v1806
        %v1808 = vcombine.low %v1784, %v1800
        %v1809 = vcombine.high %v1784, %v1800
        %v1811 = vunpack.c.l.s4 1934713408
        %v1812 = vunpack.c.0.s8 %v1811
        %v1813 = vlaneseq
        %v1814 = vshrl.u32 %v1813, 7
        %v1815 = vsub.s32 %v1812, %v1814
        %v1816 = vrot.slane %v1808, %v1815
        %v1818 = vunpack.c.l.s4 1934713408
        %v1819 = vunpack.c.0.s8 %v1818
        %v1820 = vlaneseq
        %v1821 = vshrl.u32 %v1820, 7
        %v1822 = vsub.s32 %v1819, %v1821
        %v1823 = vrot.slane %v1809, %v1822
        %v1824 = vcombine.low %v1791, %v1807
        %v1825 = vcombine.high %v1791, %v1807
        %v1827 = vunpack.c.l.s4 1934713408
        %v1828 = vunpack.c.0.s8 %v1827
        %v1829 = vlaneseq
        %v1830 = vshrl.u32 %v1829, 7
        %v1831 = vsub.s32 %v1828, %v1830
        %v1832 = vrot.slane %v1824, %v1831
        %v1834 = vunpack.c.l.s4 1934713408
        %v1835 = vunpack.c.0.s8 %v1834
        %v1836 = vlaneseq
        %v1837 = vshrl.u32 %v1836, 7
        %v1838 = vsub.s32 %v1835, %v1837
        %v1839 = vrot.slane %v1825, %v1838
        %v1840 = vcombine.high %v1816, 0.0
        %v1841 = vcombine.high %v1823, 0.0
        %v1842 = vcombine.high %v1832, 0.0
        %v1843 = vcombine.high %v1839, 0.0
        %v1844 = vcombine.low %v1768, %v1770
        %v1845 = vcombine.high %v1768, %v1770
        %v1847 = vunpack.c.l.s4 1983009808
        %v1848 = vunpack.c.0.s8 %v1847
        %v1849 = vlaneseq
        %v1850 = vshrl.u32 %v1849, 7
        %v1851 = vsub.s32 %v1848, %v1850
        %v1852 = vrot.slane %v1844, %v1851
        %v1854 = vunpack.c.l.s4 1983009808
        %v1855 = vunpack.c.0.s8 %v1854
        %v1856 = vlaneseq
        %v1857 = vshrl.u32 %v1856, 7
        %v1858 = vsub.s32 %v1855, %v1857
        %v1859 = vrot.slane %v1845, %v1858
        %v1860 = vcombine.low %v1769, %v1771
        %v1861 = vcombine.high %v1769, %v1771
        %v1863 = vunpack.c.l.s4 1983009808
        %v1864 = vunpack.c.0.s8 %v1863
        %v1865 = vlaneseq
        %v1866 = vshrl.u32 %v1865, 7
        %v1867 = vsub.s32 %v1864, %v1866
        %v1868 = vrot.slane %v1860, %v1867
        %v1870 = vunpack.c.l.s4 1983009808
        %v1871 = vunpack.c.0.s8 %v1870
        %v1872 = vlaneseq
        %v1873 = vshrl.u32 %v1872, 7
        %v1874 = vsub.s32 %v1871, %v1873
        %v1875 = vrot.slane %v1861, %v1874
        %v1876 = vcombine.low %v1772, %v1774
        %v1877 = vcombine.high %v1772, %v1774
        %v1879 = vunpack.c.l.s4 1983009808
        %v1880 = vunpack.c.0.s8 %v1879
        %v1881 = vlaneseq
        %v1882 = vshrl.u32 %v1881, 7
        %v1883 = vsub.s32 %v1880, %v1882
        %v1884 = vrot.slane %v1876, %v1883
        %v1886 = vunpack.c.l.s4 1983009808
        %v1887 = vunpack.c.0.s8 %v1886
        %v1888 = vlaneseq
        %v1889 = vshrl.u32 %v1888, 7
        %v1890 = vsub.s32 %v1887, %v1889
        %v1891 = vrot.slane %v1877, %v1890
        %v1892 = vcombine.low %v1773, %v1775
        %v1893 = vcombine.high %v1773, %v1775
        %v1895 = vunpack.c.l.s4 1983009808
        %v1896 = vunpack.c.0.s8 %v1895
        %v1897 = vlaneseq
        %v1898 = vshrl.u32 %v1897, 7
        %v1899 = vsub.s32 %v1896, %v1898
        %v1900 = vrot.slane %v1892, %v1899
        %v1902 = vunpack.c.l.s4 1983009808
        %v1903 = vunpack.c.0.s8 %v1902
        %v1904 = vlaneseq
        %v1905 = vshrl.u32 %v1904, 7
        %v1906 = vsub.s32 %v1903, %v1905
        %v1907 = vrot.slane %v1893, %v1906
        %v1908 = vcombine.low %v1852, %v1868
        %v1909 = vcombine.high %v1852, %v1868
        %v1911 = vunpack.c.l.s4 1934713408
        %v1912 = vunpack.c.0.s8 %v1911
        %v1913 = vlaneseq
        %v1914 = vshrl.u32 %v1913, 7
        %v1915 = vsub.s32 %v1912, %v1914
        %v1916 = vrot.slane %v1908, %v1915
        %v1918 = vunpack.c.l.s4 1934713408
        %v1919 = vunpack.c.0.s8 %v1918
        %v1920 = vlaneseq
        %v1921 = vshrl.u32 %v1920, 7
        %v1922 = vsub.s32 %v1919, %v1921
        %v1923 = vrot.slane %v1909, %v1922
        %v1924 = vcombine.low %v1859, %v1875
        %v1925 = vcombine.high %v1859, %v1875
        %v1927 = vunpack.c.l.s4 1934713408
        %v1928 = vunpack.c.0.s8 %v1927
        %v1929 = vlaneseq
        %v1930 = vshrl.u32 %v1929, 7
        %v1931 = vsub.s32 %v1928, %v1930
        %v1932 = vrot.slane %v1924, %v1931
        %v1934 = vunpack.c.l.s4 1934713408
        %v1935 = vunpack.c.0.s8 %v1934
        %v1936 = vlaneseq
        %v1937 = vshrl.u32 %v1936, 7
        %v1938 = vsub.s32 %v1935, %v1937
        %v1939 = vrot.slane %v1925, %v1938
        %v1940 = vcombine.low %v1884, %v1900
        %v1941 = vcombine.high %v1884, %v1900
        %v1943 = vunpack.c.l.s4 1934713408
        %v1944 = vunpack.c.0.s8 %v1943
        %v1945 = vlaneseq
        %v1946 = vshrl.u32 %v1945, 7
        %v1947 = vsub.s32 %v1944, %v1946
        %v1948 = vrot.slane %v1940, %v1947
        %v1950 = vunpack.c.l.s4 1934713408
        %v1951 = vunpack.c.0.s8 %v1950
        %v1952 = vlaneseq
        %v1953 = vshrl.u32 %v1952, 7
        %v1954 = vsub.s32 %v1951, %v1953
        %v1955 = vrot.slane %v1941, %v1954
        %v1956 = vcombine.low %v1891, %v1907
        %v1957 = vcombine.high %v1891, %v1907
        %v1959 = vunpack.c.l.s4 1934713408
        %v1960 = vunpack.c.0.s8 %v1959
        %v1961 = vlaneseq
        %v1962 = vshrl.u32 %v1961, 7
        %v1963 = vsub.s32 %v1960, %v1962
        %v1964 = vrot.slane %v1956, %v1963
        %v1966 = vunpack.c.l.s4 1934713408
        %v1967 = vunpack.c.0.s8 %v1966
        %v1968 = vlaneseq
        %v1969 = vshrl.u32 %v1968, 7
        %v1970 = vsub.s32 %v1967, %v1969
        %v1971 = vrot.slane %v1957, %v1970
        %v1972 = vcombine.low %v1916, %v1948
        %v1973 = vcombine.high %v1916, %v1948
        %v1974 = vcombine.low %v1923, %v1955
        %v1975 = vcombine.high %v1923, %v1955
        %v1976 = vcombine.low %v1932, %v1964
        %v1977 = vcombine.high %v1932, %v1964
        %v1978 = vcombine.low %v1939, %v1971
        %v1979 = vcombine.high %v1939, %v1971
        %v1980 = vcombine.low %v1816, %v1823
        %v1982 = vunpack.c.l.s4 1983009808
        %v1983 = vunpack.c.0.s8 %v1982
        %v1984 = vlaneseq
        %v1985 = vshrl.u32 %v1984, 7
        %v1986 = vsub.s32 %v1983, %v1985
        %v1987 = vrot.slane %v1980, %v1986
        %v1988 = vcombine.low %v1840, %v1841
        %v1990 = vunpack.c.l.s4 1983009808
        %v1991 = vunpack.c.0.s8 %v1990
        %v1992 = vlaneseq
        %v1993 = vshrl.u32 %v1992, 7
        %v1994 = vsub.s32 %v1991, %v1993
        %v1995 = vrot.slane %v1988, %v1994
        %v1996 = vcombine.low %v1832, %v1839
        %v1998 = vunpack.c.l.s4 1983009808
        %v1999 = vunpack.c.0.s8 %v1998
        %v2000 = vlaneseq
        %v2001 = vshrl.u32 %v2000, 7
        %v2002 = vsub.s32 %v1999, %v2001
        %v2003 = vrot.slane %v1996, %v2002
        %v2004 = vcombine.low %v1842, %v1843
        %v2006 = vunpack.c.l.s4 1983009808
        %v2007 = vunpack.c.0.s8 %v2006
        %v2008 = vlaneseq
        %v2009 = vshrl.u32 %v2008, 7
        %v2010 = vsub.s32 %v2007, %v2009
        %v2011 = vrot.slane %v2004, %v2010
        %v2012 = vcombine.low %v1987, %v1995
        %v2013 = vcombine.high %v1987, %v1995
        %v2015 = vunpack.c.l.s4 1934713408
        %v2016 = vunpack.c.0.s8 %v2015
        %v2017 = vlaneseq
        %v2018 = vshrl.u32 %v2017, 7
        %v2019 = vsub.s32 %v2016, %v2018
        %v2020 = vrot.slane %v2012, %v2019
        %v2022 = vunpack.c.l.s4 1934713408
        %v2023 = vunpack.c.0.s8 %v2022
        %v2024 = vlaneseq
        %v2025 = vshrl.u32 %v2024, 7
        %v2026 = vsub.s32 %v2023, %v2025
        %v2027 = vrot.slane %v2013, %v2026
        %v2028 = vcombine.low %v2003, %v2011
        %v2029 = vcombine.high %v2003, %v2011
        %v2031 = vunpack.c.l.s4 1934713408
        %v2032 = vunpack.c.0.s8 %v2031
        %v2033 = vlaneseq
        %v2034 = vshrl.u32 %v2033, 7
        %v2035 = vsub.s32 %v2032, %v2034
        %v2036 = vrot.slane %v2028, %v2035
        %v2038 = vunpack.c.l.s4 1934713408
        %v2039 = vunpack.c.0.s8 %v2038
        %v2040 = vlaneseq
        %v2041 = vshrl.u32 %v2040, 7
        %v2042 = vsub.s32 %v2039, %v2041
        %v2043 = vrot.slane %v2029, %v2042
        %v2044 = vcombine.low %v2020, %v2036
        %v2045 = vcombine.high %v2020, %v2036
        %v2046 = vcombine.low %v2027, %v2043
        %v2047 = vcombine.high %v2027, %v2043
        %v2048 = vld [vmem:[%s413] sm:$0x1]
        %v2049 = vld [vmem:[%s7] sm:$0x1]
        %v2051 = vlaneseq
        %v2052 = vshrl.u32 %v2051, 7
        %v2053 = vsub.s32 0, %v2052
        %v2054 = vrot.slane %v2049, %v2053
        %v2056 = vadd.f32 %v1512, %v2054
        %v2057 = vld [vmem:[#allocation2] sm:$0xff]
        %v2058 = vld [vmem:[#allocation2 + $0x8] sm:$0xff]
        %v2059 = vld [vmem:[#allocation2 + $0x10] sm:$0xff]
        %v2060 = vld [vmem:[#allocation2 + $0x18] sm:$0xff]
        %v2061 = vld [vmem:[#allocation3] sm:$0xff]
        %v2062 = vld [vmem:[#allocation3 + $0x8] sm:$0xff]
        %v2063 = vld [vmem:[#allocation3 + $0x10] sm:$0xff]
        %v2064 = vld [vmem:[#allocation3 + $0x18] sm:$0xff]
        %vm2065 = vcmask 64512
        %v2067 = vsel %vm2065, %v1972, 0
        %v2070 = vsel %vm2065, %v2057, 0
        %2072 = vmatprep.subr.mxu0 0.0
        %2073 = vmatpush1.xpose.msra.mxu0 0.0
        %2074 = vmatprep.subr.mxu0 0.0
        %2075 = vmatpush1.xpose.msra.mxu0 0.0
        %2076 = vmatprep.subr.mxu0 0.0
        %2077 = vmatpush1.xpose.msra.mxu0 0.0
        %2078 = vmatprep.subr.mxu0 0.0
        %2079 = vmatpush1.xpose.msra.mxu0 0.0
        %2080 = vmatprep.subr.mxu0 0.0
        %2081 = vmatpush1.xpose.msra.mxu0 0.0
        %2082 = vmatprep.subr.mxu0 0.0
        %2083 = vmatpush1.xpose.msra.mxu0 0.0
        %2084 = vmatprep.subr.mxu0 0.0
        %2085 = vmatpush1.xpose.msra.mxu0 0.0
        %2086 = vmatprep.subr.mxu0 0.0
        %2087 = vmatpush1.xpose.msra.mxu0 0.0
        %2088 = vmatprep.subr.mxu0 0.0
        %2089 = vmatpush1.xpose.msra.mxu0 0.0
        %2090 = vmatprep.subr.mxu0 0.0
        %2091 = vmatpush1.xpose.msra.mxu0 0.0
        %2092 = vmatprep.subr.mxu0 0.0
        %2093 = vmatpush1.xpose.msra.mxu0 0.0
        %2094 = vmatprep.subr.mxu0 0.0
        %2095 = vmatpush1.xpose.msra.mxu0 0.0
        %2096 = vmatprep.subr.mxu0 0.0
        %2097 = vmatpush1.xpose.msra.mxu0 0.0
        %2098 = vmatprep.subr.mxu0 0.0
        %2099 = vmatpush1.xpose.msra.mxu0 0.0
        %2100 = vmatprep.subr.mxu0 0.0
        %2101 = vmatpush1.xpose.msra.mxu0 0.0
        %2102 = vmatprep.subr.mxu0 0.0
        %2103 = vmatpush1.xpose.msra.mxu0 %v2070
        %2104 = vmatprep.subr.mxu0 0.0
        %2105 = vmatpush2.xpose.msra.mxu0 0.0
        %2106 = vmatprep.subr.mxu0 0.0
        %2107 = vmatpush2.xpose.msra.mxu0 0.0
        %2108 = vmatprep.subr.mxu0 0.0
        %2109 = vmatpush2.xpose.msra.mxu0 0.0
        %2110 = vmatprep.subr.mxu0 0.0
        %2111 = vmatpush2.xpose.msra.mxu0 0.0
        %2112 = vmatprep.subr.mxu0 0.0
        %2113 = vmatpush2.xpose.msra.mxu0 0.0
        %2114 = vmatprep.subr.mxu0 0.0
        %2115 = vmatpush2.xpose.msra.mxu0 0.0
        %2116 = vmatprep.subr.mxu0 0.0
        %2117 = vmatpush2.xpose.msra.mxu0 0.0
        %2118 = vmatprep.subr.mxu0 0.0
        %2119 = vmatpush2.xpose.msra.mxu0 0.0
        %2120 = vmatprep.subr.mxu0 0.0
        %2121 = vmatpush2.xpose.msra.mxu0 0.0
        %2122 = vmatprep.subr.mxu0 0.0
        %2123 = vmatpush2.xpose.msra.mxu0 0.0
        %2124 = vmatprep.subr.mxu0 0.0
        %2125 = vmatpush2.xpose.msra.mxu0 0.0
        %2126 = vmatprep.subr.mxu0 0.0
        %2127 = vmatpush2.xpose.msra.mxu0 0.0
        %2128 = vmatprep.subr.mxu0 0.0
        %2129 = vmatpush2.xpose.msra.mxu0 0.0
        %2130 = vmatprep.subr.mxu0 0.0
        %2131 = vmatpush2.xpose.msra.mxu0 0.0
        %2132 = vmatprep.subr.mxu0 0.0
        %2133 = vmatpush2.xpose.msra.mxu0 0.0
        %2134 = vmatprep.subr.mxu0 0.0
        %2135 = vmatpush2.xpose.msra.mxu0 0.0
        %2136 = vmatprep.mubr.f32.mxu0 0.0
        %2137 = vmatmul.mubr.f32.gmra.mxu0 %v2067
        %v2138 = vpop.f32.mrf.mxu0
        %v2139 = vadd.f32 0.0, %v2138
        %v2140 = vpop.f32.mrf.mxu0
        %2141 = vdwg.mxu0
        %v2143 = vsel %vm2065, %v1973, 0
        %v2146 = vsel %vm2065, %v2058, 0
        %2148 = vmatprep.subr.mxu0 0.0
        %2149 = vmatpush1.xpose.msra.mxu0 0.0
        %2150 = vmatprep.subr.mxu0 0.0
        %2151 = vmatpush1.xpose.msra.mxu0 0.0
        %2152 = vmatprep.subr.mxu0 0.0
        %2153 = vmatpush1.xpose.msra.mxu0 0.0
        %2154 = vmatprep.subr.mxu0 0.0
        %2155 = vmatpush1.xpose.msra.mxu0 0.0
        %2156 = vmatprep.subr.mxu0 0.0
        %2157 = vmatpush1.xpose.msra.mxu0 0.0
        %2158 = vmatprep.subr.mxu0 0.0
        %2159 = vmatpush1.xpose.msra.mxu0 0.0
        %2160 = vmatprep.subr.mxu0 0.0
        %2161 = vmatpush1.xpose.msra.mxu0 0.0
        %2162 = vmatprep.subr.mxu0 0.0
        %2163 = vmatpush1.xpose.msra.mxu0 0.0
        %2164 = vmatprep.subr.mxu0 0.0
        %2165 = vmatpush1.xpose.msra.mxu0 0.0
        %2166 = vmatprep.subr.mxu0 0.0
        %2167 = vmatpush1.xpose.msra.mxu0 0.0
        %2168 = vmatprep.subr.mxu0 0.0
        %2169 = vmatpush1.xpose.msra.mxu0 0.0
        %2170 = vmatprep.subr.mxu0 0.0
        %2171 = vmatpush1.xpose.msra.mxu0 0.0
        %2172 = vmatprep.subr.mxu0 0.0
        %2173 = vmatpush1.xpose.msra.mxu0 0.0
        %2174 = vmatprep.subr.mxu0 0.0
        %2175 = vmatpush1.xpose.msra.mxu0 0.0
        %2176 = vmatprep.subr.mxu0 0.0
        %2177 = vmatpush1.xpose.msra.mxu0 0.0
        %2178 = vmatprep.subr.mxu0 0.0
        %2179 = vmatpush1.xpose.msra.mxu0 %v2146
        %2180 = vmatprep.subr.mxu0 0.0
        %2181 = vmatpush2.xpose.msra.mxu0 0.0
        %2182 = vmatprep.subr.mxu0 0.0
        %2183 = vmatpush2.xpose.msra.mxu0 0.0
        %2184 = vmatprep.subr.mxu0 0.0
        %2185 = vmatpush2.xpose.msra.mxu0 0.0
        %2186 = vmatprep.subr.mxu0 0.0
        %2187 = vmatpush2.xpose.msra.mxu0 0.0
        %2188 = vmatprep.subr.mxu0 0.0
        %2189 = vmatpush2.xpose.msra.mxu0 0.0
        %2190 = vmatprep.subr.mxu0 0.0
        %2191 = vmatpush2.xpose.msra.mxu0 0.0
        %2192 = vmatprep.subr.mxu0 0.0
        %2193 = vmatpush2.xpose.msra.mxu0 0.0
        %2194 = vmatprep.subr.mxu0 0.0
        %2195 = vmatpush2.xpose.msra.mxu0 0.0
        %2196 = vmatprep.subr.mxu0 0.0
        %2197 = vmatpush2.xpose.msra.mxu0 0.0
        %2198 = vmatprep.subr.mxu0 0.0
        %2199 = vmatpush2.xpose.msra.mxu0 0.0
        %2200 = vmatprep.subr.mxu0 0.0
        %2201 = vmatpush2.xpose.msra.mxu0 0.0
        %2202 = vmatprep.subr.mxu0 0.0
        %2203 = vmatpush2.xpose.msra.mxu0 0.0
        %2204 = vmatprep.subr.mxu0 0.0
        %2205 = vmatpush2.xpose.msra.mxu0 0.0
        %2206 = vmatprep.subr.mxu0 0.0
        %2207 = vmatpush2.xpose.msra.mxu0 0.0
        %2208 = vmatprep.subr.mxu0 0.0
        %2209 = vmatpush2.xpose.msra.mxu0 0.0
        %2210 = vmatprep.subr.mxu0 0.0
        %2211 = vmatpush2.xpose.msra.mxu0 0.0
        %2212 = vmatprep.mubr.f32.mxu0 0.0
        %2213 = vmatmul.mubr.f32.gmra.mxu0 %v2143
        %v2214 = vpop.f32.mrf.mxu0
        %v2215 = vadd.f32 0.0, %v2214
        %v2216 = vpop.f32.mrf.mxu0
        %2217 = vdwg.mxu0
        %v2219 = vsel %vm2065, %v1974, 0
        %v2222 = vsel %vm2065, %v2059, 0
        %2224 = vmatprep.subr.mxu0 0.0
        %2225 = vmatpush1.xpose.msra.mxu0 0.0
        %2226 = vmatprep.subr.mxu0 0.0
        %2227 = vmatpush1.xpose.msra.mxu0 0.0
        %2228 = vmatprep.subr.mxu0 0.0
        %2229 = vmatpush1.xpose.msra.mxu0 0.0
        %2230 = vmatprep.subr.mxu0 0.0
        %2231 = vmatpush1.xpose.msra.mxu0 0.0
        %2232 = vmatprep.subr.mxu0 0.0
        %2233 = vmatpush1.xpose.msra.mxu0 0.0
        %2234 = vmatprep.subr.mxu0 0.0
        %2235 = vmatpush1.xpose.msra.mxu0 0.0
        %2236 = vmatprep.subr.mxu0 0.0
        %2237 = vmatpush1.xpose.msra.mxu0 0.0
        %2238 = vmatprep.subr.mxu0 0.0
        %2239 = vmatpush1.xpose.msra.mxu0 0.0
        %2240 = vmatprep.subr.mxu0 0.0
        %2241 = vmatpush1.xpose.msra.mxu0 0.0
        %2242 = vmatprep.subr.mxu0 0.0
        %2243 = vmatpush1.xpose.msra.mxu0 0.0
        %2244 = vmatprep.subr.mxu0 0.0
        %2245 = vmatpush1.xpose.msra.mxu0 0.0
        %2246 = vmatprep.subr.mxu0 0.0
        %2247 = vmatpush1.xpose.msra.mxu0 0.0
        %2248 = vmatprep.subr.mxu0 0.0
        %2249 = vmatpush1.xpose.msra.mxu0 0.0
        %2250 = vmatprep.subr.mxu0 0.0
        %2251 = vmatpush1.xpose.msra.mxu0 0.0
        %2252 = vmatprep.subr.mxu0 0.0
        %2253 = vmatpush1.xpose.msra.mxu0 0.0
        %2254 = vmatprep.subr.mxu0 0.0
        %2255 = vmatpush1.xpose.msra.mxu0 %v2222
        %2256 = vmatprep.subr.mxu0 0.0
        %2257 = vmatpush2.xpose.msra.mxu0 0.0
        %2258 = vmatprep.subr.mxu0 0.0
        %2259 = vmatpush2.xpose.msra.mxu0 0.0
        %2260 = vmatprep.subr.mxu0 0.0
        %2261 = vmatpush2.xpose.msra.mxu0 0.0
        %2262 = vmatprep.subr.mxu0 0.0
        %2263 = vmatpush2.xpose.msra.mxu0 0.0
        %2264 = vmatprep.subr.mxu0 0.0
        %2265 = vmatpush2.xpose.msra.mxu0 0.0
        %2266 = vmatprep.subr.mxu0 0.0
        %2267 = vmatpush2.xpose.msra.mxu0 0.0
        %2268 = vmatprep.subr.mxu0 0.0
        %2269 = vmatpush2.xpose.msra.mxu0 0.0
        %2270 = vmatprep.subr.mxu0 0.0
        %2271 = vmatpush2.xpose.msra.mxu0 0.0
        %2272 = vmatprep.subr.mxu0 0.0
        %2273 = vmatpush2.xpose.msra.mxu0 0.0
        %2274 = vmatprep.subr.mxu0 0.0
        %2275 = vmatpush2.xpose.msra.mxu0 0.0
        %2276 = vmatprep.subr.mxu0 0.0
        %2277 = vmatpush2.xpose.msra.mxu0 0.0
        %2278 = vmatprep.subr.mxu0 0.0
        %2279 = vmatpush2.xpose.msra.mxu0 0.0
        %2280 = vmatprep.subr.mxu0 0.0
        %2281 = vmatpush2.xpose.msra.mxu0 0.0
        %2282 = vmatprep.subr.mxu0 0.0
        %2283 = vmatpush2.xpose.msra.mxu0 0.0
        %2284 = vmatprep.subr.mxu0 0.0
        %2285 = vmatpush2.xpose.msra.mxu0 0.0
        %2286 = vmatprep.subr.mxu0 0.0
        %2287 = vmatpush2.xpose.msra.mxu0 0.0
        %2288 = vmatprep.mubr.f32.mxu0 0.0
        %2289 = vmatmul.mubr.f32.gmra.mxu0 %v2219
        %v2290 = vpop.f32.mrf.mxu0
        %v2291 = vadd.f32 0.0, %v2290
        %v2292 = vpop.f32.mrf.mxu0
        %2293 = vdwg.mxu0
        %v2295 = vsel %vm2065, %v1975, 0
        %v2298 = vsel %vm2065, %v2060, 0
        %2300 = vmatprep.subr.mxu0 0.0
        %2301 = vmatpush1.xpose.msra.mxu0 0.0
        %2302 = vmatprep.subr.mxu0 0.0
        %2303 = vmatpush1.xpose.msra.mxu0 0.0
        %2304 = vmatprep.subr.mxu0 0.0
        %2305 = vmatpush1.xpose.msra.mxu0 0.0
        %2306 = vmatprep.subr.mxu0 0.0
        %2307 = vmatpush1.xpose.msra.mxu0 0.0
        %2308 = vmatprep.subr.mxu0 0.0
        %2309 = vmatpush1.xpose.msra.mxu0 0.0
        %2310 = vmatprep.subr.mxu0 0.0
        %2311 = vmatpush1.xpose.msra.mxu0 0.0
        %2312 = vmatprep.subr.mxu0 0.0
        %2313 = vmatpush1.xpose.msra.mxu0 0.0
        %2314 = vmatprep.subr.mxu0 0.0
        %2315 = vmatpush1.xpose.msra.mxu0 0.0
        %2316 = vmatprep.subr.mxu0 0.0
        %2317 = vmatpush1.xpose.msra.mxu0 0.0
        %2318 = vmatprep.subr.mxu0 0.0
        %2319 = vmatpush1.xpose.msra.mxu0 0.0
        %2320 = vmatprep.subr.mxu0 0.0
        %2321 = vmatpush1.xpose.msra.mxu0 0.0
        %2322 = vmatprep.subr.mxu0 0.0
        %2323 = vmatpush1.xpose.msra.mxu0 0.0
        %2324 = vmatprep.subr.mxu0 0.0
        %2325 = vmatpush1.xpose.msra.mxu0 0.0
        %2326 = vmatprep.subr.mxu0 0.0
        %2327 = vmatpush1.xpose.msra.mxu0 0.0
        %2328 = vmatprep.subr.mxu0 0.0
        %2329 = vmatpush1.xpose.msra.mxu0 0.0
        %2330 = vmatprep.subr.mxu0 0.0
        %2331 = vmatpush1.xpose.msra.mxu0 %v2298
        %2332 = vmatprep.subr.mxu0 0.0
        %2333 = vmatpush2.xpose.msra.mxu0 0.0
        %2334 = vmatprep.subr.mxu0 0.0
        %2335 = vmatpush2.xpose.msra.mxu0 0.0
        %2336 = vmatprep.subr.mxu0 0.0
        %2337 = vmatpush2.xpose.msra.mxu0 0.0
        %2338 = vmatprep.subr.mxu0 0.0
        %2339 = vmatpush2.xpose.msra.mxu0 0.0
        %2340 = vmatprep.subr.mxu0 0.0
        %2341 = vmatpush2.xpose.msra.mxu0 0.0
        %2342 = vmatprep.subr.mxu0 0.0
        %2343 = vmatpush2.xpose.msra.mxu0 0.0
        %2344 = vmatprep.subr.mxu0 0.0
        %2345 = vmatpush2.xpose.msra.mxu0 0.0
        %2346 = vmatprep.subr.mxu0 0.0
        %2347 = vmatpush2.xpose.msra.mxu0 0.0
        %2348 = vmatprep.subr.mxu0 0.0
        %2349 = vmatpush2.xpose.msra.mxu0 0.0
        %2350 = vmatprep.subr.mxu0 0.0
        %2351 = vmatpush2.xpose.msra.mxu0 0.0
        %2352 = vmatprep.subr.mxu0 0.0
        %2353 = vmatpush2.xpose.msra.mxu0 0.0
        %2354 = vmatprep.subr.mxu0 0.0
        %2355 = vmatpush2.xpose.msra.mxu0 0.0
        %2356 = vmatprep.subr.mxu0 0.0
        %2357 = vmatpush2.xpose.msra.mxu0 0.0
        %2358 = vmatprep.subr.mxu0 0.0
        %2359 = vmatpush2.xpose.msra.mxu0 0.0
        %2360 = vmatprep.subr.mxu0 0.0
        %2361 = vmatpush2.xpose.msra.mxu0 0.0
        %2362 = vmatprep.subr.mxu0 0.0
        %2363 = vmatpush2.xpose.msra.mxu0 0.0
        %2364 = vmatprep.mubr.f32.mxu0 0.0
        %2365 = vmatmul.mubr.f32.gmra.mxu0 %v2295
        %v2366 = vpop.f32.mrf.mxu0
        %v2367 = vadd.f32 0.0, %v2366
        %v2368 = vpop.f32.mrf.mxu0
        %2369 = vdwg.mxu0
        %v2370 = vmul.f32 %v2139, 0.35355338
        %v2371 = vmul.f32 %v2215, 0.35355338
        %v2372 = vmul.f32 %v2291, 0.35355338
        %v2373 = vmul.f32 %v2367, 0.35355338
        %v2375 = vlaneseq
        %v2376 = vshrl.u32 %v2375, 7
        %v2377 = vsub.s32 0, %v2376
        %v2378 = vrot.slane %v2048, %v2377
        %v2380 = vadd.f32 %v2370, %v2378
        %v2381 = vadd.f32 %v2371, %v2378
        %v2382 = vadd.f32 %v2372, %v2378
        %v2383 = vadd.f32 %v2373, %v2378
        %v2384 = vsel %vm2065, %v2380, -inf
        %2385 = vmax.xlane.f32.xlu0 %v2384
        %v2386 = vpop.xlane.xlu0 %2385
        %v2387 = vsel %vm2065, %v2381, -inf
        %2388 = vmax.xlane.f32.xlu0 %v2387
        %v2389 = vpop.xlane.xlu0 %2388
        %v2390 = vsel %vm2065, %v2382, -inf
        %2391 = vmax.xlane.f32.xlu0 %v2390
        %v2392 = vpop.xlane.xlu0 %2391
        %v2393 = vsel %vm2065, %v2383, -inf
        %2394 = vmax.xlane.f32.xlu0 %v2393
        %v2395 = vpop.xlane.xlu0 %2394
        %v2396 = vsub.f32 %v2380, %v2386
        %v2397 = vsub.f32 %v2381, %v2389
        %v2398 = vsub.f32 %v2382, %v2392
        %v2399 = vsub.f32 %v2383, %v2395
        %v2400 = vmul.f32 %v2396, 1.442695
        %v2401 = vpow.pop %v2400
        %v2402 = vmul.f32 %v2397, 1.442695
        %v2403 = vpow.pop %v2402
        %v2404 = vmul.f32 %v2398, 1.442695
        %v2405 = vpow.pop %v2404
        %v2406 = vmul.f32 %v2399, 1.442695
        %v2407 = vpow.pop %v2406
        %v2408 = vsel %vm2065, %v2401, 0.0
        %2409 = vadd.xlane.f32.xlu0 %v2408
        %v2410 = vpop.xlane.xlu0 %2409
        %v2411 = vsel %vm2065, %v2403, 0.0
        %2412 = vadd.xlane.f32.xlu0 %v2411
        %v2413 = vpop.xlane.xlu0 %2412
        %v2414 = vsel %vm2065, %v2405, 0.0
        %2415 = vadd.xlane.f32.xlu0 %v2414
        %v2416 = vpop.xlane.xlu0 %2415
        %v2417 = vsel %vm2065, %v2407, 0.0
        %2418 = vadd.xlane.f32.xlu0 %v2417
        %v2419 = vpop.xlane.xlu0 %2418
        %v2420 = vrcp.pop %v2410
        %v2421 = vrcp.pop %v2413
        %v2422 = vrcp.pop %v2416
        %v2423 = vrcp.pop %v2419
        %v2424 = vmul.f32 %v2401, %v2420
        %v2425 = vmul.f32 %v2403, %v2421
        %v2426 = vmul.f32 %v2405, %v2422
        %v2427 = vmul.f32 %v2407, %v2423
        %v2429 = vsel %vm2065, %v2424, 0
        %2431 = vmatprep.subr.mxu0 0.0
        %2432 = vmatpush1.msra.mxu0 0.0
        %2433 = vmatprep.subr.mxu0 0.0
        %2434 = vmatpush1.msra.mxu0 0.0
        %2435 = vmatprep.subr.mxu0 0.0
        %2436 = vmatpush1.msra.mxu0 0.0
        %2437 = vmatprep.subr.mxu0 0.0
        %2438 = vmatpush1.msra.mxu0 0.0
        %2439 = vmatprep.subr.mxu0 0.0
        %2440 = vmatpush1.msra.mxu0 0.0
        %2441 = vmatprep.subr.mxu0 0.0
        %2442 = vmatpush1.msra.mxu0 0.0
        %2443 = vmatprep.subr.mxu0 0.0
        %2444 = vmatpush1.msra.mxu0 0.0
        %2445 = vmatprep.subr.mxu0 0.0
        %2446 = vmatpush1.msra.mxu0 0.0
        %2447 = vmatprep.subr.mxu0 0.0
        %2448 = vmatpush1.msra.mxu0 0.0
        %2449 = vmatprep.subr.mxu0 0.0
        %2450 = vmatpush1.msra.mxu0 0.0
        %2451 = vmatprep.subr.mxu0 0.0
        %2452 = vmatpush1.msra.mxu0 0.0
        %2453 = vmatprep.subr.mxu0 0.0
        %2454 = vmatpush1.msra.mxu0 0.0
        %2455 = vmatprep.subr.mxu0 0.0
        %2456 = vmatpush1.msra.mxu0 0.0
        %2457 = vmatprep.subr.mxu0 0.0
        %2458 = vmatpush1.msra.mxu0 0.0
        %2459 = vmatprep.subr.mxu0 0.0
        %2460 = vmatpush1.msra.mxu0 0.0
        %2461 = vmatprep.subr.mxu0 0.0
        %2462 = vmatpush1.msra.mxu0 %v2061
        %2463 = vmatprep.subr.mxu0 0.0
        %2464 = vmatpush2.msra.mxu0 0.0
        %2465 = vmatprep.subr.mxu0 0.0
        %2466 = vmatpush2.msra.mxu0 0.0
        %2467 = vmatprep.subr.mxu0 0.0
        %2468 = vmatpush2.msra.mxu0 0.0
        %2469 = vmatprep.subr.mxu0 0.0
        %2470 = vmatpush2.msra.mxu0 0.0
        %2471 = vmatprep.subr.mxu0 0.0
        %2472 = vmatpush2.msra.mxu0 0.0
        %2473 = vmatprep.subr.mxu0 0.0
        %2474 = vmatpush2.msra.mxu0 0.0
        %2475 = vmatprep.subr.mxu0 0.0
        %2476 = vmatpush2.msra.mxu0 0.0
        %2477 = vmatprep.subr.mxu0 0.0
        %2478 = vmatpush2.msra.mxu0 0.0
        %2479 = vmatprep.subr.mxu0 0.0
        %2480 = vmatpush2.msra.mxu0 0.0
        %2481 = vmatprep.subr.mxu0 0.0
        %2482 = vmatpush2.msra.mxu0 0.0
        %2483 = vmatprep.subr.mxu0 0.0
        %2484 = vmatpush2.msra.mxu0 0.0
        %2485 = vmatprep.subr.mxu0 0.0
        %2486 = vmatpush2.msra.mxu0 0.0
        %2487 = vmatprep.subr.mxu0 0.0
        %2488 = vmatpush2.msra.mxu0 0.0
        %2489 = vmatprep.subr.mxu0 0.0
        %2490 = vmatpush2.msra.mxu0 0.0
        %2491 = vmatprep.subr.mxu0 0.0
        %2492 = vmatpush2.msra.mxu0 0.0
        %2493 = vmatprep.subr.mxu0 0.0
        %2494 = vmatpush2.msra.mxu0 0.0
        %2495 = vmatprep.mubr.f32.mxu0 0.0
        %2496 = vmatmul.mubr.f32.gmra.mxu0 %v2429
        %v2497 = vpop.f32.mrf.mxu0
        %v2498 = vadd.f32 0.0, %v2497
        %v2499 = vpop.f32.mrf.mxu0
        %2500 = vdwg.mxu0
        %v2502 = vsel %vm2065, %v2425, 0
        %2504 = vmatprep.subr.mxu0 0.0
        %2505 = vmatpush1.msra.mxu0 0.0
        %2506 = vmatprep.subr.mxu0 0.0
        %2507 = vmatpush1.msra.mxu0 0.0
        %2508 = vmatprep.subr.mxu0 0.0
        %2509 = vmatpush1.msra.mxu0 0.0
        %2510 = vmatprep.subr.mxu0 0.0
        %2511 = vmatpush1.msra.mxu0 0.0
        %2512 = vmatprep.subr.mxu0 0.0
        %2513 = vmatpush1.msra.mxu0 0.0
        %2514 = vmatprep.subr.mxu0 0.0
        %2515 = vmatpush1.msra.mxu0 0.0
        %2516 = vmatprep.subr.mxu0 0.0
        %2517 = vmatpush1.msra.mxu0 0.0
        %2518 = vmatprep.subr.mxu0 0.0
        %2519 = vmatpush1.msra.mxu0 0.0
        %2520 = vmatprep.subr.mxu0 0.0
        %2521 = vmatpush1.msra.mxu0 0.0
        %2522 = vmatprep.subr.mxu0 0.0
        %2523 = vmatpush1.msra.mxu0 0.0
        %2524 = vmatprep.subr.mxu0 0.0
        %2525 = vmatpush1.msra.mxu0 0.0
        %2526 = vmatprep.subr.mxu0 0.0
        %2527 = vmatpush1.msra.mxu0 0.0
        %2528 = vmatprep.subr.mxu0 0.0
        %2529 = vmatpush1.msra.mxu0 0.0
        %2530 = vmatprep.subr.mxu0 0.0
        %2531 = vmatpush1.msra.mxu0 0.0
        %2532 = vmatprep.subr.mxu0 0.0
        %2533 = vmatpush1.msra.mxu0 0.0
        %2534 = vmatprep.subr.mxu0 0.0
        %2535 = vmatpush1.msra.mxu0 %v2062
        %2536 = vmatprep.subr.mxu0 0.0
        %2537 = vmatpush2.msra.mxu0 0.0
        %2538 = vmatprep.subr.mxu0 0.0
        %2539 = vmatpush2.msra.mxu0 0.0
        %2540 = vmatprep.subr.mxu0 0.0
        %2541 = vmatpush2.msra.mxu0 0.0
        %2542 = vmatprep.subr.mxu0 0.0
        %2543 = vmatpush2.msra.mxu0 0.0
        %2544 = vmatprep.subr.mxu0 0.0
        %2545 = vmatpush2.msra.mxu0 0.0
        %2546 = vmatprep.subr.mxu0 0.0
        %2547 = vmatpush2.msra.mxu0 0.0
        %2548 = vmatprep.subr.mxu0 0.0
        %2549 = vmatpush2.msra.mxu0 0.0
        %2550 = vmatprep.subr.mxu0 0.0
        %2551 = vmatpush2.msra.mxu0 0.0
        %2552 = vmatprep.subr.mxu0 0.0
        %2553 = vmatpush2.msra.mxu0 0.0
        %2554 = vmatprep.subr.mxu0 0.0
        %2555 = vmatpush2.msra.mxu0 0.0
        %2556 = vmatprep.subr.mxu0 0.0
        %2557 = vmatpush2.msra.mxu0 0.0
        %2558 = vmatprep.subr.mxu0 0.0
        %2559 = vmatpush2.msra.mxu0 0.0
        %2560 = vmatprep.subr.mxu0 0.0
        %2561 = vmatpush2.msra.mxu0 0.0
        %2562 = vmatprep.subr.mxu0 0.0
        %2563 = vmatpush2.msra.mxu0 0.0
        %2564 = vmatprep.subr.mxu0 0.0
        %2565 = vmatpush2.msra.mxu0 0.0
        %2566 = vmatprep.subr.mxu0 0.0
        %2567 = vmatpush2.msra.mxu0 0.0
        %2568 = vmatprep.mubr.f32.mxu0 0.0
        %2569 = vmatmul.mubr.f32.gmra.mxu0 %v2502
        %v2570 = vpop.f32.mrf.mxu0
        %v2571 = vadd.f32 0.0, %v2570
        %v2572 = vpop.f32.mrf.mxu0
        %2573 = vdwg.mxu0
        %v2575 = vsel %vm2065, %v2426, 0
        %2577 = vmatprep.subr.mxu0 0.0
        %2578 = vmatpush1.msra.mxu0 0.0
        %2579 = vmatprep.subr.mxu0 0.0
        %2580 = vmatpush1.msra.mxu0 0.0
        %2581 = vmatprep.subr.mxu0 0.0
        %2582 = vmatpush1.msra.mxu0 0.0
        %2583 = vmatprep.subr.mxu0 0.0
        %2584 = vmatpush1.msra.mxu0 0.0
        %2585 = vmatprep.subr.mxu0 0.0
        %2586 = vmatpush1.msra.mxu0 0.0
        %2587 = vmatprep.subr.mxu0 0.0
        %2588 = vmatpush1.msra.mxu0 0.0
        %2589 = vmatprep.subr.mxu0 0.0
        %2590 = vmatpush1.msra.mxu0 0.0
        %2591 = vmatprep.subr.mxu0 0.0
        %2592 = vmatpush1.msra.mxu0 0.0
        %2593 = vmatprep.subr.mxu0 0.0
        %2594 = vmatpush1.msra.mxu0 0.0
        %2595 = vmatprep.subr.mxu0 0.0
        %2596 = vmatpush1.msra.mxu0 0.0
        %2597 = vmatprep.subr.mxu0 0.0
        %2598 = vmatpush1.msra.mxu0 0.0
        %2599 = vmatprep.subr.mxu0 0.0
        %2600 = vmatpush1.msra.mxu0 0.0
        %2601 = vmatprep.subr.mxu0 0.0
        %2602 = vmatpush1.msra.mxu0 0.0
        %2603 = vmatprep.subr.mxu0 0.0
        %2604 = vmatpush1.msra.mxu0 0.0
        %2605 = vmatprep.subr.mxu0 0.0
        %2606 = vmatpush1.msra.mxu0 0.0
        %2607 = vmatprep.subr.mxu0 0.0
        %2608 = vmatpush1.msra.mxu0 %v2063
        %2609 = vmatprep.subr.mxu0 0.0
        %2610 = vmatpush2.msra.mxu0 0.0
        %2611 = vmatprep.subr.mxu0 0.0
        %2612 = vmatpush2.msra.mxu0 0.0
        %2613 = vmatprep.subr.mxu0 0.0
        %2614 = vmatpush2.msra.mxu0 0.0
        %2615 = vmatprep.subr.mxu0 0.0
        %2616 = vmatpush2.msra.mxu0 0.0
        %2617 = vmatprep.subr.mxu0 0.0
        %2618 = vmatpush2.msra.mxu0 0.0
        %2619 = vmatprep.subr.mxu0 0.0
        %2620 = vmatpush2.msra.mxu0 0.0
        %2621 = vmatprep.subr.mxu0 0.0
        %2622 = vmatpush2.msra.mxu0 0.0
        %2623 = vmatprep.subr.mxu0 0.0
        %2624 = vmatpush2.msra.mxu0 0.0
        %2625 = vmatprep.subr.mxu0 0.0
        %2626 = vmatpush2.msra.mxu0 0.0
        %2627 = vmatprep.subr.mxu0 0.0
        %2628 = vmatpush2.msra.mxu0 0.0
        %2629 = vmatprep.subr.mxu0 0.0
        %2630 = vmatpush2.msra.mxu0 0.0
        %2631 = vmatprep.subr.mxu0 0.0
        %2632 = vmatpush2.msra.mxu0 0.0
        %2633 = vmatprep.subr.mxu0 0.0
        %2634 = vmatpush2.msra.mxu0 0.0
        %2635 = vmatprep.subr.mxu0 0.0
        %2636 = vmatpush2.msra.mxu0 0.0
        %2637 = vmatprep.subr.mxu0 0.0
        %2638 = vmatpush2.msra.mxu0 0.0
        %2639 = vmatprep.subr.mxu0 0.0
        %2640 = vmatpush2.msra.mxu0 0.0
        %2641 = vmatprep.mubr.f32.mxu0 0.0
        %2642 = vmatmul.mubr.f32.gmra.mxu0 %v2575
        %v2643 = vpop.f32.mrf.mxu0
        %v2644 = vadd.f32 0.0, %v2643
        %v2645 = vpop.f32.mrf.mxu0
        %2646 = vdwg.mxu0
        %v2648 = vsel %vm2065, %v2427, 0
        %2650 = vmatprep.subr.mxu0 0.0
        %2651 = vmatpush1.msra.mxu0 0.0
        %2652 = vmatprep.subr.mxu0 0.0
        %2653 = vmatpush1.msra.mxu0 0.0
        %2654 = vmatprep.subr.mxu0 0.0
        %2655 = vmatpush1.msra.mxu0 0.0
        %2656 = vmatprep.subr.mxu0 0.0
        %2657 = vmatpush1.msra.mxu0 0.0
        %2658 = vmatprep.subr.mxu0 0.0
        %2659 = vmatpush1.msra.mxu0 0.0
        %2660 = vmatprep.subr.mxu0 0.0
        %2661 = vmatpush1.msra.mxu0 0.0
        %2662 = vmatprep.subr.mxu0 0.0
        %2663 = vmatpush1.msra.mxu0 0.0
        %2664 = vmatprep.subr.mxu0 0.0
        %2665 = vmatpush1.msra.mxu0 0.0
        %2666 = vmatprep.subr.mxu0 0.0
        %2667 = vmatpush1.msra.mxu0 0.0
        %2668 = vmatprep.subr.mxu0 0.0
        %2669 = vmatpush1.msra.mxu0 0.0
        %2670 = vmatprep.subr.mxu0 0.0
        %2671 = vmatpush1.msra.mxu0 0.0
        %2672 = vmatprep.subr.mxu0 0.0
        %2673 = vmatpush1.msra.mxu0 0.0
        %2674 = vmatprep.subr.mxu0 0.0
        %2675 = vmatpush1.msra.mxu0 0.0
        %2676 = vmatprep.subr.mxu0 0.0
        %2677 = vmatpush1.msra.mxu0 0.0
        %2678 = vmatprep.subr.mxu0 0.0
        %2679 = vmatpush1.msra.mxu0 0.0
        %2680 = vmatprep.subr.mxu0 0.0
        %2681 = vmatpush1.msra.mxu0 %v2064
        %2682 = vmatprep.subr.mxu0 0.0
        %2683 = vmatpush2.msra.mxu0 0.0
        %2684 = vmatprep.subr.mxu0 0.0
        %2685 = vmatpush2.msra.mxu0 0.0
        %2686 = vmatprep.subr.mxu0 0.0
        %2687 = vmatpush2.msra.mxu0 0.0
        %2688 = vmatprep.subr.mxu0 0.0
        %2689 = vmatpush2.msra.mxu0 0.0
        %2690 = vmatprep.subr.mxu0 0.0
        %2691 = vmatpush2.msra.mxu0 0.0
        %2692 = vmatprep.subr.mxu0 0.0
        %2693 = vmatpush2.msra.mxu0 0.0
        %2694 = vmatprep.subr.mxu0 0.0
        %2695 = vmatpush2.msra.mxu0 0.0
        %2696 = vmatprep.subr.mxu0 0.0
        %2697 = vmatpush2.msra.mxu0 0.0
        %2698 = vmatprep.subr.mxu0 0.0
        %2699 = vmatpush2.msra.mxu0 0.0
        %2700 = vmatprep.subr.mxu0 0.0
        %2701 = vmatpush2.msra.mxu0 0.0
        %2702 = vmatprep.subr.mxu0 0.0
        %2703 = vmatpush2.msra.mxu0 0.0
        %2704 = vmatprep.subr.mxu0 0.0
        %2705 = vmatpush2.msra.mxu0 0.0
        %2706 = vmatprep.subr.mxu0 0.0
        %2707 = vmatpush2.msra.mxu0 0.0
        %2708 = vmatprep.subr.mxu0 0.0
        %2709 = vmatpush2.msra.mxu0 0.0
        %2710 = vmatprep.subr.mxu0 0.0
        %2711 = vmatpush2.msra.mxu0 0.0
        %2712 = vmatprep.subr.mxu0 0.0
        %2713 = vmatpush2.msra.mxu0 0.0
        %2714 = vmatprep.mubr.f32.mxu0 0.0
        %2715 = vmatmul.mubr.f32.gmra.mxu0 %v2648
        %v2716 = vpop.f32.mrf.mxu0
        %v2717 = vadd.f32 0.0, %v2716
        %v2718 = vpop.f32.mrf.mxu0
        %2719 = vdwg.mxu0
        %v2720 = vcombine.low %v2498, %v2644
        %v2721 = vcombine.high %v2498, %v2644
        %v2723 = vunpack.c.l.s4 1983009808
        %v2724 = vunpack.c.0.s8 %v2723
        %v2725 = vlaneseq
        %v2726 = vshrl.u32 %v2725, 7
        %v2727 = vsub.s32 %v2724, %v2726
        %v2728 = vrot.slane %v2720, %v2727
        %v2730 = vunpack.c.l.s4 1983009808
        %v2731 = vunpack.c.0.s8 %v2730
        %v2732 = vlaneseq
        %v2733 = vshrl.u32 %v2732, 7
        %v2734 = vsub.s32 %v2731, %v2733
        %v2735 = vrot.slane %v2721, %v2734
        %v2736 = vcombine.low %v2571, %v2717
        %v2737 = vcombine.high %v2571, %v2717
        %v2739 = vunpack.c.l.s4 1983009808
        %v2740 = vunpack.c.0.s8 %v2739
        %v2741 = vlaneseq
        %v2742 = vshrl.u32 %v2741, 7
        %v2743 = vsub.s32 %v2740, %v2742
        %v2744 = vrot.slane %v2736, %v2743
        %v2746 = vunpack.c.l.s4 1983009808
        %v2747 = vunpack.c.0.s8 %v2746
        %v2748 = vlaneseq
        %v2749 = vshrl.u32 %v2748, 7
        %v2750 = vsub.s32 %v2747, %v2749
        %v2751 = vrot.slane %v2737, %v2750
        %v2752 = vcombine.low %v2728, %v2744
        %v2753 = vcombine.high %v2728, %v2744
        %v2755 = vunpack.c.l.s4 1934713408
        %v2756 = vunpack.c.0.s8 %v2755
        %v2757 = vlaneseq
        %v2758 = vshrl.u32 %v2757, 7
        %v2759 = vsub.s32 %v2756, %v2758
        %v2760 = vrot.slane %v2752, %v2759
        %v2762 = vunpack.c.l.s4 1934713408
        %v2763 = vunpack.c.0.s8 %v2762
        %v2764 = vlaneseq
        %v2765 = vshrl.u32 %v2764, 7
        %v2766 = vsub.s32 %v2763, %v2765
        %v2767 = vrot.slane %v2753, %v2766
        %v2768 = vcombine.low %v2735, %v2751
        %v2769 = vcombine.high %v2735, %v2751
        %v2771 = vunpack.c.l.s4 1934713408
        %v2772 = vunpack.c.0.s8 %v2771
        %v2773 = vlaneseq
        %v2774 = vshrl.u32 %v2773, 7
        %v2775 = vsub.s32 %v2772, %v2774
        %v2776 = vrot.slane %v2768, %v2775
        %v2778 = vunpack.c.l.s4 1934713408
        %v2779 = vunpack.c.0.s8 %v2778
        %v2780 = vlaneseq
        %v2781 = vshrl.u32 %v2780, 7
        %v2782 = vsub.s32 %v2779, %v2781
        %v2783 = vrot.slane %v2769, %v2782
        %v2784 = vcombine.high %v2760, 0.0
        %v2785 = vcombine.high %v2767, 0.0
        %v2786 = vcombine.high %v2776, 0.0
        %v2787 = vcombine.high %v2783, 0.0
        %v2788 = vcombine.low %v2760, %v2767
        %v2790 = vunpack.c.l.s4 1983009808
        %v2791 = vunpack.c.0.s8 %v2790
        %v2792 = vlaneseq
        %v2793 = vshrl.u32 %v2792, 7
        %v2794 = vsub.s32 %v2791, %v2793
        %v2795 = vrot.slane %v2788, %v2794
        %v2796 = vcombine.low %v2784, %v2785
        %v2798 = vunpack.c.l.s4 1983009808
        %v2799 = vunpack.c.0.s8 %v2798
        %v2800 = vlaneseq
        %v2801 = vshrl.u32 %v2800, 7
        %v2802 = vsub.s32 %v2799, %v2801
        %v2803 = vrot.slane %v2796, %v2802
        %v2804 = vcombine.low %v2776, %v2783
        %v2806 = vunpack.c.l.s4 1983009808
        %v2807 = vunpack.c.0.s8 %v2806
        %v2808 = vlaneseq
        %v2809 = vshrl.u32 %v2808, 7
        %v2810 = vsub.s32 %v2807, %v2809
        %v2811 = vrot.slane %v2804, %v2810
        %v2812 = vcombine.low %v2786, %v2787
        %v2814 = vunpack.c.l.s4 1983009808
        %v2815 = vunpack.c.0.s8 %v2814
        %v2816 = vlaneseq
        %v2817 = vshrl.u32 %v2816, 7
        %v2818 = vsub.s32 %v2815, %v2817
        %v2819 = vrot.slane %v2812, %v2818
        %v2820 = vcombine.low %v2795, %v2803
        %v2821 = vcombine.high %v2795, %v2803
        %v2823 = vunpack.c.l.s4 1934713408
        %v2824 = vunpack.c.0.s8 %v2823
        %v2825 = vlaneseq
        %v2826 = vshrl.u32 %v2825, 7
        %v2827 = vsub.s32 %v2824, %v2826
        %v2828 = vrot.slane %v2820, %v2827
        %v2830 = vunpack.c.l.s4 1934713408
        %v2831 = vunpack.c.0.s8 %v2830
        %v2832 = vlaneseq
        %v2833 = vshrl.u32 %v2832, 7
        %v2834 = vsub.s32 %v2831, %v2833
        %v2835 = vrot.slane %v2821, %v2834
        %v2836 = vcombine.low %v2811, %v2819
        %v2837 = vcombine.high %v2811, %v2819
        %v2839 = vunpack.c.l.s4 1934713408
        %v2840 = vunpack.c.0.s8 %v2839
        %v2841 = vlaneseq
        %v2842 = vshrl.u32 %v2841, 7
        %v2843 = vsub.s32 %v2840, %v2842
        %v2844 = vrot.slane %v2836, %v2843
        %v2846 = vunpack.c.l.s4 1934713408
        %v2847 = vunpack.c.0.s8 %v2846
        %v2848 = vlaneseq
        %v2849 = vshrl.u32 %v2848, 7
        %v2850 = vsub.s32 %v2847, %v2849
        %v2851 = vrot.slane %v2837, %v2850
        %v2852 = vcombine.low %v2828, %v2844
        %v2853 = vcombine.high %v2828, %v2844
        %v2854 = vcombine.low %v2835, %v2851
        %v2855 = vcombine.high %v2835, %v2851
        %2857 = vrot.lane.b32.xlu0 %v2853, 8
        %v2858 = vpop.permute.xlu0 %2857
        %2861 = vrot.lane.b32.xlu0 %v2854, 16
        %v2862 = vpop.permute.xlu0 %2861
        %2865 = vrot.lane.b32.xlu0 %v2855, 24
        %v2866 = vpop.permute.xlu0 %2865
        %v2868 = vsel %vm2065, %v2852, %v2858
        %vm2869 = vcmask 130048
        %v2870 = vsel %vm2869, %v2868, %v2862
        %vm2871 = vcmask 195584
        %v2872 = vsel %vm2871, %v2870, %v2866
        %v2873 = vld [vmem:[#allocation12] sm:$0xff]
        %v2874 = vld [vmem:[#allocation12 + $0x8] sm:$0xff]
        %v2875 = vld [vmem:[#allocation12 + $0x10] sm:$0xff]
        %v2876 = vld [vmem:[#allocation12 + $0x18] sm:$0xff]
        %vm2877 = vcmask 261120
        %v2879 = vsel %vm2877, %v2872, 0
        %2881 = vmatprep.subr.mxu0 0.0
        %2882 = vmatpush1.msra.mxu0 0.0
        %2883 = vmatprep.subr.mxu0 0.0
        %2884 = vmatpush1.msra.mxu0 0.0
        %2885 = vmatprep.subr.mxu0 0.0
        %2886 = vmatpush1.msra.mxu0 0.0
        %2887 = vmatprep.subr.mxu0 0.0
        %2888 = vmatpush1.msra.mxu0 0.0
        %2889 = vmatprep.subr.mxu0 0.0
        %2890 = vmatpush1.msra.mxu0 0.0
        %2891 = vmatprep.subr.mxu0 0.0
        %2892 = vmatpush1.msra.mxu0 0.0
        %2893 = vmatprep.subr.mxu0 0.0
        %2894 = vmatpush1.msra.mxu0 0.0
        %2895 = vmatprep.subr.mxu0 0.0
        %2896 = vmatpush1.msra.mxu0 0.0
        %2897 = vmatprep.subr.mxu0 0.0
        %2898 = vmatpush1.msra.mxu0 0.0
        %2899 = vmatprep.subr.mxu0 0.0
        %2900 = vmatpush1.msra.mxu0 0.0
        %2901 = vmatprep.subr.mxu0 0.0
        %2902 = vmatpush1.msra.mxu0 0.0
        %2903 = vmatprep.subr.mxu0 0.0
        %2904 = vmatpush1.msra.mxu0 0.0
        %2905 = vmatprep.subr.mxu0 0.0
        %2906 = vmatpush1.msra.mxu0 %v2876
        %2907 = vmatprep.subr.mxu0 0.0
        %2908 = vmatpush1.msra.mxu0 %v2875
        %2909 = vmatprep.subr.mxu0 0.0
        %2910 = vmatpush1.msra.mxu0 %v2874
        %2911 = vmatprep.subr.mxu0 0.0
        %2912 = vmatpush1.msra.mxu0 %v2873
        %2913 = vmatprep.subr.mxu0 0.0
        %2914 = vmatpush2.msra.mxu0 0.0
        %2915 = vmatprep.subr.mxu0 0.0
        %2916 = vmatpush2.msra.mxu0 0.0
        %2917 = vmatprep.subr.mxu0 0.0
        %2918 = vmatpush2.msra.mxu0 0.0
        %2919 = vmatprep.subr.mxu0 0.0
        %2920 = vmatpush2.msra.mxu0 0.0
        %2921 = vmatprep.subr.mxu0 0.0
        %2922 = vmatpush2.msra.mxu0 0.0
        %2923 = vmatprep.subr.mxu0 0.0
        %2924 = vmatpush2.msra.mxu0 0.0
        %2925 = vmatprep.subr.mxu0 0.0
        %2926 = vmatpush2.msra.mxu0 0.0
        %2927 = vmatprep.subr.mxu0 0.0
        %2928 = vmatpush2.msra.mxu0 0.0
        %2929 = vmatprep.subr.mxu0 0.0
        %2930 = vmatpush2.msra.mxu0 0.0
        %2931 = vmatprep.subr.mxu0 0.0
        %2932 = vmatpush2.msra.mxu0 0.0
        %2933 = vmatprep.subr.mxu0 0.0
        %2934 = vmatpush2.msra.mxu0 0.0
        %2935 = vmatprep.subr.mxu0 0.0
        %2936 = vmatpush2.msra.mxu0 0.0
        %2937 = vmatprep.subr.mxu0 0.0
        %2938 = vmatpush2.msra.mxu0 0.0
        %2939 = vmatprep.subr.mxu0 0.0
        %2940 = vmatpush2.msra.mxu0 0.0
        %2941 = vmatprep.subr.mxu0 0.0
        %2942 = vmatpush2.msra.mxu0 0.0
        %2943 = vmatprep.subr.mxu0 0.0
        %2944 = vmatpush2.msra.mxu0 0.0
        %2945 = vmatprep.mubr.f32.mxu0 0.0
        %2946 = vmatmul.mubr.f32.gmra.mxu0 %v2879
        %v2947 = vpop.f32.mrf.mxu0
        %v2948 = vadd.f32 0.0, %v2947
        %v2949 = vpop.f32.mrf.mxu0
        %2950 = vdwg.mxu0
        %v2951 = vadd.f32 %v2056, %v2948
        %s2952 = scalar_lea.vmem [#allocation2], 32
        %v2953 = vld [vmem:[%s2952] sm:$0xff]
        %v2954 = vld [vmem:[%s2952 + $0x8] sm:$0xff]
        %v2955 = vld [vmem:[%s2952 + $0x10] sm:$0xff]
        %v2956 = vld [vmem:[%s2952 + $0x18] sm:$0xff]
        %s2957 = scalar_lea.vmem [#allocation3], 32
        %v2958 = vld [vmem:[%s2957] sm:$0xff]
        %v2959 = vld [vmem:[%s2957 + $0x8] sm:$0xff]
        %v2960 = vld [vmem:[%s2957 + $0x10] sm:$0xff]
        %v2961 = vld [vmem:[%s2957 + $0x18] sm:$0xff]
        %v2963 = vsel %vm2065, %v1976, 0
        %v2966 = vsel %vm2065, %v2953, 0
        %2968 = vmatprep.subr.mxu0 0.0
        %2969 = vmatpush1.xpose.msra.mxu0 0.0
        %2970 = vmatprep.subr.mxu0 0.0
        %2971 = vmatpush1.xpose.msra.mxu0 0.0
        %2972 = vmatprep.subr.mxu0 0.0
        %2973 = vmatpush1.xpose.msra.mxu0 0.0
        %2974 = vmatprep.subr.mxu0 0.0
        %2975 = vmatpush1.xpose.msra.mxu0 0.0
        %2976 = vmatprep.subr.mxu0 0.0
        %2977 = vmatpush1.xpose.msra.mxu0 0.0
        %2978 = vmatprep.subr.mxu0 0.0
        %2979 = vmatpush1.xpose.msra.mxu0 0.0
        %2980 = vmatprep.subr.mxu0 0.0
        %2981 = vmatpush1.xpose.msra.mxu0 0.0
        %2982 = vmatprep.subr.mxu0 0.0
        %2983 = vmatpush1.xpose.msra.mxu0 0.0
        %2984 = vmatprep.subr.mxu0 0.0
        %2985 = vmatpush1.xpose.msra.mxu0 0.0
        %2986 = vmatprep.subr.mxu0 0.0
        %2987 = vmatpush1.xpose.msra.mxu0 0.0
        %2988 = vmatprep.subr.mxu0 0.0
        %2989 = vmatpush1.xpose.msra.mxu0 0.0
        %2990 = vmatprep.subr.mxu0 0.0
        %2991 = vmatpush1.xpose.msra.mxu0 0.0
        %2992 = vmatprep.subr.mxu0 0.0
        %2993 = vmatpush1.xpose.msra.mxu0 0.0
        %2994 = vmatprep.subr.mxu0 0.0
        %2995 = vmatpush1.xpose.msra.mxu0 0.0
        %2996 = vmatprep.subr.mxu0 0.0
        %2997 = vmatpush1.xpose.msra.mxu0 0.0
        %2998 = vmatprep.subr.mxu0 0.0
        %2999 = vmatpush1.xpose.msra.mxu0 %v2966
        %3000 = vmatprep.subr.mxu0 0.0
        %3001 = vmatpush2.xpose.msra.mxu0 0.0
        %3002 = vmatprep.subr.mxu0 0.0
        %3003 = vmatpush2.xpose.msra.mxu0 0.0
        %3004 = vmatprep.subr.mxu0 0.0
        %3005 = vmatpush2.xpose.msra.mxu0 0.0
        %3006 = vmatprep.subr.mxu0 0.0
        %3007 = vmatpush2.xpose.msra.mxu0 0.0
        %3008 = vmatprep.subr.mxu0 0.0
        %3009 = vmatpush2.xpose.msra.mxu0 0.0
        %3010 = vmatprep.subr.mxu0 0.0
        %3011 = vmatpush2.xpose.msra.mxu0 0.0
        %3012 = vmatprep.subr.mxu0 0.0
        %3013 = vmatpush2.xpose.msra.mxu0 0.0
        %3014 = vmatprep.subr.mxu0 0.0
        %3015 = vmatpush2.xpose.msra.mxu0 0.0
        %3016 = vmatprep.subr.mxu0 0.0
        %3017 = vmatpush2.xpose.msra.mxu0 0.0
        %3018 = vmatprep.subr.mxu0 0.0
        %3019 = vmatpush2.xpose.msra.mxu0 0.0
        %3020 = vmatprep.subr.mxu0 0.0
        %3021 = vmatpush2.xpose.msra.mxu0 0.0
        %3022 = vmatprep.subr.mxu0 0.0
        %3023 = vmatpush2.xpose.msra.mxu0 0.0
        %3024 = vmatprep.subr.mxu0 0.0
        %3025 = vmatpush2.xpose.msra.mxu0 0.0
        %3026 = vmatprep.subr.mxu0 0.0
        %3027 = vmatpush2.xpose.msra.mxu0 0.0
        %3028 = vmatprep.subr.mxu0 0.0
        %3029 = vmatpush2.xpose.msra.mxu0 0.0
        %3030 = vmatprep.subr.mxu0 0.0
        %3031 = vmatpush2.xpose.msra.mxu0 0.0
        %3032 = vmatprep.mubr.f32.mxu0 0.0
        %3033 = vmatmul.mubr.f32.gmra.mxu0 %v2963
        %v3034 = vpop.f32.mrf.mxu0
        %v3035 = vadd.f32 0.0, %v3034
        %v3036 = vpop.f32.mrf.mxu0
        %3037 = vdwg.mxu0
        %v3039 = vsel %vm2065, %v1977, 0
        %v3042 = vsel %vm2065, %v2954, 0
        %3044 = vmatprep.subr.mxu0 0.0
        %3045 = vmatpush1.xpose.msra.mxu0 0.0
        %3046 = vmatprep.subr.mxu0 0.0
        %3047 = vmatpush1.xpose.msra.mxu0 0.0
        %3048 = vmatprep.subr.mxu0 0.0
        %3049 = vmatpush1.xpose.msra.mxu0 0.0
        %3050 = vmatprep.subr.mxu0 0.0
        %3051 = vmatpush1.xpose.msra.mxu0 0.0
        %3052 = vmatprep.subr.mxu0 0.0
        %3053 = vmatpush1.xpose.msra.mxu0 0.0
        %3054 = vmatprep.subr.mxu0 0.0
        %3055 = vmatpush1.xpose.msra.mxu0 0.0
        %3056 = vmatprep.subr.mxu0 0.0
        %3057 = vmatpush1.xpose.msra.mxu0 0.0
        %3058 = vmatprep.subr.mxu0 0.0
        %3059 = vmatpush1.xpose.msra.mxu0 0.0
        %3060 = vmatprep.subr.mxu0 0.0
        %3061 = vmatpush1.xpose.msra.mxu0 0.0
        %3062 = vmatprep.subr.mxu0 0.0
        %3063 = vmatpush1.xpose.msra.mxu0 0.0
        %3064 = vmatprep.subr.mxu0 0.0
        %3065 = vmatpush1.xpose.msra.mxu0 0.0
        %3066 = vmatprep.subr.mxu0 0.0
        %3067 = vmatpush1.xpose.msra.mxu0 0.0
        %3068 = vmatprep.subr.mxu0 0.0
        %3069 = vmatpush1.xpose.msra.mxu0 0.0
        %3070 = vmatprep.subr.mxu0 0.0
        %3071 = vmatpush1.xpose.msra.mxu0 0.0
        %3072 = vmatprep.subr.mxu0 0.0
        %3073 = vmatpush1.xpose.msra.mxu0 0.0
        %3074 = vmatprep.subr.mxu0 0.0
        %3075 = vmatpush1.xpose.msra.mxu0 %v3042
        %3076 = vmatprep.subr.mxu0 0.0
        %3077 = vmatpush2.xpose.msra.mxu0 0.0
        %3078 = vmatprep.subr.mxu0 0.0
        %3079 = vmatpush2.xpose.msra.mxu0 0.0
        %3080 = vmatprep.subr.mxu0 0.0
        %3081 = vmatpush2.xpose.msra.mxu0 0.0
        %3082 = vmatprep.subr.mxu0 0.0
        %3083 = vmatpush2.xpose.msra.mxu0 0.0
        %3084 = vmatprep.subr.mxu0 0.0
        %3085 = vmatpush2.xpose.msra.mxu0 0.0
        %3086 = vmatprep.subr.mxu0 0.0
        %3087 = vmatpush2.xpose.msra.mxu0 0.0
        %3088 = vmatprep.subr.mxu0 0.0
        %3089 = vmatpush2.xpose.msra.mxu0 0.0
        %3090 = vmatprep.subr.mxu0 0.0
        %3091 = vmatpush2.xpose.msra.mxu0 0.0
        %3092 = vmatprep.subr.mxu0 0.0
        %3093 = vmatpush2.xpose.msra.mxu0 0.0
        %3094 = vmatprep.subr.mxu0 0.0
        %3095 = vmatpush2.xpose.msra.mxu0 0.0
        %3096 = vmatprep.subr.mxu0 0.0
        %3097 = vmatpush2.xpose.msra.mxu0 0.0
        %3098 = vmatprep.subr.mxu0 0.0
        %3099 = vmatpush2.xpose.msra.mxu0 0.0
        %3100 = vmatprep.subr.mxu0 0.0
        %3101 = vmatpush2.xpose.msra.mxu0 0.0
        %3102 = vmatprep.subr.mxu0 0.0
        %3103 = vmatpush2.xpose.msra.mxu0 0.0
        %3104 = vmatprep.subr.mxu0 0.0
        %3105 = vmatpush2.xpose.msra.mxu0 0.0
        %3106 = vmatprep.subr.mxu0 0.0
        %3107 = vmatpush2.xpose.msra.mxu0 0.0
        %3108 = vmatprep.mubr.f32.mxu0 0.0
        %3109 = vmatmul.mubr.f32.gmra.mxu0 %v3039
        %v3110 = vpop.f32.mrf.mxu0
        %v3111 = vadd.f32 0.0, %v3110
        %v3112 = vpop.f32.mrf.mxu0
        %3113 = vdwg.mxu0
        %v3115 = vsel %vm2065, %v1978, 0
        %v3118 = vsel %vm2065, %v2955, 0
        %3120 = vmatprep.subr.mxu0 0.0
        %3121 = vmatpush1.xpose.msra.mxu0 0.0
        %3122 = vmatprep.subr.mxu0 0.0
        %3123 = vmatpush1.xpose.msra.mxu0 0.0
        %3124 = vmatprep.subr.mxu0 0.0
        %3125 = vmatpush1.xpose.msra.mxu0 0.0
        %3126 = vmatprep.subr.mxu0 0.0
        %3127 = vmatpush1.xpose.msra.mxu0 0.0
        %3128 = vmatprep.subr.mxu0 0.0
        %3129 = vmatpush1.xpose.msra.mxu0 0.0
        %3130 = vmatprep.subr.mxu0 0.0
        %3131 = vmatpush1.xpose.msra.mxu0 0.0
        %3132 = vmatprep.subr.mxu0 0.0
        %3133 = vmatpush1.xpose.msra.mxu0 0.0
        %3134 = vmatprep.subr.mxu0 0.0
        %3135 = vmatpush1.xpose.msra.mxu0 0.0
        %3136 = vmatprep.subr.mxu0 0.0
        %3137 = vmatpush1.xpose.msra.mxu0 0.0
        %3138 = vmatprep.subr.mxu0 0.0
        %3139 = vmatpush1.xpose.msra.mxu0 0.0
        %3140 = vmatprep.subr.mxu0 0.0
        %3141 = vmatpush1.xpose.msra.mxu0 0.0
        %3142 = vmatprep.subr.mxu0 0.0
        %3143 = vmatpush1.xpose.msra.mxu0 0.0
        %3144 = vmatprep.subr.mxu0 0.0
        %3145 = vmatpush1.xpose.msra.mxu0 0.0
        %3146 = vmatprep.subr.mxu0 0.0
        %3147 = vmatpush1.xpose.msra.mxu0 0.0
        %3148 = vmatprep.subr.mxu0 0.0
        %3149 = vmatpush1.xpose.msra.mxu0 0.0
        %3150 = vmatprep.subr.mxu0 0.0
        %3151 = vmatpush1.xpose.msra.mxu0 %v3118
        %3152 = vmatprep.subr.mxu0 0.0
        %3153 = vmatpush2.xpose.msra.mxu0 0.0
        %3154 = vmatprep.subr.mxu0 0.0
        %3155 = vmatpush2.xpose.msra.mxu0 0.0
        %3156 = vmatprep.subr.mxu0 0.0
        %3157 = vmatpush2.xpose.msra.mxu0 0.0
        %3158 = vmatprep.subr.mxu0 0.0
        %3159 = vmatpush2.xpose.msra.mxu0 0.0
        %3160 = vmatprep.subr.mxu0 0.0
        %3161 = vmatpush2.xpose.msra.mxu0 0.0
        %3162 = vmatprep.subr.mxu0 0.0
        %3163 = vmatpush2.xpose.msra.mxu0 0.0
        %3164 = vmatprep.subr.mxu0 0.0
        %3165 = vmatpush2.xpose.msra.mxu0 0.0
        %3166 = vmatprep.subr.mxu0 0.0
        %3167 = vmatpush2.xpose.msra.mxu0 0.0
        %3168 = vmatprep.subr.mxu0 0.0
        %3169 = vmatpush2.xpose.msra.mxu0 0.0
        %3170 = vmatprep.subr.mxu0 0.0
        %3171 = vmatpush2.xpose.msra.mxu0 0.0
        %3172 = vmatprep.subr.mxu0 0.0
        %3173 = vmatpush2.xpose.msra.mxu0 0.0
        %3174 = vmatprep.subr.mxu0 0.0
        %3175 = vmatpush2.xpose.msra.mxu0 0.0
        %3176 = vmatprep.subr.mxu0 0.0
        %3177 = vmatpush2.xpose.msra.mxu0 0.0
        %3178 = vmatprep.subr.mxu0 0.0
        %3179 = vmatpush2.xpose.msra.mxu0 0.0
        %3180 = vmatprep.subr.mxu0 0.0
        %3181 = vmatpush2.xpose.msra.mxu0 0.0
        %3182 = vmatprep.subr.mxu0 0.0
        %3183 = vmatpush2.xpose.msra.mxu0 0.0
        %3184 = vmatprep.mubr.f32.mxu0 0.0
        %3185 = vmatmul.mubr.f32.gmra.mxu0 %v3115
        %v3186 = vpop.f32.mrf.mxu0
        %v3187 = vadd.f32 0.0, %v3186
        %v3188 = vpop.f32.mrf.mxu0
        %3189 = vdwg.mxu0
        %v3191 = vsel %vm2065, %v1979, 0
        %v3194 = vsel %vm2065, %v2956, 0
        %3196 = vmatprep.subr.mxu0 0.0
        %3197 = vmatpush1.xpose.msra.mxu0 0.0
        %3198 = vmatprep.subr.mxu0 0.0
        %3199 = vmatpush1.xpose.msra.mxu0 0.0
        %3200 = vmatprep.subr.mxu0 0.0
        %3201 = vmatpush1.xpose.msra.mxu0 0.0
        %3202 = vmatprep.subr.mxu0 0.0
        %3203 = vmatpush1.xpose.msra.mxu0 0.0
        %3204 = vmatprep.subr.mxu0 0.0
        %3205 = vmatpush1.xpose.msra.mxu0 0.0
        %3206 = vmatprep.subr.mxu0 0.0
        %3207 = vmatpush1.xpose.msra.mxu0 0.0
        %3208 = vmatprep.subr.mxu0 0.0
        %3209 = vmatpush1.xpose.msra.mxu0 0.0
        %3210 = vmatprep.subr.mxu0 0.0
        %3211 = vmatpush1.xpose.msra.mxu0 0.0
        %3212 = vmatprep.subr.mxu0 0.0
        %3213 = vmatpush1.xpose.msra.mxu0 0.0
        %3214 = vmatprep.subr.mxu0 0.0
        %3215 = vmatpush1.xpose.msra.mxu0 0.0
        %3216 = vmatprep.subr.mxu0 0.0
        %3217 = vmatpush1.xpose.msra.mxu0 0.0
        %3218 = vmatprep.subr.mxu0 0.0
        %3219 = vmatpush1.xpose.msra.mxu0 0.0
        %3220 = vmatprep.subr.mxu0 0.0
        %3221 = vmatpush1.xpose.msra.mxu0 0.0
        %3222 = vmatprep.subr.mxu0 0.0
        %3223 = vmatpush1.xpose.msra.mxu0 0.0
        %3224 = vmatprep.subr.mxu0 0.0
        %3225 = vmatpush1.xpose.msra.mxu0 0.0
        %3226 = vmatprep.subr.mxu0 0.0
        %3227 = vmatpush1.xpose.msra.mxu0 %v3194
        %3228 = vmatprep.subr.mxu0 0.0
        %3229 = vmatpush2.xpose.msra.mxu0 0.0
        %3230 = vmatprep.subr.mxu0 0.0
        %3231 = vmatpush2.xpose.msra.mxu0 0.0
        %3232 = vmatprep.subr.mxu0 0.0
        %3233 = vmatpush2.xpose.msra.mxu0 0.0
        %3234 = vmatprep.subr.mxu0 0.0
        %3235 = vmatpush2.xpose.msra.mxu0 0.0
        %3236 = vmatprep.subr.mxu0 0.0
        %3237 = vmatpush2.xpose.msra.mxu0 0.0
        %3238 = vmatprep.subr.mxu0 0.0
        %3239 = vmatpush2.xpose.msra.mxu0 0.0
        %3240 = vmatprep.subr.mxu0 0.0
        %3241 = vmatpush2.xpose.msra.mxu0 0.0
        %3242 = vmatprep.subr.mxu0 0.0
        %3243 = vmatpush2.xpose.msra.mxu0 0.0
        %3244 = vmatprep.subr.mxu0 0.0
        %3245 = vmatpush2.xpose.msra.mxu0 0.0
        %3246 = vmatprep.subr.mxu0 0.0
        %3247 = vmatpush2.xpose.msra.mxu0 0.0
        %3248 = vmatprep.subr.mxu0 0.0
        %3249 = vmatpush2.xpose.msra.mxu0 0.0
        %3250 = vmatprep.subr.mxu0 0.0
        %3251 = vmatpush2.xpose.msra.mxu0 0.0
        %3252 = vmatprep.subr.mxu0 0.0
        %3253 = vmatpush2.xpose.msra.mxu0 0.0
        %3254 = vmatprep.subr.mxu0 0.0
        %3255 = vmatpush2.xpose.msra.mxu0 0.0
        %3256 = vmatprep.subr.mxu0 0.0
        %3257 = vmatpush2.xpose.msra.mxu0 0.0
        %3258 = vmatprep.subr.mxu0 0.0
        %3259 = vmatpush2.xpose.msra.mxu0 0.0
        %3260 = vmatprep.mubr.f32.mxu0 0.0
        %3261 = vmatmul.mubr.f32.gmra.mxu0 %v3191
        %v3262 = vpop.f32.mrf.mxu0
        %v3263 = vadd.f32 0.0, %v3262
        %v3264 = vpop.f32.mrf.mxu0
        %3265 = vdwg.mxu0
        %v3266 = vmul.f32 %v3035, 0.35355338
        %v3267 = vmul.f32 %v3111, 0.35355338
        %v3268 = vmul.f32 %v3187, 0.35355338
        %v3269 = vmul.f32 %v3263, 0.35355338
        %v3270 = vadd.f32 %v3266, %v2378
        %v3271 = vadd.f32 %v3267, %v2378
        %v3272 = vadd.f32 %v3268, %v2378
        %v3273 = vadd.f32 %v3269, %v2378
        %v3274 = vsel %vm2065, %v3270, -inf
        %3275 = vmax.xlane.f32.xlu0 %v3274
        %v3276 = vpop.xlane.xlu0 %3275
        %v3277 = vsel %vm2065, %v3271, -inf
        %3278 = vmax.xlane.f32.xlu0 %v3277
        %v3279 = vpop.xlane.xlu0 %3278
        %v3280 = vsel %vm2065, %v3272, -inf
        %3281 = vmax.xlane.f32.xlu0 %v3280
        %v3282 = vpop.xlane.xlu0 %3281
        %v3283 = vsel %vm2065, %v3273, -inf
        %3284 = vmax.xlane.f32.xlu0 %v3283
        %v3285 = vpop.xlane.xlu0 %3284
        %v3286 = vsub.f32 %v3270, %v3276
        %v3287 = vsub.f32 %v3271, %v3279
        %v3288 = vsub.f32 %v3272, %v3282
        %v3289 = vsub.f32 %v3273, %v3285
        %v3290 = vmul.f32 %v3286, 1.442695
        %v3291 = vpow.pop %v3290
        %v3292 = vmul.f32 %v3287, 1.442695
        %v3293 = vpow.pop %v3292
        %v3294 = vmul.f32 %v3288, 1.442695
        %v3295 = vpow.pop %v3294
        %v3296 = vmul.f32 %v3289, 1.442695
        %v3297 = vpow.pop %v3296
        %v3298 = vsel %vm2065, %v3291, 0.0
        %3299 = vadd.xlane.f32.xlu0 %v3298
        %v3300 = vpop.xlane.xlu0 %3299
        %v3301 = vsel %vm2065, %v3293, 0.0
        %3302 = vadd.xlane.f32.xlu0 %v3301
        %v3303 = vpop.xlane.xlu0 %3302
        %v3304 = vsel %vm2065, %v3295, 0.0
        %3305 = vadd.xlane.f32.xlu0 %v3304
        %v3306 = vpop.xlane.xlu0 %3305
        %v3307 = vsel %vm2065, %v3297, 0.0
        %3308 = vadd.xlane.f32.xlu0 %v3307
        %v3309 = vpop.xlane.xlu0 %3308
        %v3310 = vrcp.pop %v3300
        %v3311 = vrcp.pop %v3303
        %v3312 = vrcp.pop %v3306
        %v3313 = vrcp.pop %v3309
        %v3314 = vmul.f32 %v3291, %v3310
        %v3315 = vmul.f32 %v3293, %v3311
        %v3316 = vmul.f32 %v3295, %v3312
        %v3317 = vmul.f32 %v3297, %v3313
        %v3319 = vsel %vm2065, %v3314, 0
        %3321 = vmatprep.subr.mxu0 0.0
        %3322 = vmatpush1.msra.mxu0 0.0
        %3323 = vmatprep.subr.mxu0 0.0
        %3324 = vmatpush1.msra.mxu0 0.0
        %3325 = vmatprep.subr.mxu0 0.0
        %3326 = vmatpush1.msra.mxu0 0.0
        %3327 = vmatprep.subr.mxu0 0.0
        %3328 = vmatpush1.msra.mxu0 0.0
        %3329 = vmatprep.subr.mxu0 0.0
        %3330 = vmatpush1.msra.mxu0 0.0
        %3331 = vmatprep.subr.mxu0 0.0
        %3332 = vmatpush1.msra.mxu0 0.0
        %3333 = vmatprep.subr.mxu0 0.0
        %3334 = vmatpush1.msra.mxu0 0.0
        %3335 = vmatprep.subr.mxu0 0.0
        %3336 = vmatpush1.msra.mxu0 0.0
        %3337 = vmatprep.subr.mxu0 0.0
        %3338 = vmatpush1.msra.mxu0 0.0
        %3339 = vmatprep.subr.mxu0 0.0
        %3340 = vmatpush1.msra.mxu0 0.0
        %3341 = vmatprep.subr.mxu0 0.0
        %3342 = vmatpush1.msra.mxu0 0.0
        %3343 = vmatprep.subr.mxu0 0.0
        %3344 = vmatpush1.msra.mxu0 0.0
        %3345 = vmatprep.subr.mxu0 0.0
        %3346 = vmatpush1.msra.mxu0 0.0
        %3347 = vmatprep.subr.mxu0 0.0
        %3348 = vmatpush1.msra.mxu0 0.0
        %3349 = vmatprep.subr.mxu0 0.0
        %3350 = vmatpush1.msra.mxu0 0.0
        %3351 = vmatprep.subr.mxu0 0.0
        %3352 = vmatpush1.msra.mxu0 %v2958
        %3353 = vmatprep.subr.mxu0 0.0
        %3354 = vmatpush2.msra.mxu0 0.0
        %3355 = vmatprep.subr.mxu0 0.0
        %3356 = vmatpush2.msra.mxu0 0.0
        %3357 = vmatprep.subr.mxu0 0.0
        %3358 = vmatpush2.msra.mxu0 0.0
        %3359 = vmatprep.subr.mxu0 0.0
        %3360 = vmatpush2.msra.mxu0 0.0
        %3361 = vmatprep.subr.mxu0 0.0
        %3362 = vmatpush2.msra.mxu0 0.0
        %3363 = vmatprep.subr.mxu0 0.0
        %3364 = vmatpush2.msra.mxu0 0.0
        %3365 = vmatprep.subr.mxu0 0.0
        %3366 = vmatpush2.msra.mxu0 0.0
        %3367 = vmatprep.subr.mxu0 0.0
        %3368 = vmatpush2.msra.mxu0 0.0
        %3369 = vmatprep.subr.mxu0 0.0
        %3370 = vmatpush2.msra.mxu0 0.0
        %3371 = vmatprep.subr.mxu0 0.0
        %3372 = vmatpush2.msra.mxu0 0.0
        %3373 = vmatprep.subr.mxu0 0.0
        %3374 = vmatpush2.msra.mxu0 0.0
        %3375 = vmatprep.subr.mxu0 0.0
        %3376 = vmatpush2.msra.mxu0 0.0
        %3377 = vmatprep.subr.mxu0 0.0
        %3378 = vmatpush2.msra.mxu0 0.0
        %3379 = vmatprep.subr.mxu0 0.0
        %3380 = vmatpush2.msra.mxu0 0.0
        %3381 = vmatprep.subr.mxu0 0.0
        %3382 = vmatpush2.msra.mxu0 0.0
        %3383 = vmatprep.subr.mxu0 0.0
        %3384 = vmatpush2.msra.mxu0 0.0
        %3385 = vmatprep.mubr.f32.mxu0 0.0
        %3386 = vmatmul.mubr.f32.gmra.mxu0 %v3319
        %v3387 = vpop.f32.mrf.mxu0
        %v3388 = vadd.f32 0.0, %v3387
        %v3389 = vpop.f32.mrf.mxu0
        %3390 = vdwg.mxu0
        %v3392 = vsel %vm2065, %v3315, 0
        %3394 = vmatprep.subr.mxu0 0.0
        %3395 = vmatpush1.msra.mxu0 0.0
        %3396 = vmatprep.subr.mxu0 0.0
        %3397 = vmatpush1.msra.mxu0 0.0
        %3398 = vmatprep.subr.mxu0 0.0
        %3399 = vmatpush1.msra.mxu0 0.0
        %3400 = vmatprep.subr.mxu0 0.0
        %3401 = vmatpush1.msra.mxu0 0.0
        %3402 = vmatprep.subr.mxu0 0.0
        %3403 = vmatpush1.msra.mxu0 0.0
        %3404 = vmatprep.subr.mxu0 0.0
        %3405 = vmatpush1.msra.mxu0 0.0
        %3406 = vmatprep.subr.mxu0 0.0
        %3407 = vmatpush1.msra.mxu0 0.0
        %3408 = vmatprep.subr.mxu0 0.0
        %3409 = vmatpush1.msra.mxu0 0.0
        %3410 = vmatprep.subr.mxu0 0.0
        %3411 = vmatpush1.msra.mxu0 0.0
        %3412 = vmatprep.subr.mxu0 0.0
        %3413 = vmatpush1.msra.mxu0 0.0
        %3414 = vmatprep.subr.mxu0 0.0
        %3415 = vmatpush1.msra.mxu0 0.0
        %3416 = vmatprep.subr.mxu0 0.0
        %3417 = vmatpush1.msra.mxu0 0.0
        %3418 = vmatprep.subr.mxu0 0.0
        %3419 = vmatpush1.msra.mxu0 0.0
        %3420 = vmatprep.subr.mxu0 0.0
        %3421 = vmatpush1.msra.mxu0 0.0
        %3422 = vmatprep.subr.mxu0 0.0
        %3423 = vmatpush1.msra.mxu0 0.0
        %3424 = vmatprep.subr.mxu0 0.0
        %3425 = vmatpush1.msra.mxu0 %v2959
        %3426 = vmatprep.subr.mxu0 0.0
        %3427 = vmatpush2.msra.mxu0 0.0
        %3428 = vmatprep.subr.mxu0 0.0
        %3429 = vmatpush2.msra.mxu0 0.0
        %3430 = vmatprep.subr.mxu0 0.0
        %3431 = vmatpush2.msra.mxu0 0.0
        %3432 = vmatprep.subr.mxu0 0.0
        %3433 = vmatpush2.msra.mxu0 0.0
        %3434 = vmatprep.subr.mxu0 0.0
        %3435 = vmatpush2.msra.mxu0 0.0
        %3436 = vmatprep.subr.mxu0 0.0
        %3437 = vmatpush2.msra.mxu0 0.0
        %3438 = vmatprep.subr.mxu0 0.0
        %3439 = vmatpush2.msra.mxu0 0.0
        %3440 = vmatprep.subr.mxu0 0.0
        %3441 = vmatpush2.msra.mxu0 0.0
        %3442 = vmatprep.subr.mxu0 0.0
        %3443 = vmatpush2.msra.mxu0 0.0
        %3444 = vmatprep.subr.mxu0 0.0
        %3445 = vmatpush2.msra.mxu0 0.0
        %3446 = vmatprep.subr.mxu0 0.0
        %3447 = vmatpush2.msra.mxu0 0.0
        %3448 = vmatprep.subr.mxu0 0.0
        %3449 = vmatpush2.msra.mxu0 0.0
        %3450 = vmatprep.subr.mxu0 0.0
        %3451 = vmatpush2.msra.mxu0 0.0
        %3452 = vmatprep.subr.mxu0 0.0
        %3453 = vmatpush2.msra.mxu0 0.0
        %3454 = vmatprep.subr.mxu0 0.0
        %3455 = vmatpush2.msra.mxu0 0.0
        %3456 = vmatprep.subr.mxu0 0.0
        %3457 = vmatpush2.msra.mxu0 0.0
        %3458 = vmatprep.mubr.f32.mxu0 0.0
        %3459 = vmatmul.mubr.f32.gmra.mxu0 %v3392
        %v3460 = vpop.f32.mrf.mxu0
        %v3461 = vadd.f32 0.0, %v3460
        %v3462 = vpop.f32.mrf.mxu0
        %3463 = vdwg.mxu0
        %v3465 = vsel %vm2065, %v3316, 0
        %3467 = vmatprep.subr.mxu0 0.0
        %3468 = vmatpush1.msra.mxu0 0.0
        %3469 = vmatprep.subr.mxu0 0.0
        %3470 = vmatpush1.msra.mxu0 0.0
        %3471 = vmatprep.subr.mxu0 0.0
        %3472 = vmatpush1.msra.mxu0 0.0
        %3473 = vmatprep.subr.mxu0 0.0
        %3474 = vmatpush1.msra.mxu0 0.0
        %3475 = vmatprep.subr.mxu0 0.0
        %3476 = vmatpush1.msra.mxu0 0.0
        %3477 = vmatprep.subr.mxu0 0.0
        %3478 = vmatpush1.msra.mxu0 0.0
        %3479 = vmatprep.subr.mxu0 0.0
        %3480 = vmatpush1.msra.mxu0 0.0
        %3481 = vmatprep.subr.mxu0 0.0
        %3482 = vmatpush1.msra.mxu0 0.0
        %3483 = vmatprep.subr.mxu0 0.0
        %3484 = vmatpush1.msra.mxu0 0.0
        %3485 = vmatprep.subr.mxu0 0.0
        %3486 = vmatpush1.msra.mxu0 0.0
        %3487 = vmatprep.subr.mxu0 0.0
        %3488 = vmatpush1.msra.mxu0 0.0
        %3489 = vmatprep.subr.mxu0 0.0
        %3490 = vmatpush1.msra.mxu0 0.0
        %3491 = vmatprep.subr.mxu0 0.0
        %3492 = vmatpush1.msra.mxu0 0.0
        %3493 = vmatprep.subr.mxu0 0.0
        %3494 = vmatpush1.msra.mxu0 0.0
        %3495 = vmatprep.subr.mxu0 0.0
        %3496 = vmatpush1.msra.mxu0 0.0
        %3497 = vmatprep.subr.mxu0 0.0
        %3498 = vmatpush1.msra.mxu0 %v2960
        %3499 = vmatprep.subr.mxu0 0.0
        %3500 = vmatpush2.msra.mxu0 0.0
        %3501 = vmatprep.subr.mxu0 0.0
        %3502 = vmatpush2.msra.mxu0 0.0
        %3503 = vmatprep.subr.mxu0 0.0
        %3504 = vmatpush2.msra.mxu0 0.0
        %3505 = vmatprep.subr.mxu0 0.0
        %3506 = vmatpush2.msra.mxu0 0.0
        %3507 = vmatprep.subr.mxu0 0.0
        %3508 = vmatpush2.msra.mxu0 0.0
        %3509 = vmatprep.subr.mxu0 0.0
        %3510 = vmatpush2.msra.mxu0 0.0
        %3511 = vmatprep.subr.mxu0 0.0
        %3512 = vmatpush2.msra.mxu0 0.0
        %3513 = vmatprep.subr.mxu0 0.0
        %3514 = vmatpush2.msra.mxu0 0.0
        %3515 = vmatprep.subr.mxu0 0.0
        %3516 = vmatpush2.msra.mxu0 0.0
        %3517 = vmatprep.subr.mxu0 0.0
        %3518 = vmatpush2.msra.mxu0 0.0
        %3519 = vmatprep.subr.mxu0 0.0
        %3520 = vmatpush2.msra.mxu0 0.0
        %3521 = vmatprep.subr.mxu0 0.0
        %3522 = vmatpush2.msra.mxu0 0.0
        %3523 = vmatprep.subr.mxu0 0.0
        %3524 = vmatpush2.msra.mxu0 0.0
        %3525 = vmatprep.subr.mxu0 0.0
        %3526 = vmatpush2.msra.mxu0 0.0
        %3527 = vmatprep.subr.mxu0 0.0
        %3528 = vmatpush2.msra.mxu0 0.0
        %3529 = vmatprep.subr.mxu0 0.0
        %3530 = vmatpush2.msra.mxu0 0.0
        %3531 = vmatprep.mubr.f32.mxu0 0.0
        %3532 = vmatmul.mubr.f32.gmra.mxu0 %v3465
        %v3533 = vpop.f32.mrf.mxu0
        %v3534 = vadd.f32 0.0, %v3533
        %v3535 = vpop.f32.mrf.mxu0
        %3536 = vdwg.mxu0
        %v3538 = vsel %vm2065, %v3317, 0
        %3540 = vmatprep.subr.mxu0 0.0
        %3541 = vmatpush1.msra.mxu0 0.0
        %3542 = vmatprep.subr.mxu0 0.0
        %3543 = vmatpush1.msra.mxu0 0.0
        %3544 = vmatprep.subr.mxu0 0.0
        %3545 = vmatpush1.msra.mxu0 0.0
        %3546 = vmatprep.subr.mxu0 0.0
        %3547 = vmatpush1.msra.mxu0 0.0
        %3548 = vmatprep.subr.mxu0 0.0
        %3549 = vmatpush1.msra.mxu0 0.0
        %3550 = vmatprep.subr.mxu0 0.0
        %3551 = vmatpush1.msra.mxu0 0.0
        %3552 = vmatprep.subr.mxu0 0.0
        %3553 = vmatpush1.msra.mxu0 0.0
        %3554 = vmatprep.subr.mxu0 0.0
        %3555 = vmatpush1.msra.mxu0 0.0
        %3556 = vmatprep.subr.mxu0 0.0
        %3557 = vmatpush1.msra.mxu0 0.0
        %3558 = vmatprep.subr.mxu0 0.0
        %3559 = vmatpush1.msra.mxu0 0.0
        %3560 = vmatprep.subr.mxu0 0.0
        %3561 = vmatpush1.msra.mxu0 0.0
        %3562 = vmatprep.subr.mxu0 0.0
        %3563 = vmatpush1.msra.mxu0 0.0
        %3564 = vmatprep.subr.mxu0 0.0
        %3565 = vmatpush1.msra.mxu0 0.0
        %3566 = vmatprep.subr.mxu0 0.0
        %3567 = vmatpush1.msra.mxu0 0.0
        %3568 = vmatprep.subr.mxu0 0.0
        %3569 = vmatpush1.msra.mxu0 0.0
        %3570 = vmatprep.subr.mxu0 0.0
        %3571 = vmatpush1.msra.mxu0 %v2961
        %3572 = vmatprep.subr.mxu0 0.0
        %3573 = vmatpush2.msra.mxu0 0.0
        %3574 = vmatprep.subr.mxu0 0.0
        %3575 = vmatpush2.msra.mxu0 0.0
        %3576 = vmatprep.subr.mxu0 0.0
        %3577 = vmatpush2.msra.mxu0 0.0
        %3578 = vmatprep.subr.mxu0 0.0
        %3579 = vmatpush2.msra.mxu0 0.0
        %3580 = vmatprep.subr.mxu0 0.0
        %3581 = vmatpush2.msra.mxu0 0.0
        %3582 = vmatprep.subr.mxu0 0.0
        %3583 = vmatpush2.msra.mxu0 0.0
        %3584 = vmatprep.subr.mxu0 0.0
        %3585 = vmatpush2.msra.mxu0 0.0
        %3586 = vmatprep.subr.mxu0 0.0
        %3587 = vmatpush2.msra.mxu0 0.0
        %3588 = vmatprep.subr.mxu0 0.0
        %3589 = vmatpush2.msra.mxu0 0.0
        %3590 = vmatprep.subr.mxu0 0.0
        %3591 = vmatpush2.msra.mxu0 0.0
        %3592 = vmatprep.subr.mxu0 0.0
        %3593 = vmatpush2.msra.mxu0 0.0
        %3594 = vmatprep.subr.mxu0 0.0
        %3595 = vmatpush2.msra.mxu0 0.0
        %3596 = vmatprep.subr.mxu0 0.0
        %3597 = vmatpush2.msra.mxu0 0.0
        %3598 = vmatprep.subr.mxu0 0.0
        %3599 = vmatpush2.msra.mxu0 0.0
        %3600 = vmatprep.subr.mxu0 0.0
        %3601 = vmatpush2.msra.mxu0 0.0
        %3602 = vmatprep.subr.mxu0 0.0
        %3603 = vmatpush2.msra.mxu0 0.0
        %3604 = vmatprep.mubr.f32.mxu0 0.0
        %3605 = vmatmul.mubr.f32.gmra.mxu0 %v3538
        %v3606 = vpop.f32.mrf.mxu0
        %v3607 = vadd.f32 0.0, %v3606
        %v3608 = vpop.f32.mrf.mxu0
        %3609 = vdwg.mxu0
        %v3610 = vcombine.low %v3388, %v3534
        %v3611 = vcombine.high %v3388, %v3534
        %v3613 = vunpack.c.l.s4 1983009808
        %v3614 = vunpack.c.0.s8 %v3613
        %v3615 = vlaneseq
        %v3616 = vshrl.u32 %v3615, 7
        %v3617 = vsub.s32 %v3614, %v3616
        %v3618 = vrot.slane %v3610, %v3617
        %v3620 = vunpack.c.l.s4 1983009808
        %v3621 = vunpack.c.0.s8 %v3620
        %v3622 = vlaneseq
        %v3623 = vshrl.u32 %v3622, 7
        %v3624 = vsub.s32 %v3621, %v3623
        %v3625 = vrot.slane %v3611, %v3624
        %v3626 = vcombine.low %v3461, %v3607
        %v3627 = vcombine.high %v3461, %v3607
        %v3629 = vunpack.c.l.s4 1983009808
        %v3630 = vunpack.c.0.s8 %v3629
        %v3631 = vlaneseq
        %v3632 = vshrl.u32 %v3631, 7
        %v3633 = vsub.s32 %v3630, %v3632
        %v3634 = vrot.slane %v3626, %v3633
        %v3636 = vunpack.c.l.s4 1983009808
        %v3637 = vunpack.c.0.s8 %v3636
        %v3638 = vlaneseq
        %v3639 = vshrl.u32 %v3638, 7
        %v3640 = vsub.s32 %v3637, %v3639
        %v3641 = vrot.slane %v3627, %v3640
        %v3642 = vcombine.low %v3618, %v3634
        %v3643 = vcombine.high %v3618, %v3634
        %v3645 = vunpack.c.l.s4 1934713408
        %v3646 = vunpack.c.0.s8 %v3645
        %v3647 = vlaneseq
        %v3648 = vshrl.u32 %v3647, 7
        %v3649 = vsub.s32 %v3646, %v3648
        %v3650 = vrot.slane %v3642, %v3649
        %v3652 = vunpack.c.l.s4 1934713408
        %v3653 = vunpack.c.0.s8 %v3652
        %v3654 = vlaneseq
        %v3655 = vshrl.u32 %v3654, 7
        %v3656 = vsub.s32 %v3653, %v3655
        %v3657 = vrot.slane %v3643, %v3656
        %v3658 = vcombine.low %v3625, %v3641
        %v3659 = vcombine.high %v3625, %v3641
        %v3661 = vunpack.c.l.s4 1934713408
        %v3662 = vunpack.c.0.s8 %v3661
        %v3663 = vlaneseq
        %v3664 = vshrl.u32 %v3663, 7
        %v3665 = vsub.s32 %v3662, %v3664
        %v3666 = vrot.slane %v3658, %v3665
        %v3668 = vunpack.c.l.s4 1934713408
        %v3669 = vunpack.c.0.s8 %v3668
        %v3670 = vlaneseq
        %v3671 = vshrl.u32 %v3670, 7
        %v3672 = vsub.s32 %v3669, %v3671
        %v3673 = vrot.slane %v3659, %v3672
        %v3674 = vcombine.high %v3650, 0.0
        %v3675 = vcombine.high %v3657, 0.0
        %v3676 = vcombine.high %v3666, 0.0
        %v3677 = vcombine.high %v3673, 0.0
        %v3678 = vcombine.low %v3650, %v3657
        %v3680 = vunpack.c.l.s4 1983009808
        %v3681 = vunpack.c.0.s8 %v3680
        %v3682 = vlaneseq
        %v3683 = vshrl.u32 %v3682, 7
        %v3684 = vsub.s32 %v3681, %v3683
        %v3685 = vrot.slane %v3678, %v3684
        %v3686 = vcombine.low %v3674, %v3675
        %v3688 = vunpack.c.l.s4 1983009808
        %v3689 = vunpack.c.0.s8 %v3688
        %v3690 = vlaneseq
        %v3691 = vshrl.u32 %v3690, 7
        %v3692 = vsub.s32 %v3689, %v3691
        %v3693 = vrot.slane %v3686, %v3692
        %v3694 = vcombine.low %v3666, %v3673
        %v3696 = vunpack.c.l.s4 1983009808
        %v3697 = vunpack.c.0.s8 %v3696
        %v3698 = vlaneseq
        %v3699 = vshrl.u32 %v3698, 7
        %v3700 = vsub.s32 %v3697, %v3699
        %v3701 = vrot.slane %v3694, %v3700
        %v3702 = vcombine.low %v3676, %v3677
        %v3704 = vunpack.c.l.s4 1983009808
        %v3705 = vunpack.c.0.s8 %v3704
        %v3706 = vlaneseq
        %v3707 = vshrl.u32 %v3706, 7
        %v3708 = vsub.s32 %v3705, %v3707
        %v3709 = vrot.slane %v3702, %v3708
        %v3710 = vcombine.low %v3685, %v3693
        %v3711 = vcombine.high %v3685, %v3693
        %v3713 = vunpack.c.l.s4 1934713408
        %v3714 = vunpack.c.0.s8 %v3713
        %v3715 = vlaneseq
        %v3716 = vshrl.u32 %v3715, 7
        %v3717 = vsub.s32 %v3714, %v3716
        %v3718 = vrot.slane %v3710, %v3717
        %v3720 = vunpack.c.l.s4 1934713408
        %v3721 = vunpack.c.0.s8 %v3720
        %v3722 = vlaneseq
        %v3723 = vshrl.u32 %v3722, 7
        %v3724 = vsub.s32 %v3721, %v3723
        %v3725 = vrot.slane %v3711, %v3724
        %v3726 = vcombine.low %v3701, %v3709
        %v3727 = vcombine.high %v3701, %v3709
        %v3729 = vunpack.c.l.s4 1934713408
        %v3730 = vunpack.c.0.s8 %v3729
        %v3731 = vlaneseq
        %v3732 = vshrl.u32 %v3731, 7
        %v3733 = vsub.s32 %v3730, %v3732
        %v3734 = vrot.slane %v3726, %v3733
        %v3736 = vunpack.c.l.s4 1934713408
        %v3737 = vunpack.c.0.s8 %v3736
        %v3738 = vlaneseq
        %v3739 = vshrl.u32 %v3738, 7
        %v3740 = vsub.s32 %v3737, %v3739
        %v3741 = vrot.slane %v3727, %v3740
        %v3742 = vcombine.low %v3718, %v3734
        %v3743 = vcombine.high %v3718, %v3734
        %v3744 = vcombine.low %v3725, %v3741
        %v3745 = vcombine.high %v3725, %v3741
        %3747 = vrot.lane.b32.xlu0 %v3743, 8
        %v3748 = vpop.permute.xlu0 %3747
        %3751 = vrot.lane.b32.xlu0 %v3744, 16
        %v3752 = vpop.permute.xlu0 %3751
        %3755 = vrot.lane.b32.xlu0 %v3745, 24
        %v3756 = vpop.permute.xlu0 %3755
        %v3758 = vsel %vm2065, %v3742, %v3748
        %v3759 = vsel %vm2869, %v3758, %v3752
        %v3760 = vsel %vm2871, %v3759, %v3756
        %v3761 = vld [vmem:[#allocation12 + $0x20] sm:$0xff]
        %v3762 = vld [vmem:[#allocation12 + $0x28] sm:$0xff]
        %v3763 = vld [vmem:[#allocation12 + $0x30] sm:$0xff]
        %v3764 = vld [vmem:[#allocation12 + $0x38] sm:$0xff]
        %v3766 = vsel %vm2877, %v3760, 0
        %3768 = vmatprep.subr.mxu0 0.0
        %3769 = vmatpush1.msra.mxu0 0.0
        %3770 = vmatprep.subr.mxu0 0.0
        %3771 = vmatpush1.msra.mxu0 0.0
        %3772 = vmatprep.subr.mxu0 0.0
        %3773 = vmatpush1.msra.mxu0 0.0
        %3774 = vmatprep.subr.mxu0 0.0
        %3775 = vmatpush1.msra.mxu0 0.0
        %3776 = vmatprep.subr.mxu0 0.0
        %3777 = vmatpush1.msra.mxu0 0.0
        %3778 = vmatprep.subr.mxu0 0.0
        %3779 = vmatpush1.msra.mxu0 0.0
        %3780 = vmatprep.subr.mxu0 0.0
        %3781 = vmatpush1.msra.mxu0 0.0
        %3782 = vmatprep.subr.mxu0 0.0
        %3783 = vmatpush1.msra.mxu0 0.0
        %3784 = vmatprep.subr.mxu0 0.0
        %3785 = vmatpush1.msra.mxu0 0.0
        %3786 = vmatprep.subr.mxu0 0.0
        %3787 = vmatpush1.msra.mxu0 0.0
        %3788 = vmatprep.subr.mxu0 0.0
        %3789 = vmatpush1.msra.mxu0 0.0
        %3790 = vmatprep.subr.mxu0 0.0
        %3791 = vmatpush1.msra.mxu0 0.0
        %3792 = vmatprep.subr.mxu0 0.0
        %3793 = vmatpush1.msra.mxu0 %v3764
        %3794 = vmatprep.subr.mxu0 0.0
        %3795 = vmatpush1.msra.mxu0 %v3763
        %3796 = vmatprep.subr.mxu0 0.0
        %3797 = vmatpush1.msra.mxu0 %v3762
        %3798 = vmatprep.subr.mxu0 0.0
        %3799 = vmatpush1.msra.mxu0 %v3761
        %3800 = vmatprep.subr.mxu0 0.0
        %3801 = vmatpush2.msra.mxu0 0.0
        %3802 = vmatprep.subr.mxu0 0.0
        %3803 = vmatpush2.msra.mxu0 0.0
        %3804 = vmatprep.subr.mxu0 0.0
        %3805 = vmatpush2.msra.mxu0 0.0
        %3806 = vmatprep.subr.mxu0 0.0
        %3807 = vmatpush2.msra.mxu0 0.0
        %3808 = vmatprep.subr.mxu0 0.0
        %3809 = vmatpush2.msra.mxu0 0.0
        %3810 = vmatprep.subr.mxu0 0.0
        %3811 = vmatpush2.msra.mxu0 0.0
        %3812 = vmatprep.subr.mxu0 0.0
        %3813 = vmatpush2.msra.mxu0 0.0
        %3814 = vmatprep.subr.mxu0 0.0
        %3815 = vmatpush2.msra.mxu0 0.0
        %3816 = vmatprep.subr.mxu0 0.0
        %3817 = vmatpush2.msra.mxu0 0.0
        %3818 = vmatprep.subr.mxu0 0.0
        %3819 = vmatpush2.msra.mxu0 0.0
        %3820 = vmatprep.subr.mxu0 0.0
        %3821 = vmatpush2.msra.mxu0 0.0
        %3822 = vmatprep.subr.mxu0 0.0
        %3823 = vmatpush2.msra.mxu0 0.0
        %3824 = vmatprep.subr.mxu0 0.0
        %3825 = vmatpush2.msra.mxu0 0.0
        %3826 = vmatprep.subr.mxu0 0.0
        %3827 = vmatpush2.msra.mxu0 0.0
        %3828 = vmatprep.subr.mxu0 0.0
        %3829 = vmatpush2.msra.mxu0 0.0
        %3830 = vmatprep.subr.mxu0 0.0
        %3831 = vmatpush2.msra.mxu0 0.0
        %3832 = vmatprep.mubr.f32.mxu0 0.0
        %3833 = vmatmul.mubr.f32.gmra.mxu0 %v3766
        %v3834 = vpop.f32.mrf.mxu0
        %v3835 = vadd.f32 0.0, %v3834
        %v3836 = vpop.f32.mrf.mxu0
        %3837 = vdwg.mxu0
        %v3838 = vadd.f32 %v2951, %v3835
        %s3839 = scalar_lea.vmem [#allocation2], 64
        %v3840 = vld [vmem:[%s3839] sm:$0xff]
        %v3841 = vld [vmem:[%s3839 + $0x8] sm:$0xff]
        %v3842 = vld [vmem:[%s3839 + $0x10] sm:$0xff]
        %v3843 = vld [vmem:[%s3839 + $0x18] sm:$0xff]
        %s3844 = scalar_lea.vmem [#allocation3], 64
        %v3845 = vld [vmem:[%s3844] sm:$0xff]
        %v3846 = vld [vmem:[%s3844 + $0x8] sm:$0xff]
        %v3847 = vld [vmem:[%s3844 + $0x10] sm:$0xff]
        %v3848 = vld [vmem:[%s3844 + $0x18] sm:$0xff]
        %v3850 = vsel %vm2065, %v2044, 0
        %v3853 = vsel %vm2065, %v3840, 0
        %3855 = vmatprep.subr.mxu0 0.0
        %3856 = vmatpush1.xpose.msra.mxu0 0.0
        %3857 = vmatprep.subr.mxu0 0.0
        %3858 = vmatpush1.xpose.msra.mxu0 0.0
        %3859 = vmatprep.subr.mxu0 0.0
        %3860 = vmatpush1.xpose.msra.mxu0 0.0
        %3861 = vmatprep.subr.mxu0 0.0
        %3862 = vmatpush1.xpose.msra.mxu0 0.0
        %3863 = vmatprep.subr.mxu0 0.0
        %3864 = vmatpush1.xpose.msra.mxu0 0.0
        %3865 = vmatprep.subr.mxu0 0.0
        %3866 = vmatpush1.xpose.msra.mxu0 0.0
        %3867 = vmatprep.subr.mxu0 0.0
        %3868 = vmatpush1.xpose.msra.mxu0 0.0
        %3869 = vmatprep.subr.mxu0 0.0
        %3870 = vmatpush1.xpose.msra.mxu0 0.0
        %3871 = vmatprep.subr.mxu0 0.0
        %3872 = vmatpush1.xpose.msra.mxu0 0.0
        %3873 = vmatprep.subr.mxu0 0.0
        %3874 = vmatpush1.xpose.msra.mxu0 0.0
        %3875 = vmatprep.subr.mxu0 0.0
        %3876 = vmatpush1.xpose.msra.mxu0 0.0
        %3877 = vmatprep.subr.mxu0 0.0
        %3878 = vmatpush1.xpose.msra.mxu0 0.0
        %3879 = vmatprep.subr.mxu0 0.0
        %3880 = vmatpush1.xpose.msra.mxu0 0.0
        %3881 = vmatprep.subr.mxu0 0.0
        %3882 = vmatpush1.xpose.msra.mxu0 0.0
        %3883 = vmatprep.subr.mxu0 0.0
        %3884 = vmatpush1.xpose.msra.mxu0 0.0
        %3885 = vmatprep.subr.mxu0 0.0
        %3886 = vmatpush1.xpose.msra.mxu0 %v3853
        %3887 = vmatprep.subr.mxu0 0.0
        %3888 = vmatpush2.xpose.msra.mxu0 0.0
        %3889 = vmatprep.subr.mxu0 0.0
        %3890 = vmatpush2.xpose.msra.mxu0 0.0
        %3891 = vmatprep.subr.mxu0 0.0
        %3892 = vmatpush2.xpose.msra.mxu0 0.0
        %3893 = vmatprep.subr.mxu0 0.0
        %3894 = vmatpush2.xpose.msra.mxu0 0.0
        %3895 = vmatprep.subr.mxu0 0.0
        %3896 = vmatpush2.xpose.msra.mxu0 0.0
        %3897 = vmatprep.subr.mxu0 0.0
        %3898 = vmatpush2.xpose.msra.mxu0 0.0
        %3899 = vmatprep.subr.mxu0 0.0
        %3900 = vmatpush2.xpose.msra.mxu0 0.0
        %3901 = vmatprep.subr.mxu0 0.0
        %3902 = vmatpush2.xpose.msra.mxu0 0.0
        %3903 = vmatprep.subr.mxu0 0.0
        %3904 = vmatpush2.xpose.msra.mxu0 0.0
        %3905 = vmatprep.subr.mxu0 0.0
        %3906 = vmatpush2.xpose.msra.mxu0 0.0
        %3907 = vmatprep.subr.mxu0 0.0
        %3908 = vmatpush2.xpose.msra.mxu0 0.0
        %3909 = vmatprep.subr.mxu0 0.0
        %3910 = vmatpush2.xpose.msra.mxu0 0.0
        %3911 = vmatprep.subr.mxu0 0.0
        %3912 = vmatpush2.xpose.msra.mxu0 0.0
        %3913 = vmatprep.subr.mxu0 0.0
        %3914 = vmatpush2.xpose.msra.mxu0 0.0
        %3915 = vmatprep.subr.mxu0 0.0
        %3916 = vmatpush2.xpose.msra.mxu0 0.0
        %3917 = vmatprep.subr.mxu0 0.0
        %3918 = vmatpush2.xpose.msra.mxu0 0.0
        %3919 = vmatprep.mubr.f32.mxu0 0.0
        %3920 = vmatmul.mubr.f32.gmra.mxu0 %v3850
        %v3921 = vpop.f32.mrf.mxu0
        %v3922 = vadd.f32 0.0, %v3921
        %v3923 = vpop.f32.mrf.mxu0
        %3924 = vdwg.mxu0
        %v3926 = vsel %vm2065, %v2045, 0
        %v3929 = vsel %vm2065, %v3841, 0
        %3931 = vmatprep.subr.mxu0 0.0
        %3932 = vmatpush1.xpose.msra.mxu0 0.0
        %3933 = vmatprep.subr.mxu0 0.0
        %3934 = vmatpush1.xpose.msra.mxu0 0.0
        %3935 = vmatprep.subr.mxu0 0.0
        %3936 = vmatpush1.xpose.msra.mxu0 0.0
        %3937 = vmatprep.subr.mxu0 0.0
        %3938 = vmatpush1.xpose.msra.mxu0 0.0
        %3939 = vmatprep.subr.mxu0 0.0
        %3940 = vmatpush1.xpose.msra.mxu0 0.0
        %3941 = vmatprep.subr.mxu0 0.0
        %3942 = vmatpush1.xpose.msra.mxu0 0.0
        %3943 = vmatprep.subr.mxu0 0.0
        %3944 = vmatpush1.xpose.msra.mxu0 0.0
        %3945 = vmatprep.subr.mxu0 0.0
        %3946 = vmatpush1.xpose.msra.mxu0 0.0
        %3947 = vmatprep.subr.mxu0 0.0
        %3948 = vmatpush1.xpose.msra.mxu0 0.0
        %3949 = vmatprep.subr.mxu0 0.0
        %3950 = vmatpush1.xpose.msra.mxu0 0.0
        %3951 = vmatprep.subr.mxu0 0.0
        %3952 = vmatpush1.xpose.msra.mxu0 0.0
        %3953 = vmatprep.subr.mxu0 0.0
        %3954 = vmatpush1.xpose.msra.mxu0 0.0
        %3955 = vmatprep.subr.mxu0 0.0
        %3956 = vmatpush1.xpose.msra.mxu0 0.0
        %3957 = vmatprep.subr.mxu0 0.0
        %3958 = vmatpush1.xpose.msra.mxu0 0.0
        %3959 = vmatprep.subr.mxu0 0.0
        %3960 = vmatpush1.xpose.msra.mxu0 0.0
        %3961 = vmatprep.subr.mxu0 0.0
        %3962 = vmatpush1.xpose.msra.mxu0 %v3929
        %3963 = vmatprep.subr.mxu0 0.0
        %3964 = vmatpush2.xpose.msra.mxu0 0.0
        %3965 = vmatprep.subr.mxu0 0.0
        %3966 = vmatpush2.xpose.msra.mxu0 0.0
        %3967 = vmatprep.subr.mxu0 0.0
        %3968 = vmatpush2.xpose.msra.mxu0 0.0
        %3969 = vmatprep.subr.mxu0 0.0
        %3970 = vmatpush2.xpose.msra.mxu0 0.0
        %3971 = vmatprep.subr.mxu0 0.0
        %3972 = vmatpush2.xpose.msra.mxu0 0.0
        %3973 = vmatprep.subr.mxu0 0.0
        %3974 = vmatpush2.xpose.msra.mxu0 0.0
        %3975 = vmatprep.subr.mxu0 0.0
        %3976 = vmatpush2.xpose.msra.mxu0 0.0
        %3977 = vmatprep.subr.mxu0 0.0
        %3978 = vmatpush2.xpose.msra.mxu0 0.0
        %3979 = vmatprep.subr.mxu0 0.0
        %3980 = vmatpush2.xpose.msra.mxu0 0.0
        %3981 = vmatprep.subr.mxu0 0.0
        %3982 = vmatpush2.xpose.msra.mxu0 0.0
        %3983 = vmatprep.subr.mxu0 0.0
        %3984 = vmatpush2.xpose.msra.mxu0 0.0
        %3985 = vmatprep.subr.mxu0 0.0
        %3986 = vmatpush2.xpose.msra.mxu0 0.0
        %3987 = vmatprep.subr.mxu0 0.0
        %3988 = vmatpush2.xpose.msra.mxu0 0.0
        %3989 = vmatprep.subr.mxu0 0.0
        %3990 = vmatpush2.xpose.msra.mxu0 0.0
        %3991 = vmatprep.subr.mxu0 0.0
        %3992 = vmatpush2.xpose.msra.mxu0 0.0
        %3993 = vmatprep.subr.mxu0 0.0
        %3994 = vmatpush2.xpose.msra.mxu0 0.0
        %3995 = vmatprep.mubr.f32.mxu0 0.0
        %3996 = vmatmul.mubr.f32.gmra.mxu0 %v3926
        %v3997 = vpop.f32.mrf.mxu0
        %v3998 = vadd.f32 0.0, %v3997
        %v3999 = vpop.f32.mrf.mxu0
        %4000 = vdwg.mxu0
        %v4002 = vsel %vm2065, %v2046, 0
        %v4005 = vsel %vm2065, %v3842, 0
        %4007 = vmatprep.subr.mxu0 0.0
        %4008 = vmatpush1.xpose.msra.mxu0 0.0
        %4009 = vmatprep.subr.mxu0 0.0
        %4010 = vmatpush1.xpose.msra.mxu0 0.0
        %4011 = vmatprep.subr.mxu0 0.0
        %4012 = vmatpush1.xpose.msra.mxu0 0.0
        %4013 = vmatprep.subr.mxu0 0.0
        %4014 = vmatpush1.xpose.msra.mxu0 0.0
        %4015 = vmatprep.subr.mxu0 0.0
        %4016 = vmatpush1.xpose.msra.mxu0 0.0
        %4017 = vmatprep.subr.mxu0 0.0
        %4018 = vmatpush1.xpose.msra.mxu0 0.0
        %4019 = vmatprep.subr.mxu0 0.0
        %4020 = vmatpush1.xpose.msra.mxu0 0.0
        %4021 = vmatprep.subr.mxu0 0.0
        %4022 = vmatpush1.xpose.msra.mxu0 0.0
        %4023 = vmatprep.subr.mxu0 0.0
        %4024 = vmatpush1.xpose.msra.mxu0 0.0
        %4025 = vmatprep.subr.mxu0 0.0
        %4026 = vmatpush1.xpose.msra.mxu0 0.0
        %4027 = vmatprep.subr.mxu0 0.0
        %4028 = vmatpush1.xpose.msra.mxu0 0.0
        %4029 = vmatprep.subr.mxu0 0.0
        %4030 = vmatpush1.xpose.msra.mxu0 0.0
        %4031 = vmatprep.subr.mxu0 0.0
        %4032 = vmatpush1.xpose.msra.mxu0 0.0
        %4033 = vmatprep.subr.mxu0 0.0
        %4034 = vmatpush1.xpose.msra.mxu0 0.0
        %4035 = vmatprep.subr.mxu0 0.0
        %4036 = vmatpush1.xpose.msra.mxu0 0.0
        %4037 = vmatprep.subr.mxu0 0.0
        %4038 = vmatpush1.xpose.msra.mxu0 %v4005
        %4039 = vmatprep.subr.mxu0 0.0
        %4040 = vmatpush2.xpose.msra.mxu0 0.0
        %4041 = vmatprep.subr.mxu0 0.0
        %4042 = vmatpush2.xpose.msra.mxu0 0.0
        %4043 = vmatprep.subr.mxu0 0.0
        %4044 = vmatpush2.xpose.msra.mxu0 0.0
        %4045 = vmatprep.subr.mxu0 0.0
        %4046 = vmatpush2.xpose.msra.mxu0 0.0
        %4047 = vmatprep.subr.mxu0 0.0
        %4048 = vmatpush2.xpose.msra.mxu0 0.0
        %4049 = vmatprep.subr.mxu0 0.0
        %4050 = vmatpush2.xpose.msra.mxu0 0.0
        %4051 = vmatprep.subr.mxu0 0.0
        %4052 = vmatpush2.xpose.msra.mxu0 0.0
        %4053 = vmatprep.subr.mxu0 0.0
        %4054 = vmatpush2.xpose.msra.mxu0 0.0
        %4055 = vmatprep.subr.mxu0 0.0
        %4056 = vmatpush2.xpose.msra.mxu0 0.0
        %4057 = vmatprep.subr.mxu0 0.0
        %4058 = vmatpush2.xpose.msra.mxu0 0.0
        %4059 = vmatprep.subr.mxu0 0.0
        %4060 = vmatpush2.xpose.msra.mxu0 0.0
        %4061 = vmatprep.subr.mxu0 0.0
        %4062 = vmatpush2.xpose.msra.mxu0 0.0
        %4063 = vmatprep.subr.mxu0 0.0
        %4064 = vmatpush2.xpose.msra.mxu0 0.0
        %4065 = vmatprep.subr.mxu0 0.0
        %4066 = vmatpush2.xpose.msra.mxu0 0.0
        %4067 = vmatprep.subr.mxu0 0.0
        %4068 = vmatpush2.xpose.msra.mxu0 0.0
        %4069 = vmatprep.subr.mxu0 0.0
        %4070 = vmatpush2.xpose.msra.mxu0 0.0
        %4071 = vmatprep.mubr.f32.mxu0 0.0
        %4072 = vmatmul.mubr.f32.gmra.mxu0 %v4002
        %v4073 = vpop.f32.mrf.mxu0
        %v4074 = vadd.f32 0.0, %v4073
        %v4075 = vpop.f32.mrf.mxu0
        %4076 = vdwg.mxu0
        %v4078 = vsel %vm2065, %v2047, 0
        %v4081 = vsel %vm2065, %v3843, 0
        %4083 = vmatprep.subr.mxu0 0.0
        %4084 = vmatpush1.xpose.msra.mxu0 0.0
        %4085 = vmatprep.subr.mxu0 0.0
        %4086 = vmatpush1.xpose.msra.mxu0 0.0
        %4087 = vmatprep.subr.mxu0 0.0
        %4088 = vmatpush1.xpose.msra.mxu0 0.0
        %4089 = vmatprep.subr.mxu0 0.0
        %4090 = vmatpush1.xpose.msra.mxu0 0.0
        %4091 = vmatprep.subr.mxu0 0.0
        %4092 = vmatpush1.xpose.msra.mxu0 0.0
        %4093 = vmatprep.subr.mxu0 0.0
        %4094 = vmatpush1.xpose.msra.mxu0 0.0
        %4095 = vmatprep.subr.mxu0 0.0
        %4096 = vmatpush1.xpose.msra.mxu0 0.0
        %4097 = vmatprep.subr.mxu0 0.0
        %4098 = vmatpush1.xpose.msra.mxu0 0.0
        %4099 = vmatprep.subr.mxu0 0.0
        %4100 = vmatpush1.xpose.msra.mxu0 0.0
        %4101 = vmatprep.subr.mxu0 0.0
        %4102 = vmatpush1.xpose.msra.mxu0 0.0
        %4103 = vmatprep.subr.mxu0 0.0
        %4104 = vmatpush1.xpose.msra.mxu0 0.0
        %4105 = vmatprep.subr.mxu0 0.0
        %4106 = vmatpush1.xpose.msra.mxu0 0.0
        %4107 = vmatprep.subr.mxu0 0.0
        %4108 = vmatpush1.xpose.msra.mxu0 0.0
        %4109 = vmatprep.subr.mxu0 0.0
        %4110 = vmatpush1.xpose.msra.mxu0 0.0
        %4111 = vmatprep.subr.mxu0 0.0
        %4112 = vmatpush1.xpose.msra.mxu0 0.0
        %4113 = vmatprep.subr.mxu0 0.0
        %4114 = vmatpush1.xpose.msra.mxu0 %v4081
        %4115 = vmatprep.subr.mxu0 0.0
        %4116 = vmatpush2.xpose.msra.mxu0 0.0
        %4117 = vmatprep.subr.mxu0 0.0
        %4118 = vmatpush2.xpose.msra.mxu0 0.0
        %4119 = vmatprep.subr.mxu0 0.0
        %4120 = vmatpush2.xpose.msra.mxu0 0.0
        %4121 = vmatprep.subr.mxu0 0.0
        %4122 = vmatpush2.xpose.msra.mxu0 0.0
        %4123 = vmatprep.subr.mxu0 0.0
        %4124 = vmatpush2.xpose.msra.mxu0 0.0
        %4125 = vmatprep.subr.mxu0 0.0
        %4126 = vmatpush2.xpose.msra.mxu0 0.0
        %4127 = vmatprep.subr.mxu0 0.0
        %4128 = vmatpush2.xpose.msra.mxu0 0.0
        %4129 = vmatprep.subr.mxu0 0.0
        %4130 = vmatpush2.xpose.msra.mxu0 0.0
        %4131 = vmatprep.subr.mxu0 0.0
        %4132 = vmatpush2.xpose.msra.mxu0 0.0
        %4133 = vmatprep.subr.mxu0 0.0
        %4134 = vmatpush2.xpose.msra.mxu0 0.0
        %4135 = vmatprep.subr.mxu0 0.0
        %4136 = vmatpush2.xpose.msra.mxu0 0.0
        %4137 = vmatprep.subr.mxu0 0.0
        %4138 = vmatpush2.xpose.msra.mxu0 0.0
        %4139 = vmatprep.subr.mxu0 0.0
        %4140 = vmatpush2.xpose.msra.mxu0 0.0
        %4141 = vmatprep.subr.mxu0 0.0
        %4142 = vmatpush2.xpose.msra.mxu0 0.0
        %4143 = vmatprep.subr.mxu0 0.0
        %4144 = vmatpush2.xpose.msra.mxu0 0.0
        %4145 = vmatprep.subr.mxu0 0.0
        %4146 = vmatpush2.xpose.msra.mxu0 0.0
        %4147 = vmatprep.mubr.f32.mxu0 0.0
        %4148 = vmatmul.mubr.f32.gmra.mxu0 %v4078
        %v4149 = vpop.f32.mrf.mxu0
        %v4150 = vadd.f32 0.0, %v4149
        %v4151 = vpop.f32.mrf.mxu0
        %4152 = vdwg.mxu0
        %v4153 = vmul.f32 %v3922, 0.35355338
        %v4154 = vmul.f32 %v3998, 0.35355338
        %v4155 = vmul.f32 %v4074, 0.35355338
        %v4156 = vmul.f32 %v4150, 0.35355338
        %v4157 = vadd.f32 %v4153, %v2378
        %v4158 = vadd.f32 %v4154, %v2378
        %v4159 = vadd.f32 %v4155, %v2378
        %v4160 = vadd.f32 %v4156, %v2378
        %v4161 = vsel %vm2065, %v4157, -inf
        %4162 = vmax.xlane.f32.xlu0 %v4161
        %v4163 = vpop.xlane.xlu0 %4162
        %v4164 = vsel %vm2065, %v4158, -inf
        %4165 = vmax.xlane.f32.xlu0 %v4164
        %v4166 = vpop.xlane.xlu0 %4165
        %v4167 = vsel %vm2065, %v4159, -inf
        %4168 = vmax.xlane.f32.xlu0 %v4167
        %v4169 = vpop.xlane.xlu0 %4168
        %v4170 = vsel %vm2065, %v4160, -inf
        %4171 = vmax.xlane.f32.xlu0 %v4170
        %v4172 = vpop.xlane.xlu0 %4171
        %v4173 = vsub.f32 %v4157, %v4163
        %v4174 = vsub.f32 %v4158, %v4166
        %v4175 = vsub.f32 %v4159, %v4169
        %v4176 = vsub.f32 %v4160, %v4172
        %v4177 = vmul.f32 %v4173, 1.442695
        %v4178 = vpow.pop %v4177
        %v4179 = vmul.f32 %v4174, 1.442695
        %v4180 = vpow.pop %v4179
        %v4181 = vmul.f32 %v4175, 1.442695
        %v4182 = vpow.pop %v4181
        %v4183 = vmul.f32 %v4176, 1.442695
        %v4184 = vpow.pop %v4183
        %v4185 = vsel %vm2065, %v4178, 0.0
        %4186 = vadd.xlane.f32.xlu0 %v4185
        %v4187 = vpop.xlane.xlu0 %4186
        %v4188 = vsel %vm2065, %v4180, 0.0
        %4189 = vadd.xlane.f32.xlu0 %v4188
        %v4190 = vpop.xlane.xlu0 %4189
        %v4191 = vsel %vm2065, %v4182, 0.0
        %4192 = vadd.xlane.f32.xlu0 %v4191
        %v4193 = vpop.xlane.xlu0 %4192
        %v4194 = vsel %vm2065, %v4184, 0.0
        %4195 = vadd.xlane.f32.xlu0 %v4194
        %v4196 = vpop.xlane.xlu0 %4195
        %v4197 = vrcp.pop %v4187
        %v4198 = vrcp.pop %v4190
        %v4199 = vrcp.pop %v4193
        %v4200 = vrcp.pop %v4196
        %v4201 = vmul.f32 %v4178, %v4197
        %v4202 = vmul.f32 %v4180, %v4198
        %v4203 = vmul.f32 %v4182, %v4199
        %v4204 = vmul.f32 %v4184, %v4200
        %v4206 = vsel %vm2065, %v4201, 0
        %4208 = vmatprep.subr.mxu0 0.0
        %4209 = vmatpush1.msra.mxu0 0.0
        %4210 = vmatprep.subr.mxu0 0.0
        %4211 = vmatpush1.msra.mxu0 0.0
        %4212 = vmatprep.subr.mxu0 0.0
        %4213 = vmatpush1.msra.mxu0 0.0
        %4214 = vmatprep.subr.mxu0 0.0
        %4215 = vmatpush1.msra.mxu0 0.0
        %4216 = vmatprep.subr.mxu0 0.0
        %4217 = vmatpush1.msra.mxu0 0.0
        %4218 = vmatprep.subr.mxu0 0.0
        %4219 = vmatpush1.msra.mxu0 0.0
        %4220 = vmatprep.subr.mxu0 0.0
        %4221 = vmatpush1.msra.mxu0 0.0
        %4222 = vmatprep.subr.mxu0 0.0
        %4223 = vmatpush1.msra.mxu0 0.0
        %4224 = vmatprep.subr.mxu0 0.0
        %4225 = vmatpush1.msra.mxu0 0.0
        %4226 = vmatprep.subr.mxu0 0.0
        %4227 = vmatpush1.msra.mxu0 0.0
        %4228 = vmatprep.subr.mxu0 0.0
        %4229 = vmatpush1.msra.mxu0 0.0
        %4230 = vmatprep.subr.mxu0 0.0
        %4231 = vmatpush1.msra.mxu0 0.0
        %4232 = vmatprep.subr.mxu0 0.0
        %4233 = vmatpush1.msra.mxu0 0.0
        %4234 = vmatprep.subr.mxu0 0.0
        %4235 = vmatpush1.msra.mxu0 0.0
        %4236 = vmatprep.subr.mxu0 0.0
        %4237 = vmatpush1.msra.mxu0 0.0
        %4238 = vmatprep.subr.mxu0 0.0
        %4239 = vmatpush1.msra.mxu0 %v3845
        %4240 = vmatprep.subr.mxu0 0.0
        %4241 = vmatpush2.msra.mxu0 0.0
        %4242 = vmatprep.subr.mxu0 0.0
        %4243 = vmatpush2.msra.mxu0 0.0
        %4244 = vmatprep.subr.mxu0 0.0
        %4245 = vmatpush2.msra.mxu0 0.0
        %4246 = vmatprep.subr.mxu0 0.0
        %4247 = vmatpush2.msra.mxu0 0.0
        %4248 = vmatprep.subr.mxu0 0.0
        %4249 = vmatpush2.msra.mxu0 0.0
        %4250 = vmatprep.subr.mxu0 0.0
        %4251 = vmatpush2.msra.mxu0 0.0
        %4252 = vmatprep.subr.mxu0 0.0
        %4253 = vmatpush2.msra.mxu0 0.0
        %4254 = vmatprep.subr.mxu0 0.0
        %4255 = vmatpush2.msra.mxu0 0.0
        %4256 = vmatprep.subr.mxu0 0.0
        %4257 = vmatpush2.msra.mxu0 0.0
        %4258 = vmatprep.subr.mxu0 0.0
        %4259 = vmatpush2.msra.mxu0 0.0
        %4260 = vmatprep.subr.mxu0 0.0
        %4261 = vmatpush2.msra.mxu0 0.0
        %4262 = vmatprep.subr.mxu0 0.0
        %4263 = vmatpush2.msra.mxu0 0.0
        %4264 = vmatprep.subr.mxu0 0.0
        %4265 = vmatpush2.msra.mxu0 0.0
        %4266 = vmatprep.subr.mxu0 0.0
        %4267 = vmatpush2.msra.mxu0 0.0
        %4268 = vmatprep.subr.mxu0 0.0
        %4269 = vmatpush2.msra.mxu0 0.0
        %4270 = vmatprep.subr.mxu0 0.0
        %4271 = vmatpush2.msra.mxu0 0.0
        %4272 = vmatprep.mubr.f32.mxu0 0.0
        %4273 = vmatmul.mubr.f32.gmra.mxu0 %v4206
        %v4274 = vpop.f32.mrf.mxu0
        %v4275 = vadd.f32 0.0, %v4274
        %v4276 = vpop.f32.mrf.mxu0
        %4277 = vdwg.mxu0
        %v4279 = vsel %vm2065, %v4202, 0
        %4281 = vmatprep.subr.mxu0 0.0
        %4282 = vmatpush1.msra.mxu0 0.0
        %4283 = vmatprep.subr.mxu0 0.0
        %4284 = vmatpush1.msra.mxu0 0.0
        %4285 = vmatprep.subr.mxu0 0.0
        %4286 = vmatpush1.msra.mxu0 0.0
        %4287 = vmatprep.subr.mxu0 0.0
        %4288 = vmatpush1.msra.mxu0 0.0
        %4289 = vmatprep.subr.mxu0 0.0
        %4290 = vmatpush1.msra.mxu0 0.0
        %4291 = vmatprep.subr.mxu0 0.0
        %4292 = vmatpush1.msra.mxu0 0.0
        %4293 = vmatprep.subr.mxu0 0.0
        %4294 = vmatpush1.msra.mxu0 0.0
        %4295 = vmatprep.subr.mxu0 0.0
        %4296 = vmatpush1.msra.mxu0 0.0
        %4297 = vmatprep.subr.mxu0 0.0
        %4298 = vmatpush1.msra.mxu0 0.0
        %4299 = vmatprep.subr.mxu0 0.0
        %4300 = vmatpush1.msra.mxu0 0.0
        %4301 = vmatprep.subr.mxu0 0.0
        %4302 = vmatpush1.msra.mxu0 0.0
        %4303 = vmatprep.subr.mxu0 0.0
        %4304 = vmatpush1.msra.mxu0 0.0
        %4305 = vmatprep.subr.mxu0 0.0
        %4306 = vmatpush1.msra.mxu0 0.0
        %4307 = vmatprep.subr.mxu0 0.0
        %4308 = vmatpush1.msra.mxu0 0.0
        %4309 = vmatprep.subr.mxu0 0.0
        %4310 = vmatpush1.msra.mxu0 0.0
        %4311 = vmatprep.subr.mxu0 0.0
        %4312 = vmatpush1.msra.mxu0 %v3846
        %4313 = vmatprep.subr.mxu0 0.0
        %4314 = vmatpush2.msra.mxu0 0.0
        %4315 = vmatprep.subr.mxu0 0.0
        %4316 = vmatpush2.msra.mxu0 0.0
        %4317 = vmatprep.subr.mxu0 0.0
        %4318 = vmatpush2.msra.mxu0 0.0
        %4319 = vmatprep.subr.mxu0 0.0
        %4320 = vmatpush2.msra.mxu0 0.0
        %4321 = vmatprep.subr.mxu0 0.0
        %4322 = vmatpush2.msra.mxu0 0.0
        %4323 = vmatprep.subr.mxu0 0.0
        %4324 = vmatpush2.msra.mxu0 0.0
        %4325 = vmatprep.subr.mxu0 0.0
        %4326 = vmatpush2.msra.mxu0 0.0
        %4327 = vmatprep.subr.mxu0 0.0
        %4328 = vmatpush2.msra.mxu0 0.0
        %4329 = vmatprep.subr.mxu0 0.0
        %4330 = vmatpush2.msra.mxu0 0.0
        %4331 = vmatprep.subr.mxu0 0.0
        %4332 = vmatpush2.msra.mxu0 0.0
        %4333 = vmatprep.subr.mxu0 0.0
        %4334 = vmatpush2.msra.mxu0 0.0
        %4335 = vmatprep.subr.mxu0 0.0
        %4336 = vmatpush2.msra.mxu0 0.0
        %4337 = vmatprep.subr.mxu0 0.0
        %4338 = vmatpush2.msra.mxu0 0.0
        %4339 = vmatprep.subr.mxu0 0.0
        %4340 = vmatpush2.msra.mxu0 0.0
        %4341 = vmatprep.subr.mxu0 0.0
        %4342 = vmatpush2.msra.mxu0 0.0
        %4343 = vmatprep.subr.mxu0 0.0
        %4344 = vmatpush2.msra.mxu0 0.0
        %4345 = vmatprep.mubr.f32.mxu0 0.0
        %4346 = vmatmul.mubr.f32.gmra.mxu0 %v4279
        %v4347 = vpop.f32.mrf.mxu0
        %v4348 = vadd.f32 0.0, %v4347
        %v4349 = vpop.f32.mrf.mxu0
        %4350 = vdwg.mxu0
        %v4352 = vsel %vm2065, %v4203, 0
        %4354 = vmatprep.subr.mxu0 0.0
        %4355 = vmatpush1.msra.mxu0 0.0
        %4356 = vmatprep.subr.mxu0 0.0
        %4357 = vmatpush1.msra.mxu0 0.0
        %4358 = vmatprep.subr.mxu0 0.0
        %4359 = vmatpush1.msra.mxu0 0.0
        %4360 = vmatprep.subr.mxu0 0.0
        %4361 = vmatpush1.msra.mxu0 0.0
        %4362 = vmatprep.subr.mxu0 0.0
        %4363 = vmatpush1.msra.mxu0 0.0
        %4364 = vmatprep.subr.mxu0 0.0
        %4365 = vmatpush1.msra.mxu0 0.0
        %4366 = vmatprep.subr.mxu0 0.0
        %4367 = vmatpush1.msra.mxu0 0.0
        %4368 = vmatprep.subr.mxu0 0.0
        %4369 = vmatpush1.msra.mxu0 0.0
        %4370 = vmatprep.subr.mxu0 0.0
        %4371 = vmatpush1.msra.mxu0 0.0
        %4372 = vmatprep.subr.mxu0 0.0
        %4373 = vmatpush1.msra.mxu0 0.0
        %4374 = vmatprep.subr.mxu0 0.0
        %4375 = vmatpush1.msra.mxu0 0.0
        %4376 = vmatprep.subr.mxu0 0.0
        %4377 = vmatpush1.msra.mxu0 0.0
        %4378 = vmatprep.subr.mxu0 0.0
        %4379 = vmatpush1.msra.mxu0 0.0
        %4380 = vmatprep.subr.mxu0 0.0
        %4381 = vmatpush1.msra.mxu0 0.0
        %4382 = vmatprep.subr.mxu0 0.0
        %4383 = vmatpush1.msra.mxu0 0.0
        %4384 = vmatprep.subr.mxu0 0.0
        %4385 = vmatpush1.msra.mxu0 %v3847
        %4386 = vmatprep.subr.mxu0 0.0
        %4387 = vmatpush2.msra.mxu0 0.0
        %4388 = vmatprep.subr.mxu0 0.0
        %4389 = vmatpush2.msra.mxu0 0.0
        %4390 = vmatprep.subr.mxu0 0.0
        %4391 = vmatpush2.msra.mxu0 0.0
        %4392 = vmatprep.subr.mxu0 0.0
        %4393 = vmatpush2.msra.mxu0 0.0
        %4394 = vmatprep.subr.mxu0 0.0
        %4395 = vmatpush2.msra.mxu0 0.0
        %4396 = vmatprep.subr.mxu0 0.0
        %4397 = vmatpush2.msra.mxu0 0.0
        %4398 = vmatprep.subr.mxu0 0.0
        %4399 = vmatpush2.msra.mxu0 0.0
        %4400 = vmatprep.subr.mxu0 0.0
        %4401 = vmatpush2.msra.mxu0 0.0
        %4402 = vmatprep.subr.mxu0 0.0
        %4403 = vmatpush2.msra.mxu0 0.0
        %4404 = vmatprep.subr.mxu0 0.0
        %4405 = vmatpush2.msra.mxu0 0.0
        %4406 = vmatprep.subr.mxu0 0.0
        %4407 = vmatpush2.msra.mxu0 0.0
        %4408 = vmatprep.subr.mxu0 0.0
        %4409 = vmatpush2.msra.mxu0 0.0
        %4410 = vmatprep.subr.mxu0 0.0
        %4411 = vmatpush2.msra.mxu0 0.0
        %4412 = vmatprep.subr.mxu0 0.0
        %4413 = vmatpush2.msra.mxu0 0.0
        %4414 = vmatprep.subr.mxu0 0.0
        %4415 = vmatpush2.msra.mxu0 0.0
        %4416 = vmatprep.subr.mxu0 0.0
        %4417 = vmatpush2.msra.mxu0 0.0
        %4418 = vmatprep.mubr.f32.mxu0 0.0
        %4419 = vmatmul.mubr.f32.gmra.mxu0 %v4352
        %v4420 = vpop.f32.mrf.mxu0
        %v4421 = vadd.f32 0.0, %v4420
        %v4422 = vpop.f32.mrf.mxu0
        %4423 = vdwg.mxu0
        %v4425 = vsel %vm2065, %v4204, 0
        %4427 = vmatprep.subr.mxu0 0.0
        %4428 = vmatpush1.msra.mxu0 0.0
        %4429 = vmatprep.subr.mxu0 0.0
        %4430 = vmatpush1.msra.mxu0 0.0
        %4431 = vmatprep.subr.mxu0 0.0
        %4432 = vmatpush1.msra.mxu0 0.0
        %4433 = vmatprep.subr.mxu0 0.0
        %4434 = vmatpush1.msra.mxu0 0.0
        %4435 = vmatprep.subr.mxu0 0.0
        %4436 = vmatpush1.msra.mxu0 0.0
        %4437 = vmatprep.subr.mxu0 0.0
        %4438 = vmatpush1.msra.mxu0 0.0
        %4439 = vmatprep.subr.mxu0 0.0
        %4440 = vmatpush1.msra.mxu0 0.0
        %4441 = vmatprep.subr.mxu0 0.0
        %4442 = vmatpush1.msra.mxu0 0.0
        %4443 = vmatprep.subr.mxu0 0.0
        %4444 = vmatpush1.msra.mxu0 0.0
        %4445 = vmatprep.subr.mxu0 0.0
        %4446 = vmatpush1.msra.mxu0 0.0
        %4447 = vmatprep.subr.mxu0 0.0
        %4448 = vmatpush1.msra.mxu0 0.0
        %4449 = vmatprep.subr.mxu0 0.0
        %4450 = vmatpush1.msra.mxu0 0.0
        %4451 = vmatprep.subr.mxu0 0.0
        %4452 = vmatpush1.msra.mxu0 0.0
        %4453 = vmatprep.subr.mxu0 0.0
        %4454 = vmatpush1.msra.mxu0 0.0
        %4455 = vmatprep.subr.mxu0 0.0
        %4456 = vmatpush1.msra.mxu0 0.0
        %4457 = vmatprep.subr.mxu0 0.0
        %4458 = vmatpush1.msra.mxu0 %v3848
        %4459 = vmatprep.subr.mxu0 0.0
        %4460 = vmatpush2.msra.mxu0 0.0
        %4461 = vmatprep.subr.mxu0 0.0
        %4462 = vmatpush2.msra.mxu0 0.0
        %4463 = vmatprep.subr.mxu0 0.0
        %4464 = vmatpush2.msra.mxu0 0.0
        %4465 = vmatprep.subr.mxu0 0.0
        %4466 = vmatpush2.msra.mxu0 0.0
        %4467 = vmatprep.subr.mxu0 0.0
        %4468 = vmatpush2.msra.mxu0 0.0
        %4469 = vmatprep.subr.mxu0 0.0
        %4470 = vmatpush2.msra.mxu0 0.0
        %4471 = vmatprep.subr.mxu0 0.0
        %4472 = vmatpush2.msra.mxu0 0.0
        %4473 = vmatprep.subr.mxu0 0.0
        %4474 = vmatpush2.msra.mxu0 0.0
        %4475 = vmatprep.subr.mxu0 0.0
        %4476 = vmatpush2.msra.mxu0 0.0
        %4477 = vmatprep.subr.mxu0 0.0
        %4478 = vmatpush2.msra.mxu0 0.0
        %4479 = vmatprep.subr.mxu0 0.0
        %4480 = vmatpush2.msra.mxu0 0.0
        %4481 = vmatprep.subr.mxu0 0.0
        %4482 = vmatpush2.msra.mxu0 0.0
        %4483 = vmatprep.subr.mxu0 0.0
        %4484 = vmatpush2.msra.mxu0 0.0
        %4485 = vmatprep.subr.mxu0 0.0
        %4486 = vmatpush2.msra.mxu0 0.0
        %4487 = vmatprep.subr.mxu0 0.0
        %4488 = vmatpush2.msra.mxu0 0.0
        %4489 = vmatprep.subr.mxu0 0.0
        %4490 = vmatpush2.msra.mxu0 0.0
        %4491 = vmatprep.mubr.f32.mxu0 0.0
        %4492 = vmatmul.mubr.f32.gmra.mxu0 %v4425
        %v4493 = vpop.f32.mrf.mxu0
        %v4494 = vadd.f32 0.0, %v4493
        %v4495 = vpop.f32.mrf.mxu0
        %4496 = vdwg.mxu0
        %v4497 = vcombine.low %v4275, %v4421
        %v4498 = vcombine.high %v4275, %v4421
        %v4500 = vunpack.c.l.s4 1983009808
        %v4501 = vunpack.c.0.s8 %v4500
        %v4502 = vlaneseq
        %v4503 = vshrl.u32 %v4502, 7
        %v4504 = vsub.s32 %v4501, %v4503
        %v4505 = vrot.slane %v4497, %v4504
        %v4507 = vunpack.c.l.s4 1983009808
        %v4508 = vunpack.c.0.s8 %v4507
        %v4509 = vlaneseq
        %v4510 = vshrl.u32 %v4509, 7
        %v4511 = vsub.s32 %v4508, %v4510
        %v4512 = vrot.slane %v4498, %v4511
        %v4513 = vcombine.low %v4348, %v4494
        %v4514 = vcombine.high %v4348, %v4494
        %v4516 = vunpack.c.l.s4 1983009808
        %v4517 = vunpack.c.0.s8 %v4516
        %v4518 = vlaneseq
        %v4519 = vshrl.u32 %v4518, 7
        %v4520 = vsub.s32 %v4517, %v4519
        %v4521 = vrot.slane %v4513, %v4520
        %v4523 = vunpack.c.l.s4 1983009808
        %v4524 = vunpack.c.0.s8 %v4523
        %v4525 = vlaneseq
        %v4526 = vshrl.u32 %v4525, 7
        %v4527 = vsub.s32 %v4524, %v4526
        %v4528 = vrot.slane %v4514, %v4527
        %v4529 = vcombine.low %v4505, %v4521
        %v4530 = vcombine.high %v4505, %v4521
        %v4532 = vunpack.c.l.s4 1934713408
        %v4533 = vunpack.c.0.s8 %v4532
        %v4534 = vlaneseq
        %v4535 = vshrl.u32 %v4534, 7
        %v4536 = vsub.s32 %v4533, %v4535
        %v4537 = vrot.slane %v4529, %v4536
        %v4539 = vunpack.c.l.s4 1934713408
        %v4540 = vunpack.c.0.s8 %v4539
        %v4541 = vlaneseq
        %v4542 = vshrl.u32 %v4541, 7
        %v4543 = vsub.s32 %v4540, %v4542
        %v4544 = vrot.slane %v4530, %v4543
        %v4545 = vcombine.low %v4512, %v4528
        %v4546 = vcombine.high %v4512, %v4528
        %v4548 = vunpack.c.l.s4 1934713408
        %v4549 = vunpack.c.0.s8 %v4548
        %v4550 = vlaneseq
        %v4551 = vshrl.u32 %v4550, 7
        %v4552 = vsub.s32 %v4549, %v4551
        %v4553 = vrot.slane %v4545, %v4552
        %v4555 = vunpack.c.l.s4 1934713408
        %v4556 = vunpack.c.0.s8 %v4555
        %v4557 = vlaneseq
        %v4558 = vshrl.u32 %v4557, 7
        %v4559 = vsub.s32 %v4556, %v4558
        %v4560 = vrot.slane %v4546, %v4559
        %v4561 = vcombine.high %v4537, 0.0
        %v4562 = vcombine.high %v4544, 0.0
        %v4563 = vcombine.high %v4553, 0.0
        %v4564 = vcombine.high %v4560, 0.0
        %v4565 = vcombine.low %v4537, %v4544
        %v4567 = vunpack.c.l.s4 1983009808
        %v4568 = vunpack.c.0.s8 %v4567
        %v4569 = vlaneseq
        %v4570 = vshrl.u32 %v4569, 7
        %v4571 = vsub.s32 %v4568, %v4570
        %v4572 = vrot.slane %v4565, %v4571
        %v4573 = vcombine.low %v4561, %v4562
        %v4575 = vunpack.c.l.s4 1983009808
        %v4576 = vunpack.c.0.s8 %v4575
        %v4577 = vlaneseq
        %v4578 = vshrl.u32 %v4577, 7
        %v4579 = vsub.s32 %v4576, %v4578
        %v4580 = vrot.slane %v4573, %v4579
        %v4581 = vcombine.low %v4553, %v4560
        %v4583 = vunpack.c.l.s4 1983009808
        %v4584 = vunpack.c.0.s8 %v4583
        %v4585 = vlaneseq
        %v4586 = vshrl.u32 %v4585, 7
        %v4587 = vsub.s32 %v4584, %v4586
        %v4588 = vrot.slane %v4581, %v4587
        %v4589 = vcombine.low %v4563, %v4564
        %v4591 = vunpack.c.l.s4 1983009808
        %v4592 = vunpack.c.0.s8 %v4591
        %v4593 = vlaneseq
        %v4594 = vshrl.u32 %v4593, 7
        %v4595 = vsub.s32 %v4592, %v4594
        %v4596 = vrot.slane %v4589, %v4595
        %v4597 = vcombine.low %v4572, %v4580
        %v4598 = vcombine.high %v4572, %v4580
        %v4600 = vunpack.c.l.s4 1934713408
        %v4601 = vunpack.c.0.s8 %v4600
        %v4602 = vlaneseq
        %v4603 = vshrl.u32 %v4602, 7
        %v4604 = vsub.s32 %v4601, %v4603
        %v4605 = vrot.slane %v4597, %v4604
        %v4607 = vunpack.c.l.s4 1934713408
        %v4608 = vunpack.c.0.s8 %v4607
        %v4609 = vlaneseq
        %v4610 = vshrl.u32 %v4609, 7
        %v4611 = vsub.s32 %v4608, %v4610
        %v4612 = vrot.slane %v4598, %v4611
        %v4613 = vcombine.low %v4588, %v4596
        %v4614 = vcombine.high %v4588, %v4596
        %v4616 = vunpack.c.l.s4 1934713408
        %v4617 = vunpack.c.0.s8 %v4616
        %v4618 = vlaneseq
        %v4619 = vshrl.u32 %v4618, 7
        %v4620 = vsub.s32 %v4617, %v4619
        %v4621 = vrot.slane %v4613, %v4620
        %v4623 = vunpack.c.l.s4 1934713408
        %v4624 = vunpack.c.0.s8 %v4623
        %v4625 = vlaneseq
        %v4626 = vshrl.u32 %v4625, 7
        %v4627 = vsub.s32 %v4624, %v4626
        %v4628 = vrot.slane %v4614, %v4627
        %v4629 = vcombine.low %v4605, %v4621
        %v4630 = vcombine.high %v4605, %v4621
        %v4631 = vcombine.low %v4612, %v4628
        %v4632 = vcombine.high %v4612, %v4628
        %4634 = vrot.lane.b32.xlu0 %v4630, 8
        %v4635 = vpop.permute.xlu0 %4634
        %4638 = vrot.lane.b32.xlu0 %v4631, 16
        %v4639 = vpop.permute.xlu0 %4638
        %4642 = vrot.lane.b32.xlu0 %v4632, 24
        %v4643 = vpop.permute.xlu0 %4642
        %v4645 = vsel %vm2065, %v4629, %v4635
        %v4646 = vsel %vm2869, %v4645, %v4639
        %v4647 = vsel %vm2871, %v4646, %v4643
        %v4648 = vld [vmem:[#allocation12 + $0x40] sm:$0xff]
        %v4649 = vld [vmem:[#allocation12 + $0x48] sm:$0xff]
        %v4650 = vld [vmem:[#allocation12 + $0x50] sm:$0xff]
        %v4651 = vld [vmem:[#allocation12 + $0x58] sm:$0xff]
        %v4653 = vsel %vm2877, %v4647, 0
        %4655 = vmatprep.subr.mxu0 0.0
        %4656 = vmatpush1.msra.mxu0 0.0
        %4657 = vmatprep.subr.mxu0 0.0
        %4658 = vmatpush1.msra.mxu0 0.0
        %4659 = vmatprep.subr.mxu0 0.0
        %4660 = vmatpush1.msra.mxu0 0.0
        %4661 = vmatprep.subr.mxu0 0.0
        %4662 = vmatpush1.msra.mxu0 0.0
        %4663 = vmatprep.subr.mxu0 0.0
        %4664 = vmatpush1.msra.mxu0 0.0
        %4665 = vmatprep.subr.mxu0 0.0
        %4666 = vmatpush1.msra.mxu0 0.0
        %4667 = vmatprep.subr.mxu0 0.0
        %4668 = vmatpush1.msra.mxu0 0.0
        %4669 = vmatprep.subr.mxu0 0.0
        %4670 = vmatpush1.msra.mxu0 0.0
        %4671 = vmatprep.subr.mxu0 0.0
        %4672 = vmatpush1.msra.mxu0 0.0
        %4673 = vmatprep.subr.mxu0 0.0
        %4674 = vmatpush1.msra.mxu0 0.0
        %4675 = vmatprep.subr.mxu0 0.0
        %4676 = vmatpush1.msra.mxu0 0.0
        %4677 = vmatprep.subr.mxu0 0.0
        %4678 = vmatpush1.msra.mxu0 0.0
        %4679 = vmatprep.subr.mxu0 0.0
        %4680 = vmatpush1.msra.mxu0 %v4651
        %4681 = vmatprep.subr.mxu0 0.0
        %4682 = vmatpush1.msra.mxu0 %v4650
        %4683 = vmatprep.subr.mxu0 0.0
        %4684 = vmatpush1.msra.mxu0 %v4649
        %4685 = vmatprep.subr.mxu0 0.0
        %4686 = vmatpush1.msra.mxu0 %v4648
        %4687 = vmatprep.subr.mxu0 0.0
        %4688 = vmatpush2.msra.mxu0 0.0
        %4689 = vmatprep.subr.mxu0 0.0
        %4690 = vmatpush2.msra.mxu0 0.0
        %4691 = vmatprep.subr.mxu0 0.0
        %4692 = vmatpush2.msra.mxu0 0.0
        %4693 = vmatprep.subr.mxu0 0.0
        %4694 = vmatpush2.msra.mxu0 0.0
        %4695 = vmatprep.subr.mxu0 0.0
        %4696 = vmatpush2.msra.mxu0 0.0
        %4697 = vmatprep.subr.mxu0 0.0
        %4698 = vmatpush2.msra.mxu0 0.0
        %4699 = vmatprep.subr.mxu0 0.0
        %4700 = vmatpush2.msra.mxu0 0.0
        %4701 = vmatprep.subr.mxu0 0.0
        %4702 = vmatpush2.msra.mxu0 0.0
        %4703 = vmatprep.subr.mxu0 0.0
        %4704 = vmatpush2.msra.mxu0 0.0
        %4705 = vmatprep.subr.mxu0 0.0
        %4706 = vmatpush2.msra.mxu0 0.0
        %4707 = vmatprep.subr.mxu0 0.0
        %4708 = vmatpush2.msra.mxu0 0.0
        %4709 = vmatprep.subr.mxu0 0.0
        %4710 = vmatpush2.msra.mxu0 0.0
        %4711 = vmatprep.subr.mxu0 0.0
        %4712 = vmatpush2.msra.mxu0 0.0
        %4713 = vmatprep.subr.mxu0 0.0
        %4714 = vmatpush2.msra.mxu0 0.0
        %4715 = vmatprep.subr.mxu0 0.0
        %4716 = vmatpush2.msra.mxu0 0.0
        %4717 = vmatprep.subr.mxu0 0.0
        %4718 = vmatpush2.msra.mxu0 0.0
        %4719 = vmatprep.mubr.f32.mxu0 0.0
        %4720 = vmatmul.mubr.f32.gmra.mxu0 %v4653
        %v4721 = vpop.f32.mrf.mxu0
        %v4722 = vadd.f32 0.0, %v4721
        %v4723 = vpop.f32.mrf.mxu0
        %4724 = vdwg.mxu0
        %v4725 = vadd.f32 %v3838, %v4722
        %v4726 = vsel %vm1532, %v4725, 0.0
        %4727 = vadd.xlane.f32.xlu0 %v4726
        %v4728 = vpop.xlane.xlu0 %4727
        %v4729 = vrcp.pop 96.0
        %v4730 = vmul.f32 %v4728, %v4729
        %v4731 = vmul.f32 %v4725, %v4725
        %v4732 = vsel %vm1532, %v4731, 0.0
        %4733 = vadd.xlane.f32.xlu0 %v4732
        %v4734 = vpop.xlane.xlu0 %4733
        %v4735 = vmul.f32 %v4734, %v4729
        %v4736 = vmul.f32 %v4730, %v4730
        %v4737 = vsub.f32 %v4735, %v4736
        %v4738 = vmax.f32 %v4737, 0.0
        %v4739 = vsub.f32 %v4725, %v4730
        %v4740 = vadd.f32 %v4738, 1e-12
        %v4741 = vrsqrt.pop %v4740
        %v4742 = vmul.f32 %v4739, %v4741
        %v4743 = vld [vmem:[%s8] sm:$0x1]
        %v4745 = vlaneseq
        %v4746 = vshrl.u32 %v4745, 7
        %v4747 = vsub.s32 0, %v4746
        %v4748 = vrot.slane %v4743, %v4747
        %v4750 = vmul.f32 %v4742, %v4748
        %v4751 = vld [vmem:[%s9] sm:$0x1]
        %v4753 = vlaneseq
        %v4754 = vshrl.u32 %v4753, 7
        %v4755 = vsub.s32 0, %v4754
        %v4756 = vrot.slane %v4751, %v4755
        %v4758 = vadd.f32 %v4750, %v4756
        %4759 = vst.msk [vmem:[%s465] sm:$0xff] %vm1532, %v4758
        %s4760 = sand.u32 %s273, 1
        %s4761 = scalar_lea.sflag [#allocation6], %s4760
        %s4762 = sand.u32 %s273, 1
        %s4763 = smul.addr %s4762, 8
        %s4764 = scalar_lea.vmem [#allocation13], %s4763
        // Predicated region
        $region85: #{tpu_custom_call.1} parent=59 // pred_check
          %p4765 = pneg %p283
        $region86: #{tpu_custom_call.1} parent=59 // pred_check_branch
          %4767 = sbr.rel (%p4765) target = $region88
        $region87: #{tpu_custom_call.1} parent=59 // pred_region
          %s4769 = ssub.s32 128, 128
          %4770 = vsyncadd %s4761, %s4769
          %s4771 = sadd.s32 %s36, %s35
          %s4772 = smul.addr %s4771, 128
          %s4773 = scalar_lea.hbm %s10, %s4772
          %s4775 = sshll.u32 %s4764, 4
          %s4776 = int_to_ptr.vmem [resolvable:$true] %s4775
          %4778 = dma.vmem_to_hbm [thread:$0]  %s4776, 128, %s4773, %s4761
        $region88: #{tpu_custom_call.1} parent=59 // pred_fallthru
          _
      $region60: #{tpu_custom_call.1} parent=5 // pred_fallthru
        _
      %p4779 = scmp.le.s32.totalorder 2, %s26
      // Predicated region
      $region89: #{tpu_custom_call.1} parent=5 // pred_check
        %p4780 = pneg %p4779
      $region90: #{tpu_custom_call.1} parent=5 // pred_check_branch
        %4782 = sbr.rel (%p4780) target = $region92
      $region91: #{tpu_custom_call.1} parent=5 // pred_region
        %s4783 = ssub.s32 %s26, 2
        // Predicated region
        $region93: #{tpu_custom_call.1} parent=91 // pred_check
          %p4784 = pneg %p289
        $region94: #{tpu_custom_call.1} parent=91 // pred_check_branch
          %4786 = sbr.rel (%p4784) target = $region96
        $region95: #{tpu_custom_call.1} parent=91 // pred_region
          %s4787 = sand.u32 %s274, 1
          %s4788 = scalar_lea.sflag [#allocation6], %s4787
          %s4789 = sand.u32 %s274, 1
          %s4790 = smul.addr %s4789, 8
          %s4791 = scalar_lea.vmem [#allocation13], %s4790
          %4792 = dma.done %s4788, 128
        $region96: #{tpu_custom_call.1} parent=91 // pred_fallthru
          _
      $region92: #{tpu_custom_call.1} parent=5 // pred_fallthru
        _
    $region6: #{tpu_custom_call.1} parent=1 // loop_footer
      %s30 = sadd.s32 1, %s26
    $region7: #{tpu_custom_call.1} parent=1 // loop_footer_branch
      %25 = sbr.rel target = $region3
    $region8: #{tpu_custom_call.1} parent=1 // loop_exit
      _
    %4793 = vsyncpa [#allocation5], 1
    %s4794 = scalar_lea.sflag [#allocation5], 1
    %4795 = vsyncpa %s4794, 1
    %4796 = vsyncpa [#allocation8], 1
    %s4797 = scalar_lea.sflag [#allocation8], 1
    %4798 = vsyncpa %s4797, 1
    %4799 = vsyncpa [#allocation11], 1
    %4800 = vsyncpa [#allocation6], 1
    %s4801 = scalar_lea.sflag [#allocation6], 1
    %4802 = vsyncpa %s4801, 1

</llo_original>
